<compile_context>
chip_gen: v7x
topology: tpu7x:2x2x1
jax: 0.10.0
libtpu: 0.0.40
codegen_flags: <defaults>
</compile_context>

<pallas_src>
import functools

import jax
import jax.numpy as jnp
from jax.experimental import pallas as pl
from jax.experimental.pallas import tpu as pltpu


def _round_up(x, m):
    return (x + m - 1) // m * m


# --------------------------------------------------------------------------- #
# Kernel bodies
# --------------------------------------------------------------------------- #

def _mlp_and_store(feat, w1_ref, b1_ref, w2_ref, b2_ref, w3t_ref, b3_ref,
                   out_ref):
    """Shared MLP tail; writes the [TE] result sublane-dense to out_ref.

    feat: [TE, D] per-edge feature tile (f32 or bf16).
    out_ref: [TE//128, 128] f32 block.
    """
    # Linear(D, 32) + ReLU   (Dropout == identity in eval mode)
    h = jnp.dot(feat, w1_ref[...], preferred_element_type=jnp.float32)
    h = jnp.maximum(h + b1_ref[...], 0.0)                       # [TE, 32]

    # Linear(32, 32) + ReLU
    h = jnp.dot(h, w2_ref[...], preferred_element_type=jnp.float32)
    h = jnp.maximum(h + b2_ref[...], 0.0)                       # [TE, 32]

    # Linear(32, 1) computed lane-dense: w3^T [1,32] contracted against
    # h [TE,32] along the 32-dim -> full-lane [1, TE] MXU result.
    o = jax.lax.dot_general(
        w3t_ref[...], h,
        dimension_numbers=(((1,), (1,)), ((), ())),
        preferred_element_type=jnp.float32)                     # [1, TE]
    o = o + b3_ref[...]                                         # b3 [1,1] broadcasts

    # Lane -> sublane retile so the HBM writeback uses dense (8,128) tiles
    # (unmasked full vst) instead of one valid sublane per tile.  Done as
    # static 128-aligned vreg copies so it lowers on every Mosaic version.
    rows = out_ref.shape[0]                                     # TE // 128
    for r in range(rows):
        out_ref[r, :] = o[0, r * 128:(r + 1) * 128]


def _dlp_vmem_table_kernel(src_ref, dst_ref, emb_ref,
                           w1_ref, b1_ref, w2_ref, b2_ref, w3t_ref, b3_ref,
                           out_ref):
    """VMEM-resident embedding table + in-kernel row gather."""
    # The table is a constant-index block: DMA'd into VMEM once and reused
    # across all grid steps.  Per-step HBM input traffic is just the indices.
    tbl = emb_ref[...]                                          # [N_pad, D] f32
    e_src = jnp.take(tbl, src_ref[...], axis=0, mode="clip")    # [TE, D]
    e_dst = jnp.take(tbl, dst_ref[...], axis=0, mode="clip")    # [TE, D]
    feat = e_src * e_dst                                        # "dot" feature
    _mlp_and_store(feat, w1_ref, b1_ref, w2_ref, b2_ref, w3t_ref, b3_ref,
                   out_ref)


def _dlp_pregathered_kernel(esrc_ref, edst_ref,
                            w1_ref, b1_ref, w2_ref, b2_ref, w3t_ref, b3_ref,
                            out_ref):
    """Fallback: pre-gathered bf16 embedding rows; accumulate in f32."""
    feat = esrc_ref[...] * edst_ref[...]                        # [TE, D] bf16
    _mlp_and_store(feat, w1_ref, b1_ref, w2_ref, b2_ref, w3t_ref, b3_ref,
                   out_ref)


# --------------------------------------------------------------------------- #
# Wrappers
# --------------------------------------------------------------------------- #

def _pick_tile_e(tile_e, num_edges):
    """Per-generation tile choice vs. the ~0.35 us per-grid-step overhead."""
    if tile_e is None:
        kind = jax.devices()[0].device_kind.lower()
        if "v7" in kind:
            tile_e = 8192       # ~3.2 TB/s HBM: big tiles, still < 64 MiB VMEM
        elif "v6" in kind:
            tile_e = 4096
        else:
            tile_e = 2048       # v5e: fits the 16 MiB default scoped VMEM
    tile_e = max(1024, _round_up(int(tile_e), 1024))
    # Don't pick a tile much larger than the (padded) edge list, and keep at
    # least two grid steps when possible so both v7x TensorCores get work.
    tile_e = min(tile_e, _round_up(num_edges, 1024))
    if pl.cdiv(num_edges, tile_e) == 1 and tile_e > 1024:
        tile_e = max(1024, _round_up(tile_e // 2, 1024))
    return tile_e


@functools.partial(jax.jit, static_argnames=("tile_e",))
def _forward_vmem_table(emb_nodes, src, dst, w1, b1, w2, b2, w3t, b3, *, tile_e):
    n, d = emb_nodes.shape
    e = src.shape[0]
    num_tiles = pl.cdiv(e, tile_e)
    e_pad = num_tiles * tile_e
    if e_pad != e:
        src = jnp.pad(src, (0, e_pad - e))   # pad with row 0; sliced off below
        dst = jnp.pad(dst, (0, e_pad - e))
    n_pad = _round_up(n, 8)
    if n_pad != n:
        emb_nodes = jnp.pad(emb_nodes, ((0, n_pad - n), (0, 0)))

    rep = lambda i: (0, 0)                   # constant (whole-array) blocks
    table_bytes = n_pad * d * emb_nodes.dtype.itemsize
    vmem_limit = int(min(48 << 20, max(32 << 20, 2 * table_bytes + (24 << 20))))

    out = pl.pallas_call(
        _dlp_vmem_table_kernel,
        out_shape=jax.ShapeDtypeStruct((e_pad // 128, 128), jnp.float32),
        grid_spec=pltpu.PrefetchScalarGridSpec(
            num_scalar_prefetch=0,
            grid=(num_tiles,),
            in_specs=[
                pl.BlockSpec((tile_e,), lambda i: (i,)),        # src index tile
                pl.BlockSpec((tile_e,), lambda i: (i,)),        # dst index tile
                pl.BlockSpec((n_pad, d), rep),                  # resident table
                pl.BlockSpec(w1.shape, rep),
                pl.BlockSpec(b1.shape, rep),
                pl.BlockSpec(w2.shape, rep),
                pl.BlockSpec(b2.shape, rep),
                pl.BlockSpec(w3t.shape, rep),
                pl.BlockSpec(b3.shape, rep),
            ],
            out_specs=pl.BlockSpec((tile_e // 128, 128), lambda i: (i, 0)),
        ),
        compiler_params=pltpu.CompilerParams(
            dimension_semantics=("parallel",),
            vmem_limit_bytes=vmem_limit),
    )(src, dst, emb_nodes, w1, b1, w2, b2, w3t, b3)

    return out.reshape(e_pad)[:e]


@functools.partial(jax.jit, static_argnames=("tile_e",))
def _forward_pregathered(emb_nodes, src, dst, w1, b1, w2, b2, w3t, b3, *, tile_e):
    d = emb_nodes.shape[1]
    e = src.shape[0]
    num_tiles = pl.cdiv(e, tile_e)
    e_pad = num_tiles * tile_e
    if e_pad != e:
        src = jnp.pad(src, (0, e_pad - e))
        dst = jnp.pad(dst, (0, e_pad - e))

    # bf16 embeddings: halves the dominant HBM read traffic; the MLP still
    # accumulates in f32 (numerics deviate from the f32 reference at ~1e-3).
    emb_bf = emb_nodes.astype(jnp.bfloat16)
    e_src = emb_bf[src]                                         # [E_pad, D]
    e_dst = emb_bf[dst]

    rep = lambda i: (0, 0)
    out = pl.pallas_call(
        _dlp_pregathered_kernel,
        out_shape=jax.ShapeDtypeStruct((e_pad // 128, 128), jnp.float32),
        grid_spec=pltpu.PrefetchScalarGridSpec(
            num_scalar_prefetch=0,
            grid=(num_tiles,),
            in_specs=[
                pl.BlockSpec((tile_e, d), lambda i: (i, 0)),    # e_src tile
                pl.BlockSpec((tile_e, d), lambda i: (i, 0)),    # e_dst tile
                pl.BlockSpec(w1.shape, rep),
                pl.BlockSpec(b1.shape, rep),
                pl.BlockSpec(w2.shape, rep),
                pl.BlockSpec(b2.shape, rep),
                pl.BlockSpec(w3t.shape, rep),
                pl.BlockSpec(b3.shape, rep),
            ],
            out_specs=pl.BlockSpec((tile_e // 128, 128), lambda i: (i, 0)),
        ),
        compiler_params=pltpu.CompilerParams(
            dimension_semantics=("parallel",),
            # Let XLA fuse the two gathers into the kernel operand fetch so the
            # [E_pad, D] temporaries need not round-trip HBM (advisory).
            allow_input_fusion=[True, True, False, False, False, False, False,
                                False]),
    )(e_src, e_dst, w1, b1, w2, b2, w3t, b3)

    return out.reshape(e_pad)[:e]


def dlp_model2_forward(params, node_id, edge_label_index, *, tile_e=None,
                       force_pregathered=False,
                       vmem_table_budget_bytes=12 << 20):
    """JAX/Pallas equivalent of DLP_model2.forward (feature='dot', eval mode)."""
    emb_nodes = params["emb"][node_id]           # Embedding(node_id): [N, D]
    src = edge_label_index[0].astype(jnp.int32)
    dst = edge_label_index[1].astype(jnp.int32)

    w1, b1 = params["w1"], params["b1"]          # [D,32], [1,32]
    w2, b2 = params["w2"], params["b2"]          # [32,32], [1,32]
    w3, b3 = params["w3"], params["b3"]          # [32,1],  [1,1]
    w3t = w3.T                                   # [1,32] lane-dense form

    tile = _pick_tile_e(tile_e, src.shape[0])
    args = (emb_nodes, src, dst, w1, b1, w2, b2, w3t, b3)

    table_bytes = (emb_nodes.shape[0] * emb_nodes.shape[1]
                   * emb_nodes.dtype.itemsize)
    if not force_pregathered and table_bytes <= vmem_table_budget_bytes:
        try:
            return _forward_vmem_table(*args, tile_e=tile)
        except Exception:
            # TODO(synk): the in-kernel row gather (jnp.take -> Mosaic
            # dynamic-gather) is not lowerable on every jax/libtpu version;
            # fall back to the pre-gathered bf16 path if it fails to compile.
            pass
    return _forward_pregathered(*args, tile_e=tile)


# --------------------------------------------------------------------------- #
# Reference + demo
# --------------------------------------------------------------------------- #

def init_params(key, num_nodes, embedding_dim=128, hidden=32):
    """Deterministic synthetic parameters matching DLP_model2.__init__ shapes."""
    k = jax.random.split(key, 7)
    f32 = jnp.float32
    return {
        "emb": jax.random.normal(k[0], (num_nodes, embedding_dim), f32),
        "w1": jax.random.normal(k[1], (embedding_dim, hidden), f32) * 0.05,
        "b1": jax.random.normal(k[2], (1, hidden), f32) * 0.01,
        "w2": jax.random.normal(k[3], (hidden, hidden), f32) * 0.05,
        "b2": jax.random.normal(k[4], (1, hidden), f32) * 0.01,
        "w3": jax.random.normal(k[5], (hidden, 1), f32) * 0.05,
        "b3": jax.random.normal(k[6], (1, 1), f32) * 0.01,
    }


def reference_forward(params, node_id, edge_label_index):
    """Pure-JAX reference of the same forward pass (f32 end to end)."""
    emb = params["emb"][node_id]
    feat = emb[edge_label_index[0]] * emb[edge_label_index[1]]
    h = jnp.maximum(feat @ params["w1"] + params["b1"], 0.0)
    h = jnp.maximum(h @ params["w2"] + params["b2"], 0.0)
    return jnp.squeeze(h @ params["w3"] + params["b3"], axis=-1)


if __name__ == "__main__":
    key = jax.random.PRNGKey(0)
    num_nodes = 64
    embedding_dim = 128
    num_edges = 2500          # deliberately NOT a multiple of tile_e

    k_param, k_edges = jax.random.split(key)
    params = init_params(k_param, num_nodes, embedding_dim)

    node_id = jnp.arange(num_nodes, dtype=jnp.int32)
    edge_label_index = jax.random.randint(
        k_edges, (2, num_edges), 0, num_nodes, dtype=jnp.int32)

    ref = reference_forward(params, node_id, edge_label_index)

    # Primary path: VMEM-resident table + in-kernel gather (table is tiny here).
    pred = dlp_model2_forward(params, node_id, edge_label_index, tile_e=1024)
    pred = jax.block_until_ready(pred)
    assert pred.shape == (num_edges,)
    assert jnp.allclose(pred, ref, atol=1e-2, rtol=1e-2), "mismatch (vmem path)"

    # Fallback path (pre-gathered bf16 embeddings) exercised explicitly.
    pred2 = dlp_model2_forward(params, node_id, edge_label_index, tile_e=1024,
                               force_pregathered=True)
    pred2 = jax.block_until_ready(pred2)
    assert pred2.shape == (num_edges,)
    assert jnp.allclose(pred2, ref, atol=1e-2, rtol=1e-2), "mismatch (bf16 path)"

    print("KERNEL_OK")
</pallas_src>

<mosaic_0001>
module attributes {stable_mosaic.version = 11 : i64} {
  func.func @_dlp_pregathered_kernel(%arg0: i32, %arg1: memref<1024x128xbf16, #tpu.memory_space<vmem>>, %arg2: memref<1024x128xbf16, #tpu.memory_space<vmem>>, %arg3: memref<128x32xf32, #tpu.memory_space<vmem>>, %arg4: memref<1x32xf32, #tpu.memory_space<vmem>>, %arg5: memref<32x32xf32, #tpu.memory_space<vmem>>, %arg6: memref<1x32xf32, #tpu.memory_space<vmem>>, %arg7: memref<1x32xf32, #tpu.memory_space<vmem>>, %arg8: memref<1x1xf32, #tpu.memory_space<vmem>>, %arg9: memref<8x128xf32, #tpu.memory_space<vmem>>) attributes {dimension_semantics = [#tpu.dimension_semantics<parallel>], iteration_bounds = array<i64: 3>, scalar_prefetch = 0 : i64, scratch_operands = 0 : i64, tpu.core_type = #tpu.core_type<tc>, window_params = [{transform_indices = @transform_0, window_bounds = array<i64: 1024, 128>}, {transform_indices = @transform_1, window_bounds = array<i64: 1024, 128>}, {pipeline_mode = #tpu.pipeline_mode<synchronous>, transform_indices = @transform_2, window_bounds = array<i64: 128, 32>}, {pipeline_mode = #tpu.pipeline_mode<synchronous>, transform_indices = @transform_3, window_bounds = array<i64: 1, 32>}, {pipeline_mode = #tpu.pipeline_mode<synchronous>, transform_indices = @transform_4, window_bounds = array<i64: 32, 32>}, {pipeline_mode = #tpu.pipeline_mode<synchronous>, transform_indices = @transform_5, window_bounds = array<i64: 1, 32>}, {pipeline_mode = #tpu.pipeline_mode<synchronous>, transform_indices = @transform_6, window_bounds = array<i64: 1, 32>}, {pipeline_mode = #tpu.pipeline_mode<synchronous>, transform_indices = @transform_7, window_bounds = array<i64: 1, 1>}, {transform_indices = @transform_8, window_bounds = array<i64: 8, 128>}]} {
    %c0 = arith.constant 0 : index
    %c0_0 = arith.constant 0 : index
    %0 = vector.load %arg1[%c0, %c0_0] : memref<1024x128xbf16, #tpu.memory_space<vmem>>, vector<1024x128xbf16>
    %c0_1 = arith.constant 0 : index
    %c0_2 = arith.constant 0 : index
    %1 = vector.load %arg2[%c0_1, %c0_2] : memref<1024x128xbf16, #tpu.memory_space<vmem>>, vector<1024x128xbf16>
    %2 = arith.mulf %0, %1 : vector<1024x128xbf16>
    %c0_3 = arith.constant 0 : index
    %c0_4 = arith.constant 0 : index
    %3 = vector.load %arg3[%c0_3, %c0_4] : memref<128x32xf32, #tpu.memory_space<vmem>>, vector<128x32xf32>
    %cst = arith.constant dense<0.000000e+00> : vector<1024x32xf32>
    %4 = tpu.matmul %2, %3, %cst {dimension_numbers = #tpu.dot_dimension_numbers<[1], [0], [0], [1], [0, 0, 1, 1], [], []>} : vector<1024x128xbf16>, vector<128x32xf32>, vector<1024x32xf32> -> vector<1024x32xf32>
    %c0_5 = arith.constant 0 : index
    %c0_6 = arith.constant 0 : index
    %5 = vector.load %arg4[%c0_5, %c0_6] : memref<1x32xf32, #tpu.memory_space<vmem>>, vector<1x32xf32>
    %6 = vector.broadcast %5 : vector<1x32xf32> to vector<1024x32xf32>
    %7 = arith.addf %4, %6 : vector<1024x32xf32>
    %cst_7 = arith.constant 0.000000e+00 : f32
    %8 = vector.broadcast %cst_7 : f32 to vector<1024x32xf32>
    %9 = arith.maximumf %7, %8 : vector<1024x32xf32>
    %c0_8 = arith.constant 0 : index
    %c0_9 = arith.constant 0 : index
    %10 = vector.load %arg5[%c0_8, %c0_9] : memref<32x32xf32, #tpu.memory_space<vmem>>, vector<32x32xf32>
    %cst_10 = arith.constant dense<0.000000e+00> : vector<1024x32xf32>
    %11 = tpu.matmul %9, %10, %cst_10 {dimension_numbers = #tpu.dot_dimension_numbers<[1], [0], [0], [1], [0, 0, 1, 1], [], []>} : vector<1024x32xf32>, vector<32x32xf32>, vector<1024x32xf32> -> vector<1024x32xf32>
    %c0_11 = arith.constant 0 : index
    %c0_12 = arith.constant 0 : index
    %12 = vector.load %arg6[%c0_11, %c0_12] : memref<1x32xf32, #tpu.memory_space<vmem>>, vector<1x32xf32>
    %13 = vector.broadcast %12 : vector<1x32xf32> to vector<1024x32xf32>
    %14 = arith.addf %11, %13 : vector<1024x32xf32>
    %cst_13 = arith.constant 0.000000e+00 : f32
    %15 = vector.broadcast %cst_13 : f32 to vector<1024x32xf32>
    %16 = arith.maximumf %14, %15 : vector<1024x32xf32>
    %c0_14 = arith.constant 0 : index
    %c0_15 = arith.constant 0 : index
    %17 = vector.load %arg7[%c0_14, %c0_15] : memref<1x32xf32, #tpu.memory_space<vmem>>, vector<1x32xf32>
    %cst_16 = arith.constant dense<0.000000e+00> : vector<1x1024xf32>
    %18 = tpu.matmul %17, %16, %cst_16 {dimension_numbers = #tpu.dot_dimension_numbers<[1], [1], [0], [0], [0, 0, 1, 0], [], []>} : vector<1x32xf32>, vector<1024x32xf32>, vector<1x1024xf32> -> vector<1x1024xf32>
    %c0_17 = arith.constant 0 : index
    %c0_18 = arith.constant 0 : index
    %19 = vector.load %arg8[%c0_17, %c0_18] : memref<1x1xf32, #tpu.memory_space<vmem>>, vector<1x1xf32>
    %20 = vector.broadcast %19 : vector<1x1xf32> to vector<1x1024xf32>
    %21 = arith.addf %18, %20 : vector<1x1024xf32>
    %22 = vector.extract_strided_slice %21 {offsets = [0, 0], sizes = [1, 128], strides = [1, 1]} : vector<1x1024xf32> to vector<1x128xf32>
    %23 = vector.shape_cast %22 : vector<1x128xf32> to vector<128xf32>
    %c0_19 = arith.constant 0 : index
    %c0_20 = arith.constant 0 : index
    %24 = vector.load %arg9[%c0_19, %c0_20] : memref<8x128xf32, #tpu.memory_space<vmem>>, vector<1x128xf32>
    %25 = vector.shape_cast %24 : vector<1x128xf32> to vector<128xf32>
    %26 = vector.shape_cast %23 : vector<128xf32> to vector<1x128xf32>
    tpu.vector_store %arg9[%c0_19, %c0_20], %26 {strides = array<i32>} : memref<8x128xf32, #tpu.memory_space<vmem>>, vector<1x128xf32>,
    %27 = vector.extract_strided_slice %21 {offsets = [0, 128], sizes = [1, 128], strides = [1, 1]} : vector<1x1024xf32> to vector<1x128xf32>
    %28 = vector.shape_cast %27 : vector<1x128xf32> to vector<128xf32>
    %c1 = arith.constant 1 : index
    %c0_21 = arith.constant 0 : index
    %29 = vector.load %arg9[%c1, %c0_21] : memref<8x128xf32, #tpu.memory_space<vmem>>, vector<1x128xf32>
    %30 = vector.shape_cast %29 : vector<1x128xf32> to vector<128xf32>
    %31 = vector.shape_cast %28 : vector<128xf32> to vector<1x128xf32>
    tpu.vector_store %arg9[%c1, %c0_21], %31 {strides = array<i32>} : memref<8x128xf32, #tpu.memory_space<vmem>>, vector<1x128xf32>,
    %32 = vector.extract_strided_slice %21 {offsets = [0, 256], sizes = [1, 128], strides = [1, 1]} : vector<1x1024xf32> to vector<1x128xf32>
    %33 = vector.shape_cast %32 : vector<1x128xf32> to vector<128xf32>
    %c2 = arith.constant 2 : index
    %c0_22 = arith.constant 0 : index
    %34 = vector.load %arg9[%c2, %c0_22] : memref<8x128xf32, #tpu.memory_space<vmem>>, vector<1x128xf32>
    %35 = vector.shape_cast %34 : vector<1x128xf32> to vector<128xf32>
    %36 = vector.shape_cast %33 : vector<128xf32> to vector<1x128xf32>
    tpu.vector_store %arg9[%c2, %c0_22], %36 {strides = array<i32>} : memref<8x128xf32, #tpu.memory_space<vmem>>, vector<1x128xf32>,
    %37 = vector.extract_strided_slice %21 {offsets = [0, 384], sizes = [1, 128], strides = [1, 1]} : vector<1x1024xf32> to vector<1x128xf32>
    %38 = vector.shape_cast %37 : vector<1x128xf32> to vector<128xf32>
    %c3 = arith.constant 3 : index
    %c0_23 = arith.constant 0 : index
    %39 = vector.load %arg9[%c3, %c0_23] : memref<8x128xf32, #tpu.memory_space<vmem>>, vector<1x128xf32>
    %40 = vector.shape_cast %39 : vector<1x128xf32> to vector<128xf32>
    %41 = vector.shape_cast %38 : vector<128xf32> to vector<1x128xf32>
    tpu.vector_store %arg9[%c3, %c0_23], %41 {strides = array<i32>} : memref<8x128xf32, #tpu.memory_space<vmem>>, vector<1x128xf32>,
    %42 = vector.extract_strided_slice %21 {offsets = [0, 512], sizes = [1, 128], strides = [1, 1]} : vector<1x1024xf32> to vector<1x128xf32>
    %43 = vector.shape_cast %42 : vector<1x128xf32> to vector<128xf32>
    %c4 = arith.constant 4 : index
    %c0_24 = arith.constant 0 : index
    %44 = vector.load %arg9[%c4, %c0_24] : memref<8x128xf32, #tpu.memory_space<vmem>>, vector<1x128xf32>
    %45 = vector.shape_cast %44 : vector<1x128xf32> to vector<128xf32>
    %46 = vector.shape_cast %43 : vector<128xf32> to vector<1x128xf32>
    tpu.vector_store %arg9[%c4, %c0_24], %46 {strides = array<i32>} : memref<8x128xf32, #tpu.memory_space<vmem>>, vector<1x128xf32>,
    %47 = vector.extract_strided_slice %21 {offsets = [0, 640], sizes = [1, 128], strides = [1, 1]} : vector<1x1024xf32> to vector<1x128xf32>
    %48 = vector.shape_cast %47 : vector<1x128xf32> to vector<128xf32>
    %c5 = arith.constant 5 : index
    %c0_25 = arith.constant 0 : index
    %49 = vector.load %arg9[%c5, %c0_25] : memref<8x128xf32, #tpu.memory_space<vmem>>, vector<1x128xf32>
    %50 = vector.shape_cast %49 : vector<1x128xf32> to vector<128xf32>
    %51 = vector.shape_cast %48 : vector<128xf32> to vector<1x128xf32>
    tpu.vector_store %arg9[%c5, %c0_25], %51 {strides = array<i32>} : memref<8x128xf32, #tpu.memory_space<vmem>>, vector<1x128xf32>,
    %52 = vector.extract_strided_slice %21 {offsets = [0, 768], sizes = [1, 128], strides = [1, 1]} : vector<1x1024xf32> to vector<1x128xf32>
    %53 = vector.shape_cast %52 : vector<1x128xf32> to vector<128xf32>
    %c6 = arith.constant 6 : index
    %c0_26 = arith.constant 0 : index
    %54 = vector.load %arg9[%c6, %c0_26] : memref<8x128xf32, #tpu.memory_space<vmem>>, vector<1x128xf32>
    %55 = vector.shape_cast %54 : vector<1x128xf32> to vector<128xf32>
    %56 = vector.shape_cast %53 : vector<128xf32> to vector<1x128xf32>
    tpu.vector_store %arg9[%c6, %c0_26], %56 {strides = array<i32>} : memref<8x128xf32, #tpu.memory_space<vmem>>, vector<1x128xf32>,
    %57 = vector.extract_strided_slice %21 {offsets = [0, 896], sizes = [1, 128], strides = [1, 1]} : vector<1x1024xf32> to vector<1x128xf32>
    %58 = vector.shape_cast %57 : vector<1x128xf32> to vector<128xf32>
    %c7 = arith.constant 7 : index
    %c0_27 = arith.constant 0 : index
    %59 = vector.load %arg9[%c7, %c0_27] : memref<8x128xf32, #tpu.memory_space<vmem>>, vector<1x128xf32>
    %60 = vector.shape_cast %59 : vector<1x128xf32> to vector<128xf32>
    %61 = vector.shape_cast %58 : vector<128xf32> to vector<1x128xf32>
    tpu.vector_store %arg9[%c7, %c0_27], %61 {strides = array<i32>} : memref<8x128xf32, #tpu.memory_space<vmem>>, vector<1x128xf32>,
    return
  }
  func.func @transform_0(%arg0: i32) -> (i32, i32) {
    %c0_i32 = arith.constant 0 : i32
    %c0_i32_0 = arith.constant 0 : i32
    return %arg0, %c0_i32 : i32, i32
  }
  func.func @transform_1(%arg0: i32) -> (i32, i32) {
    %c0_i32 = arith.constant 0 : i32
    %c0_i32_0 = arith.constant 0 : i32
    return %arg0, %c0_i32 : i32, i32
  }
  func.func @transform_2(%arg0: i32) -> (i32, i32) {
    %c0_i32 = arith.constant 0 : i32
    %c0_i32_0 = arith.constant 0 : i32
    %c0_i32_1 = arith.constant 0 : i32
    return %c0_i32, %c0_i32_0 : i32, i32
  }
  func.func @transform_3(%arg0: i32) -> (i32, i32) {
    %c0_i32 = arith.constant 0 : i32
    %c0_i32_0 = arith.constant 0 : i32
    %c0_i32_1 = arith.constant 0 : i32
    return %c0_i32, %c0_i32_0 : i32, i32
  }
  func.func @transform_4(%arg0: i32) -> (i32, i32) {
    %c0_i32 = arith.constant 0 : i32
    %c0_i32_0 = arith.constant 0 : i32
    %c0_i32_1 = arith.constant 0 : i32
    return %c0_i32, %c0_i32_0 : i32, i32
  }
  func.func @transform_5(%arg0: i32) -> (i32, i32) {
    %c0_i32 = arith.constant 0 : i32
    %c0_i32_0 = arith.constant 0 : i32
    %c0_i32_1 = arith.constant 0 : i32
    return %c0_i32, %c0_i32_0 : i32, i32
  }
  func.func @transform_6(%arg0: i32) -> (i32, i32) {
    %c0_i32 = arith.constant 0 : i32
    %c0_i32_0 = arith.constant 0 : i32
    %c0_i32_1 = arith.constant 0 : i32
    return %c0_i32, %c0_i32_0 : i32, i32
  }
  func.func @transform_7(%arg0: i32) -> (i32, i32) {
    %c0_i32 = arith.constant 0 : i32
    %c0_i32_0 = arith.constant 0 : i32
    %c0_i32_1 = arith.constant 0 : i32
    return %c0_i32, %c0_i32_0 : i32, i32
  }
  func.func @transform_8(%arg0: i32) -> (i32, i32) {
    %c0_i32 = arith.constant 0 : i32
    %c0_i32_0 = arith.constant 0 : i32
    return %arg0, %c0_i32 : i32, i32
  }
}

</mosaic_0001>

<llo_original>
// kernel: _forward_pregathered.1
$region0: #{_forward_pregathered.1}
  #allocation0 [shape = 'u32[]', space=smem, size = 0x4, offset = 0x4, fixed_abs, tag = 'smem constant byte address 0x4 - core index']
  #allocation1 [shape = 'u32[144,128]{1,0:T(1,128)}', space=vmem, size = 0x12000, scoped, tag = 'internal scratch']
  #allocation2 [shape = 'f32[1,1]{1,0:T(1,128)S(1)}', space=vmem, size = 0x200, scoped, tag = 'scoped memory for _forward_pregathered.1']
  %s0 = inlined_call_operand.vmem [shape: bf16[3072,128], index: 0, kind: input, shape index: {}]
  %s1 = inlined_call_operand.vmem [shape: bf16[3072,128], index: 1, kind: input, shape index: {}]
  %s2 = inlined_call_operand.vmem [shape: f32[128,32], index: 2, kind: input, shape index: {}]
  %s3 = inlined_call_operand.vmem [shape: f32[1,32], index: 3, kind: input, shape index: {}]
  %s4 = inlined_call_operand.vmem [shape: f32[32,32], index: 4, kind: input, shape index: {}]
  %s5 = inlined_call_operand.vmem [shape: f32[1,32], index: 5, kind: input, shape index: {}]
  %s6 = inlined_call_operand.vmem [shape: f32[1,32], index: 6, kind: input, shape index: {}]
  %s7 = inlined_call_operand.<no memory space> [shape: f32[1,1], index: 7, kind: input, shape index: {}]
  %s8 = inlined_call_operand.hbm [shape: f32[24,128], index: 8, kind: output, shape index: {}]
  %s9 = sld [smem:[#allocation0]]
  $region65: #{_forward_pregathered.1} parent=0
    _
  %s11 = ssub.s32 1, %s9
  %s12 = scalar_select 0, %s11, %s9
  %v13 = vstv %s7
  %14 = vst [vmem:[#allocation2] sm:$0x1] %v13
  $region1: #{_forward_pregathered.1} parent=0
    #allocation3 [shape = 'u8[8192]{0}', space=vmem, size = 0x2000, scoped, tag = 'output window, operand 0']
    #allocation4 [shape = 's32[2]{0}', space=sflag, size = 0x8, scoped, tag = 'scoped memory for _forward_pregathered.1']
    %15 = vsyncpa [#allocation4], 0
    %s16 = scalar_lea.sflag [#allocation4], 1
    %17 = vsyncpa %s16, 0
    loop: start=0, step=1, limit=5
    $region2: #{_forward_pregathered.1} parent=1 // loop_pre_header
      _
    $region3: #{_forward_pregathered.1} parent=1 // loop_header
      %s19 = sphi 0, %s23
      %p20 = scmp.ge.s32.totalorder %s19, 5
      %s29 = sphi 0, %s31
      %s32 = sphi 0, %s29
      %s33 = sphi 0, %s32
      %s49 = sphi 0, %s33
      %s55 = sphi 0, %s57
      %s58 = sphi 0, %s55
      %s59 = sphi 0, %s58
      %s75 = sphi 0, %s59
      %s79 = sphi 0, %s79
      %s81 = sphi 0, %s79
      %s82 = sphi 0, %s81
      %s96 = sphi 0, %s82
      %s100 = sphi 0, %s100
      %s102 = sphi 0, %s100
      %s103 = sphi 0, %s102
      %s117 = sphi 0, %s103
      %s121 = sphi 0, %s121
      %s123 = sphi 0, %s121
      %s124 = sphi 0, %s123
      %s138 = sphi 0, %s124
      %s142 = sphi 0, %s142
      %s144 = sphi 0, %s142
      %s145 = sphi 0, %s144
      %s159 = sphi 0, %s145
      %s163 = sphi 0, %s163
      %s165 = sphi 0, %s163
      %s166 = sphi 0, %s165
      %s180 = sphi 0, %s166
      %s184 = sphi 0, %s184
      %s186 = sphi 0, %s184
      %s187 = sphi 0, %s186
      %s201 = sphi 0, %s187
      %s207 = sphi 0, %s209
      %s210 = sphi 0, %s207
      %s211 = sphi 0, %s210
      %s227 = sphi 0, %s211
    $region4: #{_forward_pregathered.1} parent=1 // loop_header_branch
      %22 = sbr.rel (%p20) target = $region8
    $region5: #{_forward_pregathered.1} parent=1 // loop_body
      %s24 = ssub.s32 %s19, 1
      %s25 = ssub.s32 %s19, 2
      %s26 = sadd.s32 %s19, 1
      %s27 = ssub.s32 %s19, %s26
      %p28 = scmp.eq.s32.totalorder %s27, 0
      %s30 = sadd.s32 %s29, 1
      %s31 = scalar_select %p28, %s29, %s30
      %p34 = pneg %p28
      %p35 = scmp.eq.s32.totalorder %s19, 2
      %p36 = por %p34, %p35
      %p37 = scmp.ne.s32.totalorder %s29, %s32
      %p38 = scmp.eq.s32.totalorder %s19, 0
      %p39 = por %p37, %p38
      %p40 = scmp.ne.s32.totalorder %s29, %s32
      %p41 = scmp.eq.s32.totalorder %s24, 2
      %p42 = por %p40, %p41
      %p43 = scmp.ne.s32.totalorder %s32, %s33
      %p44 = scmp.eq.s32.totalorder %s24, 0
      %p45 = por %p43, %p44
      %p46 = scmp.ne.s32.totalorder %s32, %s33
      %p47 = scmp.eq.s32.totalorder %s25, 2
      %p48 = por %p46, %p47
      %p50 = scmp.ne.s32.totalorder %s33, %s49
      %p51 = scmp.eq.s32.totalorder %s25, 0
      %p52 = por %p50, %p51
      %s53 = ssub.s32 %s19, %s26
      %p54 = scmp.eq.s32.totalorder %s53, 0
      %s56 = sadd.s32 %s55, 1
      %s57 = scalar_select %p54, %s55, %s56
      %p60 = pneg %p54
      %p61 = scmp.eq.s32.totalorder %s19, 2
      %p62 = por %p60, %p61
      %p63 = scmp.ne.s32.totalorder %s55, %s58
      %p64 = scmp.eq.s32.totalorder %s19, 0
      %p65 = por %p63, %p64
      %p66 = scmp.ne.s32.totalorder %s55, %s58
      %p67 = scmp.eq.s32.totalorder %s24, 2
      %p68 = por %p66, %p67
      %p69 = scmp.ne.s32.totalorder %s58, %s59
      %p70 = scmp.eq.s32.totalorder %s24, 0
      %p71 = por %p69, %p70
      %p72 = scmp.ne.s32.totalorder %s58, %s59
      %p73 = scmp.eq.s32.totalorder %s25, 2
      %p74 = por %p72, %p73
      %p76 = scmp.ne.s32.totalorder %s59, %s75
      %p77 = scmp.eq.s32.totalorder %s25, 0
      %p78 = por %p76, %p77
      %s80 = sadd.s32 %s79, 1
      %p83 = scmp.eq.s32.totalorder %s19, 2
      %p84 = scmp.ne.s32.totalorder %s79, %s81
      %p85 = scmp.eq.s32.totalorder %s19, 0
      %p86 = por %p84, %p85
      %p87 = scmp.ne.s32.totalorder %s79, %s81
      %p88 = scmp.eq.s32.totalorder %s24, 2
      %p89 = por %p87, %p88
      %p90 = scmp.ne.s32.totalorder %s81, %s82
      %p91 = scmp.eq.s32.totalorder %s24, 0
      %p92 = por %p90, %p91
      %p93 = scmp.ne.s32.totalorder %s81, %s82
      %p94 = scmp.eq.s32.totalorder %s25, 2
      %p95 = por %p93, %p94
      %p97 = scmp.ne.s32.totalorder %s82, %s96
      %p98 = scmp.eq.s32.totalorder %s25, 0
      %p99 = por %p97, %p98
      %s101 = sadd.s32 %s100, 1
      %p104 = scmp.eq.s32.totalorder %s19, 2
      %p105 = scmp.ne.s32.totalorder %s100, %s102
      %p106 = scmp.eq.s32.totalorder %s19, 0
      %p107 = por %p105, %p106
      %p108 = scmp.ne.s32.totalorder %s100, %s102
      %p109 = scmp.eq.s32.totalorder %s24, 2
      %p110 = por %p108, %p109
      %p111 = scmp.ne.s32.totalorder %s102, %s103
      %p112 = scmp.eq.s32.totalorder %s24, 0
      %p113 = por %p111, %p112
      %p114 = scmp.ne.s32.totalorder %s102, %s103
      %p115 = scmp.eq.s32.totalorder %s25, 2
      %p116 = por %p114, %p115
      %p118 = scmp.ne.s32.totalorder %s103, %s117
      %p119 = scmp.eq.s32.totalorder %s25, 0
      %p120 = por %p118, %p119
      %s122 = sadd.s32 %s121, 1
      %p125 = scmp.eq.s32.totalorder %s19, 2
      %p126 = scmp.ne.s32.totalorder %s121, %s123
      %p127 = scmp.eq.s32.totalorder %s19, 0
      %p128 = por %p126, %p127
      %p129 = scmp.ne.s32.totalorder %s121, %s123
      %p130 = scmp.eq.s32.totalorder %s24, 2
      %p131 = por %p129, %p130
      %p132 = scmp.ne.s32.totalorder %s123, %s124
      %p133 = scmp.eq.s32.totalorder %s24, 0
      %p134 = por %p132, %p133
      %p135 = scmp.ne.s32.totalorder %s123, %s124
      %p136 = scmp.eq.s32.totalorder %s25, 2
      %p137 = por %p135, %p136
      %p139 = scmp.ne.s32.totalorder %s124, %s138
      %p140 = scmp.eq.s32.totalorder %s25, 0
      %p141 = por %p139, %p140
      %s143 = sadd.s32 %s142, 1
      %p146 = scmp.eq.s32.totalorder %s19, 2
      %p147 = scmp.ne.s32.totalorder %s142, %s144
      %p148 = scmp.eq.s32.totalorder %s19, 0
      %p149 = por %p147, %p148
      %p150 = scmp.ne.s32.totalorder %s142, %s144
      %p151 = scmp.eq.s32.totalorder %s24, 2
      %p152 = por %p150, %p151
      %p153 = scmp.ne.s32.totalorder %s144, %s145
      %p154 = scmp.eq.s32.totalorder %s24, 0
      %p155 = por %p153, %p154
      %p156 = scmp.ne.s32.totalorder %s144, %s145
      %p157 = scmp.eq.s32.totalorder %s25, 2
      %p158 = por %p156, %p157
      %p160 = scmp.ne.s32.totalorder %s145, %s159
      %p161 = scmp.eq.s32.totalorder %s25, 0
      %p162 = por %p160, %p161
      %s164 = sadd.s32 %s163, 1
      %p167 = scmp.eq.s32.totalorder %s19, 2
      %p168 = scmp.ne.s32.totalorder %s163, %s165
      %p169 = scmp.eq.s32.totalorder %s19, 0
      %p170 = por %p168, %p169
      %p171 = scmp.ne.s32.totalorder %s163, %s165
      %p172 = scmp.eq.s32.totalorder %s24, 2
      %p173 = por %p171, %p172
      %p174 = scmp.ne.s32.totalorder %s165, %s166
      %p175 = scmp.eq.s32.totalorder %s24, 0
      %p176 = por %p174, %p175
      %p177 = scmp.ne.s32.totalorder %s165, %s166
      %p178 = scmp.eq.s32.totalorder %s25, 2
      %p179 = por %p177, %p178
      %p181 = scmp.ne.s32.totalorder %s166, %s180
      %p182 = scmp.eq.s32.totalorder %s25, 0
      %p183 = por %p181, %p182
      %s185 = sadd.s32 %s184, 1
      %p188 = scmp.eq.s32.totalorder %s19, 2
      %p189 = scmp.ne.s32.totalorder %s184, %s186
      %p190 = scmp.eq.s32.totalorder %s19, 0
      %p191 = por %p189, %p190
      %p192 = scmp.ne.s32.totalorder %s184, %s186
      %p193 = scmp.eq.s32.totalorder %s24, 2
      %p194 = por %p192, %p193
      %p195 = scmp.ne.s32.totalorder %s186, %s187
      %p196 = scmp.eq.s32.totalorder %s24, 0
      %p197 = por %p195, %p196
      %p198 = scmp.ne.s32.totalorder %s186, %s187
      %p199 = scmp.eq.s32.totalorder %s25, 2
      %p200 = por %p198, %p199
      %p202 = scmp.ne.s32.totalorder %s187, %s201
      %p203 = scmp.eq.s32.totalorder %s25, 0
      %p204 = por %p202, %p203
      %s205 = ssub.s32 %s19, %s26
      %p206 = scmp.eq.s32.totalorder %s205, 0
      %s208 = sadd.s32 %s207, 1
      %s209 = scalar_select %p206, %s207, %s208
      %p212 = pneg %p206
      %p213 = scmp.eq.s32.totalorder %s19, 2
      %p214 = por %p212, %p213
      %p215 = scmp.ne.s32.totalorder %s207, %s210
      %p216 = scmp.eq.s32.totalorder %s19, 0
      %p217 = por %p215, %p216
      %p218 = scmp.ne.s32.totalorder %s207, %s210
      %p219 = scmp.eq.s32.totalorder %s24, 2
      %p220 = por %p218, %p219
      %p221 = scmp.ne.s32.totalorder %s210, %s211
      %p222 = scmp.eq.s32.totalorder %s24, 0
      %p223 = por %p221, %p222
      %p224 = scmp.ne.s32.totalorder %s210, %s211
      %p225 = scmp.eq.s32.totalorder %s25, 2
      %p226 = por %p224, %p225
      %p228 = scmp.ne.s32.totalorder %s211, %s227
      %p229 = scmp.eq.s32.totalorder %s25, 0
      %p230 = por %p228, %p229
      %p231 = scmp.le.s32.totalorder 1, %s19
      %p232 = scmp.lt.s32.totalorder %s19, 4
      %p233 = pnand %p231, %p232
      %p234 = pneg %p233
      // Predicated region
      $region9: #{_forward_pregathered.1} parent=5 // pred_check
        _
      $region10: #{_forward_pregathered.1} parent=5 // pred_check_branch
        %236 = sbr.rel (%p233) target = $region12
      $region11: #{_forward_pregathered.1} parent=5 // pred_region
        %s237 = ssub.s32 %s19, 1
        // Predicated region
        $region13: #{_forward_pregathered.1} parent=11 // pred_check
          %p238 = pneg %p92
        $region14: #{_forward_pregathered.1} parent=11 // pred_check_branch
          %240 = sbr.rel (%p238) target = $region16
        $region15: #{_forward_pregathered.1} parent=11 // pred_region
          _
        $region16: #{_forward_pregathered.1} parent=11 // pred_fallthru
          _
        // Predicated region
        $region17: #{_forward_pregathered.1} parent=11 // pred_check
          %p241 = pneg %p113
        $region18: #{_forward_pregathered.1} parent=11 // pred_check_branch
          %243 = sbr.rel (%p241) target = $region20
        $region19: #{_forward_pregathered.1} parent=11 // pred_region
          _
        $region20: #{_forward_pregathered.1} parent=11 // pred_fallthru
          _
        // Predicated region
        $region21: #{_forward_pregathered.1} parent=11 // pred_check
          %p244 = pneg %p134
        $region22: #{_forward_pregathered.1} parent=11 // pred_check_branch
          %246 = sbr.rel (%p244) target = $region24
        $region23: #{_forward_pregathered.1} parent=11 // pred_region
          _
        $region24: #{_forward_pregathered.1} parent=11 // pred_fallthru
          _
        // Predicated region
        $region25: #{_forward_pregathered.1} parent=11 // pred_check
          %p247 = pneg %p155
        $region26: #{_forward_pregathered.1} parent=11 // pred_check_branch
          %249 = sbr.rel (%p247) target = $region28
        $region27: #{_forward_pregathered.1} parent=11 // pred_region
          _
        $region28: #{_forward_pregathered.1} parent=11 // pred_fallthru
          _
        // Predicated region
        $region29: #{_forward_pregathered.1} parent=11 // pred_check
          %p250 = pneg %p176
        $region30: #{_forward_pregathered.1} parent=11 // pred_check_branch
          %252 = sbr.rel (%p250) target = $region32
        $region31: #{_forward_pregathered.1} parent=11 // pred_region
          _
        $region32: #{_forward_pregathered.1} parent=11 // pred_fallthru
          _
        // Predicated region
        $region33: #{_forward_pregathered.1} parent=11 // pred_check
          %p253 = pneg %p197
        $region34: #{_forward_pregathered.1} parent=11 // pred_check_branch
          %255 = sbr.rel (%p253) target = $region36
        $region35: #{_forward_pregathered.1} parent=11 // pred_region
          _
        $region36: #{_forward_pregathered.1} parent=11 // pred_fallthru
          _
      $region12: #{_forward_pregathered.1} parent=5 // pred_fallthru
        _
      %p256 = scmp.lt.s32.totalorder %s19, 3
      // Predicated region
      $region37: #{_forward_pregathered.1} parent=5 // pred_check
        %p257 = pneg %p256
      $region38: #{_forward_pregathered.1} parent=5 // pred_check_branch
        %259 = sbr.rel (%p257) target = $region40
      $region39: #{_forward_pregathered.1} parent=5 // pred_region
        // Predicated region
        $region41: #{_forward_pregathered.1} parent=39 // pred_check
          %p260 = pneg %p39
        $region42: #{_forward_pregathered.1} parent=39 // pred_check_branch
          %262 = sbr.rel (%p260) target = $region44
        $region43: #{_forward_pregathered.1} parent=39 // pred_region
          %s263 = smul.u32 128, %s19
          %p264 = scmp.lt.s32.totalorder %s263, 383
          %s265 = scalar_select %p264, %s263, 383
          %s266 = smul.addr %s265, 4
          %s267 = scalar_lea.vmem %s0, %s266
          %s268 = smul.u32 128, %s19
        $region44: #{_forward_pregathered.1} parent=39 // pred_fallthru
          _
        // Predicated region
        $region45: #{_forward_pregathered.1} parent=39 // pred_check
          %p269 = pneg %p65
        $region46: #{_forward_pregathered.1} parent=39 // pred_check_branch
          %271 = sbr.rel (%p269) target = $region48
        $region47: #{_forward_pregathered.1} parent=39 // pred_region
          %s272 = smul.u32 128, %s19
          %p273 = scmp.lt.s32.totalorder %s272, 383
          %s274 = scalar_select %p273, %s272, 383
          %s275 = smul.addr %s274, 4
          %s276 = scalar_lea.vmem %s1, %s275
          %s277 = smul.u32 128, %s19
        $region48: #{_forward_pregathered.1} parent=39 // pred_fallthru
          _
      $region40: #{_forward_pregathered.1} parent=5 // pred_fallthru
        _
      %p278 = scmp.le.s32.totalorder 1, %s19
      %p279 = scmp.lt.s32.totalorder %s19, 4
      %p280 = pnand %p278, %p279
      %p281 = pneg %p280
      // Predicated region
      $region49: #{_forward_pregathered.1} parent=5 // pred_check
        _
      $region50: #{_forward_pregathered.1} parent=5 // pred_check_branch
        %283 = sbr.rel (%p280) target = $region52
      $region51: #{_forward_pregathered.1} parent=5 // pred_region
        %s284 = ssub.s32 %s19, 1
        %s285 = smul.u32 128, %s24
        %p286 = scmp.lt.s32.totalorder %s285, 383
        %s287 = scalar_select %p286, %s285, 383
        %s288 = smul.addr %s287, 4
        %s289 = scalar_lea.vmem %s0, %s288
        %p290 = pneg %p45
        %p291 = pneg %p42
        %s292 = smul.u32 128, %s24
        %p293 = scmp.lt.s32.totalorder %s292, 383
        %s294 = scalar_select %p293, %s292, 383
        %s295 = smul.addr %s294, 4
        %s296 = scalar_lea.vmem %s1, %s295
        %p297 = pneg %p71
        %p298 = pneg %p68
        %p299 = pneg %p92
        %p300 = pneg %p89
        %p301 = pneg %p113
        %p302 = pneg %p110
        %p303 = pneg %p134
        %p304 = pneg %p131
        %p305 = pneg %p155
        %p306 = pneg %p152
        %p307 = pneg %p176
        %p308 = pneg %p173
        %p309 = pneg %p197
        %p310 = pneg %p194
        %p311 = pneg %p223
        %p312 = pneg %p220
        %s313 = sand.u32 %s210, 1
        %s314 = scalar_lea.sflag [#allocation4], %s313
        %s315 = sand.u32 %s210, 1
        %s316 = smul.addr %s315, 8
        %s317 = scalar_lea.vmem [#allocation3], %s316
        %s318 = smul.u32 128, %s24
        %p319 = scmp.lt.s32.totalorder %s318, 383
        %s320 = scalar_select %p319, %s318, 383
        %s321 = smul.addr %s320, 4
        %s322 = scalar_lea.vmem %s0, %s321
        %s323 = smul.u32 128, %s24
        %s324 = smul.u32 128, %s24
        %p325 = scmp.lt.s32.totalorder %s324, 383
        %s326 = scalar_select %p325, %s324, 383
        %s327 = smul.addr %s326, 4
        %s328 = scalar_lea.vmem %s1, %s327
        %s329 = smul.u32 128, %s24
        %v331 = vld [vmem:[%s322] sm:$0xf]
        %v332 = vld [vmem:[%s322 + $0x4] sm:$0xf]
        %v333 = vld [vmem:[%s322 + $0x8] sm:$0xf]
        %v334 = vld [vmem:[%s322 + $0xc] sm:$0xf]
        %v335 = vld [vmem:[%s322 + $0x10] sm:$0xf]
        %v336 = vld [vmem:[%s322 + $0x14] sm:$0xf]
        %v337 = vld [vmem:[%s322 + $0x18] sm:$0xf]
        %v338 = vld [vmem:[%s322 + $0x1c] sm:$0xf]
        %v339 = vld [vmem:[%s322 + $0x20] sm:$0xf]
        %v340 = vld [vmem:[%s322 + $0x24] sm:$0xf]
        %v341 = vld [vmem:[%s322 + $0x28] sm:$0xf]
        %v342 = vld [vmem:[%s322 + $0x2c] sm:$0xf]
        %v343 = vld [vmem:[%s322 + $0x30] sm:$0xf]
        %v344 = vld [vmem:[%s322 + $0x34] sm:$0xf]
        %v345 = vld [vmem:[%s322 + $0x38] sm:$0xf]
        %v346 = vld [vmem:[%s322 + $0x3c] sm:$0xf]
        %v347 = vld [vmem:[%s322 + $0x40] sm:$0xf]
        %v348 = vld [vmem:[%s322 + $0x44] sm:$0xf]
        %v349 = vld [vmem:[%s322 + $0x48] sm:$0xf]
        %v350 = vld [vmem:[%s322 + $0x4c] sm:$0xf]
        %v351 = vld [vmem:[%s322 + $0x50] sm:$0xf]
        %v352 = vld [vmem:[%s322 + $0x54] sm:$0xf]
        %v353 = vld [vmem:[%s322 + $0x58] sm:$0xf]
        %v354 = vld [vmem:[%s322 + $0x5c] sm:$0xf]
        %v355 = vld [vmem:[%s322 + $0x60] sm:$0xf]
        %v356 = vld [vmem:[%s322 + $0x64] sm:$0xf]
        %v357 = vld [vmem:[%s322 + $0x68] sm:$0xf]
        %v358 = vld [vmem:[%s322 + $0x6c] sm:$0xf]
        %v359 = vld [vmem:[%s322 + $0x70] sm:$0xf]
        %v360 = vld [vmem:[%s322 + $0x74] sm:$0xf]
        %v361 = vld [vmem:[%s322 + $0x78] sm:$0xf]
        %v362 = vld [vmem:[%s322 + $0x7c] sm:$0xf]
        %v363 = vld [vmem:[%s322 + $0x80] sm:$0xf]
        %v364 = vld [vmem:[%s322 + $0x84] sm:$0xf]
        %v365 = vld [vmem:[%s322 + $0x88] sm:$0xf]
        %v366 = vld [vmem:[%s322 + $0x8c] sm:$0xf]
        %v367 = vld [vmem:[%s322 + $0x90] sm:$0xf]
        %v368 = vld [vmem:[%s322 + $0x94] sm:$0xf]
        %v369 = vld [vmem:[%s322 + $0x98] sm:$0xf]
        %v370 = vld [vmem:[%s322 + $0x9c] sm:$0xf]
        %v371 = vld [vmem:[%s322 + $0xa0] sm:$0xf]
        %v372 = vld [vmem:[%s322 + $0xa4] sm:$0xf]
        %v373 = vld [vmem:[%s322 + $0xa8] sm:$0xf]
        %v374 = vld [vmem:[%s322 + $0xac] sm:$0xf]
        %v375 = vld [vmem:[%s322 + $0xb0] sm:$0xf]
        %v376 = vld [vmem:[%s322 + $0xb4] sm:$0xf]
        %v377 = vld [vmem:[%s322 + $0xb8] sm:$0xf]
        %v378 = vld [vmem:[%s322 + $0xbc] sm:$0xf]
        %v379 = vld [vmem:[%s322 + $0xc0] sm:$0xf]
        %v380 = vld [vmem:[%s322 + $0xc4] sm:$0xf]
        %v381 = vld [vmem:[%s322 + $0xc8] sm:$0xf]
        %v382 = vld [vmem:[%s322 + $0xcc] sm:$0xf]
        %v383 = vld [vmem:[%s322 + $0xd0] sm:$0xf]
        %v384 = vld [vmem:[%s322 + $0xd4] sm:$0xf]
        %v385 = vld [vmem:[%s322 + $0xd8] sm:$0xf]
        %v386 = vld [vmem:[%s322 + $0xdc] sm:$0xf]
        %v387 = vld [vmem:[%s322 + $0xe0] sm:$0xf]
        %v388 = vld [vmem:[%s322 + $0xe4] sm:$0xf]
        %v389 = vld [vmem:[%s322 + $0xe8] sm:$0xf]
        %v390 = vld [vmem:[%s322 + $0xec] sm:$0xf]
        %v391 = vld [vmem:[%s322 + $0xf0] sm:$0xf]
        %v392 = vld [vmem:[%s322 + $0xf4] sm:$0xf]
        %v393 = vld [vmem:[%s322 + $0xf8] sm:$0xf]
        %v394 = vld [vmem:[%s322 + $0xfc] sm:$0xf]
        %v395 = vld [vmem:[%s322 + $0x100] sm:$0xf]
        %v396 = vld [vmem:[%s322 + $0x104] sm:$0xf]
        %v397 = vld [vmem:[%s322 + $0x108] sm:$0xf]
        %v398 = vld [vmem:[%s322 + $0x10c] sm:$0xf]
        %v399 = vld [vmem:[%s322 + $0x110] sm:$0xf]
        %v400 = vld [vmem:[%s322 + $0x114] sm:$0xf]
        %v401 = vld [vmem:[%s322 + $0x118] sm:$0xf]
        %v402 = vld [vmem:[%s322 + $0x11c] sm:$0xf]
        %v403 = vld [vmem:[%s322 + $0x120] sm:$0xf]
        %v404 = vld [vmem:[%s322 + $0x124] sm:$0xf]
        %v405 = vld [vmem:[%s322 + $0x128] sm:$0xf]
        %v406 = vld [vmem:[%s322 + $0x12c] sm:$0xf]
        %v407 = vld [vmem:[%s322 + $0x130] sm:$0xf]
        %v408 = vld [vmem:[%s322 + $0x134] sm:$0xf]
        %v409 = vld [vmem:[%s322 + $0x138] sm:$0xf]
        %v410 = vld [vmem:[%s322 + $0x13c] sm:$0xf]
        %v411 = vld [vmem:[%s322 + $0x140] sm:$0xf]
        %v412 = vld [vmem:[%s322 + $0x144] sm:$0xf]
        %v413 = vld [vmem:[%s322 + $0x148] sm:$0xf]
        %v414 = vld [vmem:[%s322 + $0x14c] sm:$0xf]
        %v415 = vld [vmem:[%s322 + $0x150] sm:$0xf]
        %v416 = vld [vmem:[%s322 + $0x154] sm:$0xf]
        %v417 = vld [vmem:[%s322 + $0x158] sm:$0xf]
        %v418 = vld [vmem:[%s322 + $0x15c] sm:$0xf]
        %v419 = vld [vmem:[%s322 + $0x160] sm:$0xf]
        %v420 = vld [vmem:[%s322 + $0x164] sm:$0xf]
        %v421 = vld [vmem:[%s322 + $0x168] sm:$0xf]
        %v422 = vld [vmem:[%s322 + $0x16c] sm:$0xf]
        %v423 = vld [vmem:[%s322 + $0x170] sm:$0xf]
        %v424 = vld [vmem:[%s322 + $0x174] sm:$0xf]
        %v425 = vld [vmem:[%s322 + $0x178] sm:$0xf]
        %v426 = vld [vmem:[%s322 + $0x17c] sm:$0xf]
        %v427 = vld [vmem:[%s322 + $0x180] sm:$0xf]
        %v428 = vld [vmem:[%s322 + $0x184] sm:$0xf]
        %v429 = vld [vmem:[%s322 + $0x188] sm:$0xf]
        %v430 = vld [vmem:[%s322 + $0x18c] sm:$0xf]
        %v431 = vld [vmem:[%s322 + $0x190] sm:$0xf]
        %v432 = vld [vmem:[%s322 + $0x194] sm:$0xf]
        %v433 = vld [vmem:[%s322 + $0x198] sm:$0xf]
        %v434 = vld [vmem:[%s322 + $0x19c] sm:$0xf]
        %v435 = vld [vmem:[%s322 + $0x1a0] sm:$0xf]
        %v436 = vld [vmem:[%s322 + $0x1a4] sm:$0xf]
        %v437 = vld [vmem:[%s322 + $0x1a8] sm:$0xf]
        %v438 = vld [vmem:[%s322 + $0x1ac] sm:$0xf]
        %v439 = vld [vmem:[%s322 + $0x1b0] sm:$0xf]
        %v440 = vld [vmem:[%s322 + $0x1b4] sm:$0xf]
        %v441 = vld [vmem:[%s322 + $0x1b8] sm:$0xf]
        %v442 = vld [vmem:[%s322 + $0x1bc] sm:$0xf]
        %v443 = vld [vmem:[%s322 + $0x1c0] sm:$0xf]
        %v444 = vld [vmem:[%s322 + $0x1c4] sm:$0xf]
        %v445 = vld [vmem:[%s322 + $0x1c8] sm:$0xf]
        %v446 = vld [vmem:[%s322 + $0x1cc] sm:$0xf]
        %v447 = vld [vmem:[%s322 + $0x1d0] sm:$0xf]
        %v448 = vld [vmem:[%s322 + $0x1d4] sm:$0xf]
        %v449 = vld [vmem:[%s322 + $0x1d8] sm:$0xf]
        %v450 = vld [vmem:[%s322 + $0x1dc] sm:$0xf]
        %v451 = vld [vmem:[%s322 + $0x1e0] sm:$0xf]
        %v452 = vld [vmem:[%s322 + $0x1e4] sm:$0xf]
        %v453 = vld [vmem:[%s322 + $0x1e8] sm:$0xf]
        %v454 = vld [vmem:[%s322 + $0x1ec] sm:$0xf]
        %v455 = vld [vmem:[%s322 + $0x1f0] sm:$0xf]
        %v456 = vld [vmem:[%s322 + $0x1f4] sm:$0xf]
        %v457 = vld [vmem:[%s322 + $0x1f8] sm:$0xf]
        %v458 = vld [vmem:[%s322 + $0x1fc] sm:$0xf]
        %v459 = vld [vmem:[%s328] sm:$0xf]
        %v460 = vld [vmem:[%s328 + $0x4] sm:$0xf]
        %v461 = vld [vmem:[%s328 + $0x8] sm:$0xf]
        %v462 = vld [vmem:[%s328 + $0xc] sm:$0xf]
        %v463 = vld [vmem:[%s328 + $0x10] sm:$0xf]
        %v464 = vld [vmem:[%s328 + $0x14] sm:$0xf]
        %v465 = vld [vmem:[%s328 + $0x18] sm:$0xf]
        %v466 = vld [vmem:[%s328 + $0x1c] sm:$0xf]
        %v467 = vld [vmem:[%s328 + $0x20] sm:$0xf]
        %v468 = vld [vmem:[%s328 + $0x24] sm:$0xf]
        %v469 = vld [vmem:[%s328 + $0x28] sm:$0xf]
        %v470 = vld [vmem:[%s328 + $0x2c] sm:$0xf]
        %v471 = vld [vmem:[%s328 + $0x30] sm:$0xf]
        %v472 = vld [vmem:[%s328 + $0x34] sm:$0xf]
        %v473 = vld [vmem:[%s328 + $0x38] sm:$0xf]
        %v474 = vld [vmem:[%s328 + $0x3c] sm:$0xf]
        %v475 = vld [vmem:[%s328 + $0x40] sm:$0xf]
        %v476 = vld [vmem:[%s328 + $0x44] sm:$0xf]
        %v477 = vld [vmem:[%s328 + $0x48] sm:$0xf]
        %v478 = vld [vmem:[%s328 + $0x4c] sm:$0xf]
        %v479 = vld [vmem:[%s328 + $0x50] sm:$0xf]
        %v480 = vld [vmem:[%s328 + $0x54] sm:$0xf]
        %v481 = vld [vmem:[%s328 + $0x58] sm:$0xf]
        %v482 = vld [vmem:[%s328 + $0x5c] sm:$0xf]
        %v483 = vld [vmem:[%s328 + $0x60] sm:$0xf]
        %v484 = vld [vmem:[%s328 + $0x64] sm:$0xf]
        %v485 = vld [vmem:[%s328 + $0x68] sm:$0xf]
        %v486 = vld [vmem:[%s328 + $0x6c] sm:$0xf]
        %v487 = vld [vmem:[%s328 + $0x70] sm:$0xf]
        %v488 = vld [vmem:[%s328 + $0x74] sm:$0xf]
        %v489 = vld [vmem:[%s328 + $0x78] sm:$0xf]
        %v490 = vld [vmem:[%s328 + $0x7c] sm:$0xf]
        %v491 = vld [vmem:[%s328 + $0x80] sm:$0xf]
        %v492 = vld [vmem:[%s328 + $0x84] sm:$0xf]
        %v493 = vld [vmem:[%s328 + $0x88] sm:$0xf]
        %v494 = vld [vmem:[%s328 + $0x8c] sm:$0xf]
        %v495 = vld [vmem:[%s328 + $0x90] sm:$0xf]
        %v496 = vld [vmem:[%s328 + $0x94] sm:$0xf]
        %v497 = vld [vmem:[%s328 + $0x98] sm:$0xf]
        %v498 = vld [vmem:[%s328 + $0x9c] sm:$0xf]
        %v499 = vld [vmem:[%s328 + $0xa0] sm:$0xf]
        %v500 = vld [vmem:[%s328 + $0xa4] sm:$0xf]
        %v501 = vld [vmem:[%s328 + $0xa8] sm:$0xf]
        %v502 = vld [vmem:[%s328 + $0xac] sm:$0xf]
        %v503 = vld [vmem:[%s328 + $0xb0] sm:$0xf]
        %v504 = vld [vmem:[%s328 + $0xb4] sm:$0xf]
        %v505 = vld [vmem:[%s328 + $0xb8] sm:$0xf]
        %v506 = vld [vmem:[%s328 + $0xbc] sm:$0xf]
        %v507 = vld [vmem:[%s328 + $0xc0] sm:$0xf]
        %v508 = vld [vmem:[%s328 + $0xc4] sm:$0xf]
        %v509 = vld [vmem:[%s328 + $0xc8] sm:$0xf]
        %v510 = vld [vmem:[%s328 + $0xcc] sm:$0xf]
        %v511 = vld [vmem:[%s328 + $0xd0] sm:$0xf]
        %v512 = vld [vmem:[%s328 + $0xd4] sm:$0xf]
        %v513 = vld [vmem:[%s328 + $0xd8] sm:$0xf]
        %v514 = vld [vmem:[%s328 + $0xdc] sm:$0xf]
        %v515 = vld [vmem:[%s328 + $0xe0] sm:$0xf]
        %v516 = vld [vmem:[%s328 + $0xe4] sm:$0xf]
        %v517 = vld [vmem:[%s328 + $0xe8] sm:$0xf]
        %v518 = vld [vmem:[%s328 + $0xec] sm:$0xf]
        %v519 = vld [vmem:[%s328 + $0xf0] sm:$0xf]
        %v520 = vld [vmem:[%s328 + $0xf4] sm:$0xf]
        %v521 = vld [vmem:[%s328 + $0xf8] sm:$0xf]
        %v522 = vld [vmem:[%s328 + $0xfc] sm:$0xf]
        %v523 = vld [vmem:[%s328 + $0x100] sm:$0xf]
        %v524 = vld [vmem:[%s328 + $0x104] sm:$0xf]
        %v525 = vld [vmem:[%s328 + $0x108] sm:$0xf]
        %v526 = vld [vmem:[%s328 + $0x10c] sm:$0xf]
        %v527 = vld [vmem:[%s328 + $0x110] sm:$0xf]
        %v528 = vld [vmem:[%s328 + $0x114] sm:$0xf]
        %v529 = vld [vmem:[%s328 + $0x118] sm:$0xf]
        %v530 = vld [vmem:[%s328 + $0x11c] sm:$0xf]
        %v531 = vld [vmem:[%s328 + $0x120] sm:$0xf]
        %v532 = vld [vmem:[%s328 + $0x124] sm:$0xf]
        %v533 = vld [vmem:[%s328 + $0x128] sm:$0xf]
        %v534 = vld [vmem:[%s328 + $0x12c] sm:$0xf]
        %v535 = vld [vmem:[%s328 + $0x130] sm:$0xf]
        %v536 = vld [vmem:[%s328 + $0x134] sm:$0xf]
        %v537 = vld [vmem:[%s328 + $0x138] sm:$0xf]
        %v538 = vld [vmem:[%s328 + $0x13c] sm:$0xf]
        %v539 = vld [vmem:[%s328 + $0x140] sm:$0xf]
        %v540 = vld [vmem:[%s328 + $0x144] sm:$0xf]
        %v541 = vld [vmem:[%s328 + $0x148] sm:$0xf]
        %v542 = vld [vmem:[%s328 + $0x14c] sm:$0xf]
        %v543 = vld [vmem:[%s328 + $0x150] sm:$0xf]
        %v544 = vld [vmem:[%s328 + $0x154] sm:$0xf]
        %v545 = vld [vmem:[%s328 + $0x158] sm:$0xf]
        %v546 = vld [vmem:[%s328 + $0x15c] sm:$0xf]
        %v547 = vld [vmem:[%s328 + $0x160] sm:$0xf]
        %v548 = vld [vmem:[%s328 + $0x164] sm:$0xf]
        %v549 = vld [vmem:[%s328 + $0x168] sm:$0xf]
        %v550 = vld [vmem:[%s328 + $0x16c] sm:$0xf]
        %v551 = vld [vmem:[%s328 + $0x170] sm:$0xf]
        %v552 = vld [vmem:[%s328 + $0x174] sm:$0xf]
        %v553 = vld [vmem:[%s328 + $0x178] sm:$0xf]
        %v554 = vld [vmem:[%s328 + $0x17c] sm:$0xf]
        %v555 = vld [vmem:[%s328 + $0x180] sm:$0xf]
        %v556 = vld [vmem:[%s328 + $0x184] sm:$0xf]
        %v557 = vld [vmem:[%s328 + $0x188] sm:$0xf]
        %v558 = vld [vmem:[%s328 + $0x18c] sm:$0xf]
        %v559 = vld [vmem:[%s328 + $0x190] sm:$0xf]
        %v560 = vld [vmem:[%s328 + $0x194] sm:$0xf]
        %v561 = vld [vmem:[%s328 + $0x198] sm:$0xf]
        %v562 = vld [vmem:[%s328 + $0x19c] sm:$0xf]
        %v563 = vld [vmem:[%s328 + $0x1a0] sm:$0xf]
        %v564 = vld [vmem:[%s328 + $0x1a4] sm:$0xf]
        %v565 = vld [vmem:[%s328 + $0x1a8] sm:$0xf]
        %v566 = vld [vmem:[%s328 + $0x1ac] sm:$0xf]
        %v567 = vld [vmem:[%s328 + $0x1b0] sm:$0xf]
        %v568 = vld [vmem:[%s328 + $0x1b4] sm:$0xf]
        %v569 = vld [vmem:[%s328 + $0x1b8] sm:$0xf]
        %v570 = vld [vmem:[%s328 + $0x1bc] sm:$0xf]
        %v571 = vld [vmem:[%s328 + $0x1c0] sm:$0xf]
        %v572 = vld [vmem:[%s328 + $0x1c4] sm:$0xf]
        %v573 = vld [vmem:[%s328 + $0x1c8] sm:$0xf]
        %v574 = vld [vmem:[%s328 + $0x1cc] sm:$0xf]
        %v575 = vld [vmem:[%s328 + $0x1d0] sm:$0xf]
        %v576 = vld [vmem:[%s328 + $0x1d4] sm:$0xf]
        %v577 = vld [vmem:[%s328 + $0x1d8] sm:$0xf]
        %v578 = vld [vmem:[%s328 + $0x1dc] sm:$0xf]
        %v579 = vld [vmem:[%s328 + $0x1e0] sm:$0xf]
        %v580 = vld [vmem:[%s328 + $0x1e4] sm:$0xf]
        %v581 = vld [vmem:[%s328 + $0x1e8] sm:$0xf]
        %v582 = vld [vmem:[%s328 + $0x1ec] sm:$0xf]
        %v583 = vld [vmem:[%s328 + $0x1f0] sm:$0xf]
        %v584 = vld [vmem:[%s328 + $0x1f4] sm:$0xf]
        %v585 = vld [vmem:[%s328 + $0x1f8] sm:$0xf]
        %v586 = vld [vmem:[%s328 + $0x1fc] sm:$0xf]
        %v587 = vmul.bf16 %v331, %v459
        %v588 = vmul.bf16 %v332, %v460
        %v589 = vmul.bf16 %v333, %v461
        %v590 = vmul.bf16 %v334, %v462
        %v591 = vmul.bf16 %v335, %v463
        %v592 = vmul.bf16 %v336, %v464
        %v593 = vmul.bf16 %v337, %v465
        %v594 = vmul.bf16 %v338, %v466
        %v595 = vmul.bf16 %v339, %v467
        %v596 = vmul.bf16 %v340, %v468
        %v597 = vmul.bf16 %v341, %v469
        %v598 = vmul.bf16 %v342, %v470
        %v599 = vmul.bf16 %v343, %v471
        %v600 = vmul.bf16 %v344, %v472
        %v601 = vmul.bf16 %v345, %v473
        %v602 = vmul.bf16 %v346, %v474
        %v603 = vmul.bf16 %v347, %v475
        %v604 = vmul.bf16 %v348, %v476
        %v605 = vmul.bf16 %v349, %v477
        %v606 = vmul.bf16 %v350, %v478
        %v607 = vmul.bf16 %v351, %v479
        %v608 = vmul.bf16 %v352, %v480
        %v609 = vmul.bf16 %v353, %v481
        %v610 = vmul.bf16 %v354, %v482
        %v611 = vmul.bf16 %v355, %v483
        %v612 = vmul.bf16 %v356, %v484
        %v613 = vmul.bf16 %v357, %v485
        %v614 = vmul.bf16 %v358, %v486
        %v615 = vmul.bf16 %v359, %v487
        %v616 = vmul.bf16 %v360, %v488
        %v617 = vmul.bf16 %v361, %v489
        %v618 = vmul.bf16 %v362, %v490
        %v619 = vmul.bf16 %v363, %v491
        %v620 = vmul.bf16 %v364, %v492
        %v621 = vmul.bf16 %v365, %v493
        %v622 = vmul.bf16 %v366, %v494
        %v623 = vmul.bf16 %v367, %v495
        %v624 = vmul.bf16 %v368, %v496
        %v625 = vmul.bf16 %v369, %v497
        %v626 = vmul.bf16 %v370, %v498
        %v627 = vmul.bf16 %v371, %v499
        %v628 = vmul.bf16 %v372, %v500
        %v629 = vmul.bf16 %v373, %v501
        %v630 = vmul.bf16 %v374, %v502
        %v631 = vmul.bf16 %v375, %v503
        %v632 = vmul.bf16 %v376, %v504
        %v633 = vmul.bf16 %v377, %v505
        %v634 = vmul.bf16 %v378, %v506
        %v635 = vmul.bf16 %v379, %v507
        %v636 = vmul.bf16 %v380, %v508
        %v637 = vmul.bf16 %v381, %v509
        %v638 = vmul.bf16 %v382, %v510
        %v639 = vmul.bf16 %v383, %v511
        %v640 = vmul.bf16 %v384, %v512
        %v641 = vmul.bf16 %v385, %v513
        %v642 = vmul.bf16 %v386, %v514
        %v643 = vmul.bf16 %v387, %v515
        %v644 = vmul.bf16 %v388, %v516
        %v645 = vmul.bf16 %v389, %v517
        %v646 = vmul.bf16 %v390, %v518
        %v647 = vmul.bf16 %v391, %v519
        %v648 = vmul.bf16 %v392, %v520
        %v649 = vmul.bf16 %v393, %v521
        %v650 = vmul.bf16 %v394, %v522
        %v651 = vmul.bf16 %v395, %v523
        %v652 = vmul.bf16 %v396, %v524
        %v653 = vmul.bf16 %v397, %v525
        %v654 = vmul.bf16 %v398, %v526
        %v655 = vmul.bf16 %v399, %v527
        %v656 = vmul.bf16 %v400, %v528
        %v657 = vmul.bf16 %v401, %v529
        %v658 = vmul.bf16 %v402, %v530
        %v659 = vmul.bf16 %v403, %v531
        %v660 = vmul.bf16 %v404, %v532
        %v661 = vmul.bf16 %v405, %v533
        %v662 = vmul.bf16 %v406, %v534
        %v663 = vmul.bf16 %v407, %v535
        %v664 = vmul.bf16 %v408, %v536
        %v665 = vmul.bf16 %v409, %v537
        %v666 = vmul.bf16 %v410, %v538
        %v667 = vmul.bf16 %v411, %v539
        %v668 = vmul.bf16 %v412, %v540
        %v669 = vmul.bf16 %v413, %v541
        %v670 = vmul.bf16 %v414, %v542
        %v671 = vmul.bf16 %v415, %v543
        %v672 = vmul.bf16 %v416, %v544
        %v673 = vmul.bf16 %v417, %v545
        %v674 = vmul.bf16 %v418, %v546
        %v675 = vmul.bf16 %v419, %v547
        %v676 = vmul.bf16 %v420, %v548
        %v677 = vmul.bf16 %v421, %v549
        %v678 = vmul.bf16 %v422, %v550
        %v679 = vmul.bf16 %v423, %v551
        %v680 = vmul.bf16 %v424, %v552
        %v681 = vmul.bf16 %v425, %v553
        %v682 = vmul.bf16 %v426, %v554
        %v683 = vmul.bf16 %v427, %v555
        %v684 = vmul.bf16 %v428, %v556
        %v685 = vmul.bf16 %v429, %v557
        %v686 = vmul.bf16 %v430, %v558
        %v687 = vmul.bf16 %v431, %v559
        %v688 = vmul.bf16 %v432, %v560
        %v689 = vmul.bf16 %v433, %v561
        %v690 = vmul.bf16 %v434, %v562
        %v691 = vmul.bf16 %v435, %v563
        %v692 = vmul.bf16 %v436, %v564
        %v693 = vmul.bf16 %v437, %v565
        %v694 = vmul.bf16 %v438, %v566
        %v695 = vmul.bf16 %v439, %v567
        %v696 = vmul.bf16 %v440, %v568
        %v697 = vmul.bf16 %v441, %v569
        %v698 = vmul.bf16 %v442, %v570
        %v699 = vmul.bf16 %v443, %v571
        %v700 = vmul.bf16 %v444, %v572
        %v701 = vmul.bf16 %v445, %v573
        %v702 = vmul.bf16 %v446, %v574
        %v703 = vmul.bf16 %v447, %v575
        %v704 = vmul.bf16 %v448, %v576
        %v705 = vmul.bf16 %v449, %v577
        %v706 = vmul.bf16 %v450, %v578
        %v707 = vmul.bf16 %v451, %v579
        %v708 = vmul.bf16 %v452, %v580
        %v709 = vmul.bf16 %v453, %v581
        %v710 = vmul.bf16 %v454, %v582
        %v711 = vmul.bf16 %v455, %v583
        %v712 = vmul.bf16 %v456, %v584
        %v713 = vmul.bf16 %v457, %v585
        %v714 = vmul.bf16 %v458, %v586
        %v715 = vld [vmem:[%s2] sm:$0xff]
        %v716 = vld [vmem:[%s2 + $0x8] sm:$0xff]
        %v717 = vld [vmem:[%s2 + $0x10] sm:$0xff]
        %v718 = vld [vmem:[%s2 + $0x18] sm:$0xff]
        %v719 = vld [vmem:[%s2 + $0x20] sm:$0xff]
        %v720 = vld [vmem:[%s2 + $0x28] sm:$0xff]
        %v721 = vld [vmem:[%s2 + $0x30] sm:$0xff]
        %v722 = vld [vmem:[%s2 + $0x38] sm:$0xff]
        %v723 = vld [vmem:[%s2 + $0x40] sm:$0xff]
        %v724 = vld [vmem:[%s2 + $0x48] sm:$0xff]
        %v725 = vld [vmem:[%s2 + $0x50] sm:$0xff]
        %v726 = vld [vmem:[%s2 + $0x58] sm:$0xff]
        %v727 = vld [vmem:[%s2 + $0x60] sm:$0xff]
        %v728 = vld [vmem:[%s2 + $0x68] sm:$0xff]
        %v729 = vld [vmem:[%s2 + $0x70] sm:$0xff]
        %v730 = vld [vmem:[%s2 + $0x78] sm:$0xff]
        %v731 = vld [vmem:[%s3] sm:$0x1]
        %v733 = vlaneseq
        %v734 = vshrl.u32 %v733, 7
        %v735 = vsub.s32 0, %v734
        %v736 = vrot.slane %v731, %v735
        %v866 = vunpack.c.l.b16 %v587
        %v867 = vunpack.c.l.b16 %v588
        %v868 = vunpack.c.l.b16 %v589
        %v869 = vunpack.c.l.b16 %v590
        %v870 = vunpack.c.l.b16 %v591
        %v871 = vunpack.c.l.b16 %v592
        %v872 = vunpack.c.l.b16 %v593
        %v873 = vunpack.c.l.b16 %v594
        %v874 = vunpack.c.l.b16 %v595
        %v875 = vunpack.c.l.b16 %v596
        %v876 = vunpack.c.l.b16 %v597
        %v877 = vunpack.c.l.b16 %v598
        %v878 = vunpack.c.l.b16 %v599
        %v879 = vunpack.c.l.b16 %v600
        %v880 = vunpack.c.l.b16 %v601
        %v881 = vunpack.c.l.b16 %v602
        %v882 = vunpack.c.l.b16 %v603
        %v883 = vunpack.c.l.b16 %v604
        %v884 = vunpack.c.l.b16 %v605
        %v885 = vunpack.c.l.b16 %v606
        %v886 = vunpack.c.l.b16 %v607
        %v887 = vunpack.c.l.b16 %v608
        %v888 = vunpack.c.l.b16 %v609
        %v889 = vunpack.c.l.b16 %v610
        %v890 = vunpack.c.l.b16 %v611
        %v891 = vunpack.c.l.b16 %v612
        %v892 = vunpack.c.l.b16 %v613
        %v893 = vunpack.c.l.b16 %v614
        %v894 = vunpack.c.l.b16 %v615
        %v895 = vunpack.c.l.b16 %v616
        %v896 = vunpack.c.l.b16 %v617
        %v897 = vunpack.c.l.b16 %v618
        %v898 = vunpack.c.l.b16 %v619
        %v899 = vunpack.c.l.b16 %v620
        %v900 = vunpack.c.l.b16 %v621
        %v901 = vunpack.c.l.b16 %v622
        %v902 = vunpack.c.l.b16 %v623
        %v903 = vunpack.c.l.b16 %v624
        %v904 = vunpack.c.l.b16 %v625
        %v905 = vunpack.c.l.b16 %v626
        %v906 = vunpack.c.l.b16 %v627
        %v907 = vunpack.c.l.b16 %v628
        %v908 = vunpack.c.l.b16 %v629
        %v909 = vunpack.c.l.b16 %v630
        %v910 = vunpack.c.l.b16 %v631
        %v911 = vunpack.c.l.b16 %v632
        %v912 = vunpack.c.l.b16 %v633
        %v913 = vunpack.c.l.b16 %v634
        %v914 = vunpack.c.l.b16 %v635
        %v915 = vunpack.c.l.b16 %v636
        %v916 = vunpack.c.l.b16 %v637
        %v917 = vunpack.c.l.b16 %v638
        %v918 = vunpack.c.l.b16 %v639
        %v919 = vunpack.c.l.b16 %v640
        %v920 = vunpack.c.l.b16 %v641
        %v921 = vunpack.c.l.b16 %v642
        %v922 = vunpack.c.l.b16 %v643
        %v923 = vunpack.c.l.b16 %v644
        %v924 = vunpack.c.l.b16 %v645
        %v925 = vunpack.c.l.b16 %v646
        %v926 = vunpack.c.l.b16 %v647
        %v927 = vunpack.c.l.b16 %v648
        %v928 = vunpack.c.l.b16 %v649
        %v929 = vunpack.c.l.b16 %v650
        %v930 = vunpack.c.l.b16 %v651
        %v931 = vunpack.c.l.b16 %v652
        %v932 = vunpack.c.l.b16 %v653
        %v933 = vunpack.c.l.b16 %v654
        %v934 = vunpack.c.l.b16 %v655
        %v935 = vunpack.c.l.b16 %v656
        %v936 = vunpack.c.l.b16 %v657
        %v937 = vunpack.c.l.b16 %v658
        %v938 = vunpack.c.l.b16 %v659
        %v939 = vunpack.c.l.b16 %v660
        %v940 = vunpack.c.l.b16 %v661
        %v941 = vunpack.c.l.b16 %v662
        %v942 = vunpack.c.l.b16 %v663
        %v943 = vunpack.c.l.b16 %v664
        %v944 = vunpack.c.l.b16 %v665
        %v945 = vunpack.c.l.b16 %v666
        %v946 = vunpack.c.l.b16 %v667
        %v947 = vunpack.c.l.b16 %v668
        %v948 = vunpack.c.l.b16 %v669
        %v949 = vunpack.c.l.b16 %v670
        %v950 = vunpack.c.l.b16 %v671
        %v951 = vunpack.c.l.b16 %v672
        %v952 = vunpack.c.l.b16 %v673
        %v953 = vunpack.c.l.b16 %v674
        %v954 = vunpack.c.l.b16 %v675
        %v955 = vunpack.c.l.b16 %v676
        %v956 = vunpack.c.l.b16 %v677
        %v957 = vunpack.c.l.b16 %v678
        %v958 = vunpack.c.l.b16 %v679
        %v959 = vunpack.c.l.b16 %v680
        %v960 = vunpack.c.l.b16 %v681
        %v961 = vunpack.c.l.b16 %v682
        %v962 = vunpack.c.l.b16 %v683
        %v963 = vunpack.c.l.b16 %v684
        %v964 = vunpack.c.l.b16 %v685
        %v965 = vunpack.c.l.b16 %v686
        %v966 = vunpack.c.l.b16 %v687
        %v967 = vunpack.c.l.b16 %v688
        %v968 = vunpack.c.l.b16 %v689
        %v969 = vunpack.c.l.b16 %v690
        %v970 = vunpack.c.l.b16 %v691
        %v971 = vunpack.c.l.b16 %v692
        %v972 = vunpack.c.l.b16 %v693
        %v973 = vunpack.c.l.b16 %v694
        %v974 = vunpack.c.l.b16 %v695
        %v975 = vunpack.c.l.b16 %v696
        %v976 = vunpack.c.l.b16 %v697
        %v977 = vunpack.c.l.b16 %v698
        %v978 = vunpack.c.l.b16 %v699
        %v979 = vunpack.c.l.b16 %v700
        %v980 = vunpack.c.l.b16 %v701
        %v981 = vunpack.c.l.b16 %v702
        %v982 = vunpack.c.l.b16 %v703
        %v983 = vunpack.c.l.b16 %v704
        %v984 = vunpack.c.l.b16 %v705
        %v985 = vunpack.c.l.b16 %v706
        %v986 = vunpack.c.l.b16 %v707
        %v987 = vunpack.c.l.b16 %v708
        %v988 = vunpack.c.l.b16 %v709
        %v989 = vunpack.c.l.b16 %v710
        %v990 = vunpack.c.l.b16 %v711
        %v991 = vunpack.c.l.b16 %v712
        %v992 = vunpack.c.l.b16 %v713
        %v993 = vunpack.c.l.b16 %v714
        %v994 = vpack.c.b16 %v867, %v866
        %v995 = vpack.c.b16 %v869, %v868
        %v996 = vpack.c.b16 %v871, %v870
        %v997 = vpack.c.b16 %v873, %v872
        %v998 = vpack.c.b16 %v875, %v874
        %v999 = vpack.c.b16 %v877, %v876
        %v1000 = vpack.c.b16 %v879, %v878
        %v1001 = vpack.c.b16 %v881, %v880
        %v1002 = vpack.c.b16 %v883, %v882
        %v1003 = vpack.c.b16 %v885, %v884
        %v1004 = vpack.c.b16 %v887, %v886
        %v1005 = vpack.c.b16 %v889, %v888
        %v1006 = vpack.c.b16 %v891, %v890
        %v1007 = vpack.c.b16 %v893, %v892
        %v1008 = vpack.c.b16 %v895, %v894
        %v1009 = vpack.c.b16 %v897, %v896
        %v1010 = vpack.c.b16 %v899, %v898
        %v1011 = vpack.c.b16 %v901, %v900
        %v1012 = vpack.c.b16 %v903, %v902
        %v1013 = vpack.c.b16 %v905, %v904
        %v1014 = vpack.c.b16 %v907, %v906
        %v1015 = vpack.c.b16 %v909, %v908
        %v1016 = vpack.c.b16 %v911, %v910
        %v1017 = vpack.c.b16 %v913, %v912
        %v1018 = vpack.c.b16 %v915, %v914
        %v1019 = vpack.c.b16 %v917, %v916
        %v1020 = vpack.c.b16 %v919, %v918
        %v1021 = vpack.c.b16 %v921, %v920
        %v1022 = vpack.c.b16 %v923, %v922
        %v1023 = vpack.c.b16 %v925, %v924
        %v1024 = vpack.c.b16 %v927, %v926
        %v1025 = vpack.c.b16 %v929, %v928
        %v1026 = vpack.c.b16 %v931, %v930
        %v1027 = vpack.c.b16 %v933, %v932
        %v1028 = vpack.c.b16 %v935, %v934
        %v1029 = vpack.c.b16 %v937, %v936
        %v1030 = vpack.c.b16 %v939, %v938
        %v1031 = vpack.c.b16 %v941, %v940
        %v1032 = vpack.c.b16 %v943, %v942
        %v1033 = vpack.c.b16 %v945, %v944
        %v1034 = vpack.c.b16 %v947, %v946
        %v1035 = vpack.c.b16 %v949, %v948
        %v1036 = vpack.c.b16 %v951, %v950
        %v1037 = vpack.c.b16 %v953, %v952
        %v1038 = vpack.c.b16 %v955, %v954
        %v1039 = vpack.c.b16 %v957, %v956
        %v1040 = vpack.c.b16 %v959, %v958
        %v1041 = vpack.c.b16 %v961, %v960
        %v1042 = vpack.c.b16 %v963, %v962
        %v1043 = vpack.c.b16 %v965, %v964
        %v1044 = vpack.c.b16 %v967, %v966
        %v1045 = vpack.c.b16 %v969, %v968
        %v1046 = vpack.c.b16 %v971, %v970
        %v1047 = vpack.c.b16 %v973, %v972
        %v1048 = vpack.c.b16 %v975, %v974
        %v1049 = vpack.c.b16 %v977, %v976
        %v1050 = vpack.c.b16 %v979, %v978
        %v1051 = vpack.c.b16 %v981, %v980
        %v1052 = vpack.c.b16 %v983, %v982
        %v1053 = vpack.c.b16 %v985, %v984
        %v1054 = vpack.c.b16 %v987, %v986
        %v1055 = vpack.c.b16 %v989, %v988
        %v1056 = vpack.c.b16 %v991, %v990
        %v1057 = vpack.c.b16 %v993, %v992
        %1122 = vmatprep.subr.mxu0 0.0
        %1123 = vmatpush1.msra.mxu0 %v715
        %1124 = vmatprep.subr.mxu0 0.0
        %1125 = vmatpush1.msra.mxu0 %v716
        %1126 = vmatprep.subr.mxu0 0.0
        %1127 = vmatpush1.msra.mxu0 %v717
        %1128 = vmatprep.subr.mxu0 0.0
        %1129 = vmatpush1.msra.mxu0 %v718
        %1130 = vmatprep.subr.mxu0 0.0
        %1131 = vmatpush1.msra.mxu0 %v719
        %1132 = vmatprep.subr.mxu0 0.0
        %1133 = vmatpush1.msra.mxu0 %v720
        %1134 = vmatprep.subr.mxu0 0.0
        %1135 = vmatpush1.msra.mxu0 %v721
        %1136 = vmatprep.subr.mxu0 0.0
        %1137 = vmatpush1.msra.mxu0 %v722
        %1138 = vmatprep.subr.mxu0 0.0
        %1139 = vmatpush1.msra.mxu0 %v723
        %1140 = vmatprep.subr.mxu0 0.0
        %1141 = vmatpush1.msra.mxu0 %v724
        %1142 = vmatprep.subr.mxu0 0.0
        %1143 = vmatpush1.msra.mxu0 %v725
        %1144 = vmatprep.subr.mxu0 0.0
        %1145 = vmatpush1.msra.mxu0 %v726
        %1146 = vmatprep.subr.mxu0 0.0
        %1147 = vmatpush1.msra.mxu0 %v727
        %1148 = vmatprep.subr.mxu0 0.0
        %1149 = vmatpush1.msra.mxu0 %v728
        %1150 = vmatprep.subr.mxu0 0.0
        %1151 = vmatpush1.msra.mxu0 %v729
        %1152 = vmatprep.subr.mxu0 0.0
        %1153 = vmatpush1.msra.mxu0 %v730
        %1154 = vmatprep.subr.mxu0 0.0
        %1155 = vmatpush1.msra.mxu0 0.0
        %1156 = vmatprep.subr.mxu0 0.0
        %1157 = vmatpush1.msra.mxu0 0.0
        %1158 = vmatprep.subr.mxu0 0.0
        %1159 = vmatpush1.msra.mxu0 0.0
        %1160 = vmatprep.subr.mxu0 0.0
        %1161 = vmatpush1.msra.mxu0 0.0
        %1162 = vmatprep.subr.mxu0 0.0
        %1163 = vmatpush1.msra.mxu0 0.0
        %1164 = vmatprep.subr.mxu0 0.0
        %1165 = vmatpush1.msra.mxu0 0.0
        %1166 = vmatprep.subr.mxu0 0.0
        %1167 = vmatpush1.msra.mxu0 0.0
        %1168 = vmatprep.subr.mxu0 0.0
        %1169 = vmatpush1.msra.mxu0 0.0
        %1170 = vmatprep.subr.mxu0 0.0
        %1171 = vmatpush1.msra.mxu0 0.0
        %1172 = vmatprep.subr.mxu0 0.0
        %1173 = vmatpush1.msra.mxu0 0.0
        %1174 = vmatprep.subr.mxu0 0.0
        %1175 = vmatpush1.msra.mxu0 0.0
        %1176 = vmatprep.subr.mxu0 0.0
        %1177 = vmatpush1.msra.mxu0 0.0
        %1178 = vmatprep.subr.mxu0 0.0
        %1179 = vmatpush1.msra.mxu0 0.0
        %1180 = vmatprep.subr.mxu0 0.0
        %1181 = vmatpush1.msra.mxu0 0.0
        %1182 = vmatprep.subr.mxu0 0.0
        %1183 = vmatpush1.msra.mxu0 0.0
        %1184 = vmatprep.subr.mxu0 0.0
        %1185 = vmatpush1.msra.mxu0 0.0
        %1186 = vmatprep.mubr.bf16.mxu0 0
        %1187 = vmatmul.mubr.bf16.gmra.mrb[0].mxu0 %v994
        %v1188 = vpop.f32.mrb[0].mxu0
        %v1189 = vadd.f32 %v736, %v1188
        %v1190 = vpop.f32.mrb[0].mxu0
        %v1191 = vpop.f32.mrb[0].mxu0
        %v1192 = vadd.f32 %v736, %v1191
        %v1193 = vpop.f32.mrb[0].mxu0
        %1194 = vmatprep.mubr.bf16.mxu0 0
        %1195 = vmatmul.mubr.bf16.gmra.mrb[0].mxu0 %v995
        %v1196 = vpop.f32.mrb[0].mxu0
        %v1197 = vadd.f32 %v736, %v1196
        %v1198 = vpop.f32.mrb[0].mxu0
        %v1199 = vpop.f32.mrb[0].mxu0
        %v1200 = vadd.f32 %v736, %v1199
        %v1201 = vpop.f32.mrb[0].mxu0
        %1202 = vmatprep.mubr.bf16.mxu0 0
        %1203 = vmatmul.mubr.bf16.gmra.mrb[0].mxu0 %v996
        %v1204 = vpop.f32.mrb[0].mxu0
        %v1205 = vadd.f32 %v736, %v1204
        %v1206 = vpop.f32.mrb[0].mxu0
        %v1207 = vpop.f32.mrb[0].mxu0
        %v1208 = vadd.f32 %v736, %v1207
        %v1209 = vpop.f32.mrb[0].mxu0
        %1210 = vmatprep.mubr.bf16.mxu0 0
        %1211 = vmatmul.mubr.bf16.gmra.mrb[0].mxu0 %v997
        %v1212 = vpop.f32.mrb[0].mxu0
        %v1213 = vadd.f32 %v736, %v1212
        %v1214 = vpop.f32.mrb[0].mxu0
        %v1215 = vpop.f32.mrb[0].mxu0
        %v1216 = vadd.f32 %v736, %v1215
        %v1217 = vpop.f32.mrb[0].mxu0
        %1218 = vmatprep.mubr.bf16.mxu0 0
        %1219 = vmatmul.mubr.bf16.gmra.mrb[0].mxu0 %v998
        %v1220 = vpop.f32.mrb[0].mxu0
        %v1221 = vadd.f32 %v736, %v1220
        %v1222 = vpop.f32.mrb[0].mxu0
        %v1223 = vpop.f32.mrb[0].mxu0
        %v1224 = vadd.f32 %v736, %v1223
        %v1225 = vpop.f32.mrb[0].mxu0
        %1226 = vmatprep.mubr.bf16.mxu0 0
        %1227 = vmatmul.mubr.bf16.gmra.mrb[0].mxu0 %v999
        %v1228 = vpop.f32.mrb[0].mxu0
        %v1229 = vadd.f32 %v736, %v1228
        %v1230 = vpop.f32.mrb[0].mxu0
        %v1231 = vpop.f32.mrb[0].mxu0
        %v1232 = vadd.f32 %v736, %v1231
        %v1233 = vpop.f32.mrb[0].mxu0
        %1234 = vmatprep.mubr.bf16.mxu0 0
        %1235 = vmatmul.mubr.bf16.gmra.mrb[0].mxu0 %v1000
        %v1236 = vpop.f32.mrb[0].mxu0
        %v1237 = vadd.f32 %v736, %v1236
        %v1238 = vpop.f32.mrb[0].mxu0
        %v1239 = vpop.f32.mrb[0].mxu0
        %v1240 = vadd.f32 %v736, %v1239
        %v1241 = vpop.f32.mrb[0].mxu0
        %1242 = vmatprep.mubr.bf16.mxu0 0
        %1243 = vmatmul.mubr.bf16.gmra.mrb[0].mxu0 %v1001
        %v1244 = vpop.f32.mrb[0].mxu0
        %v1245 = vadd.f32 %v736, %v1244
        %v1246 = vpop.f32.mrb[0].mxu0
        %v1247 = vpop.f32.mrb[0].mxu0
        %v1248 = vadd.f32 %v736, %v1247
        %v1249 = vpop.f32.mrb[0].mxu0
        %1250 = vmatprep.mubr.bf16.mxu0 0
        %1251 = vmatmul.mubr.bf16.gmra.mrb[0].mxu0 %v1002
        %v1252 = vpop.f32.mrb[0].mxu0
        %v1253 = vadd.f32 %v736, %v1252
        %v1254 = vpop.f32.mrb[0].mxu0
        %v1255 = vpop.f32.mrb[0].mxu0
        %v1256 = vadd.f32 %v736, %v1255
        %v1257 = vpop.f32.mrb[0].mxu0
        %1258 = vmatprep.mubr.bf16.mxu0 0
        %1259 = vmatmul.mubr.bf16.gmra.mrb[0].mxu0 %v1003
        %v1260 = vpop.f32.mrb[0].mxu0
        %v1261 = vadd.f32 %v736, %v1260
        %v1262 = vpop.f32.mrb[0].mxu0
        %v1263 = vpop.f32.mrb[0].mxu0
        %v1264 = vadd.f32 %v736, %v1263
        %v1265 = vpop.f32.mrb[0].mxu0
        %1266 = vmatprep.mubr.bf16.mxu0 0
        %1267 = vmatmul.mubr.bf16.gmra.mrb[0].mxu0 %v1004
        %v1268 = vpop.f32.mrb[0].mxu0
        %v1269 = vadd.f32 %v736, %v1268
        %v1270 = vpop.f32.mrb[0].mxu0
        %v1271 = vpop.f32.mrb[0].mxu0
        %v1272 = vadd.f32 %v736, %v1271
        %v1273 = vpop.f32.mrb[0].mxu0
        %1274 = vmatprep.mubr.bf16.mxu0 0
        %1275 = vmatmul.mubr.bf16.gmra.mrb[0].mxu0 %v1005
        %v1276 = vpop.f32.mrb[0].mxu0
        %v1277 = vadd.f32 %v736, %v1276
        %v1278 = vpop.f32.mrb[0].mxu0
        %v1279 = vpop.f32.mrb[0].mxu0
        %v1280 = vadd.f32 %v736, %v1279
        %v1281 = vpop.f32.mrb[0].mxu0
        %1282 = vmatprep.mubr.bf16.mxu0 0
        %1283 = vmatmul.mubr.bf16.gmra.mrb[0].mxu0 %v1006
        %v1284 = vpop.f32.mrb[0].mxu0
        %v1285 = vadd.f32 %v736, %v1284
        %v1286 = vpop.f32.mrb[0].mxu0
        %v1287 = vpop.f32.mrb[0].mxu0
        %v1288 = vadd.f32 %v736, %v1287
        %v1289 = vpop.f32.mrb[0].mxu0
        %1290 = vmatprep.mubr.bf16.mxu0 0
        %1291 = vmatmul.mubr.bf16.gmra.mrb[0].mxu0 %v1007
        %v1292 = vpop.f32.mrb[0].mxu0
        %v1293 = vadd.f32 %v736, %v1292
        %v1294 = vpop.f32.mrb[0].mxu0
        %v1295 = vpop.f32.mrb[0].mxu0
        %v1296 = vadd.f32 %v736, %v1295
        %v1297 = vpop.f32.mrb[0].mxu0
        %1298 = vmatprep.mubr.bf16.mxu0 0
        %1299 = vmatmul.mubr.bf16.gmra.mrb[0].mxu0 %v1008
        %v1300 = vpop.f32.mrb[0].mxu0
        %v1301 = vadd.f32 %v736, %v1300
        %v1302 = vpop.f32.mrb[0].mxu0
        %v1303 = vpop.f32.mrb[0].mxu0
        %v1304 = vadd.f32 %v736, %v1303
        %v1305 = vpop.f32.mrb[0].mxu0
        %1306 = vmatprep.mubr.bf16.mxu0 0
        %1307 = vmatmul.mubr.bf16.gmra.mrb[0].mxu0 %v1009
        %v1308 = vpop.f32.mrb[0].mxu0
        %v1309 = vadd.f32 %v736, %v1308
        %v1310 = vpop.f32.mrb[0].mxu0
        %v1311 = vpop.f32.mrb[0].mxu0
        %v1312 = vadd.f32 %v736, %v1311
        %v1313 = vpop.f32.mrb[0].mxu0
        %1314 = vmatprep.mubr.bf16.mxu0 0
        %1315 = vmatmul.mubr.bf16.gmra.mrb[0].mxu0 %v1010
        %v1316 = vpop.f32.mrb[0].mxu0
        %v1317 = vadd.f32 %v736, %v1316
        %v1318 = vpop.f32.mrb[0].mxu0
        %v1319 = vpop.f32.mrb[0].mxu0
        %v1320 = vadd.f32 %v736, %v1319
        %v1321 = vpop.f32.mrb[0].mxu0
        %1322 = vmatprep.mubr.bf16.mxu0 0
        %1323 = vmatmul.mubr.bf16.gmra.mrb[0].mxu0 %v1011
        %v1324 = vpop.f32.mrb[0].mxu0
        %v1325 = vadd.f32 %v736, %v1324
        %v1326 = vpop.f32.mrb[0].mxu0
        %v1327 = vpop.f32.mrb[0].mxu0
        %v1328 = vadd.f32 %v736, %v1327
        %v1329 = vpop.f32.mrb[0].mxu0
        %1330 = vmatprep.mubr.bf16.mxu0 0
        %1331 = vmatmul.mubr.bf16.gmra.mrb[0].mxu0 %v1012
        %v1332 = vpop.f32.mrb[0].mxu0
        %v1333 = vadd.f32 %v736, %v1332
        %v1334 = vpop.f32.mrb[0].mxu0
        %v1335 = vpop.f32.mrb[0].mxu0
        %v1336 = vadd.f32 %v736, %v1335
        %v1337 = vpop.f32.mrb[0].mxu0
        %1338 = vmatprep.mubr.bf16.mxu0 0
        %1339 = vmatmul.mubr.bf16.gmra.mrb[0].mxu0 %v1013
        %v1340 = vpop.f32.mrb[0].mxu0
        %v1341 = vadd.f32 %v736, %v1340
        %v1342 = vpop.f32.mrb[0].mxu0
        %v1343 = vpop.f32.mrb[0].mxu0
        %v1344 = vadd.f32 %v736, %v1343
        %v1345 = vpop.f32.mrb[0].mxu0
        %1346 = vmatprep.mubr.bf16.mxu0 0
        %1347 = vmatmul.mubr.bf16.gmra.mrb[0].mxu0 %v1014
        %v1348 = vpop.f32.mrb[0].mxu0
        %v1349 = vadd.f32 %v736, %v1348
        %v1350 = vpop.f32.mrb[0].mxu0
        %v1351 = vpop.f32.mrb[0].mxu0
        %v1352 = vadd.f32 %v736, %v1351
        %v1353 = vpop.f32.mrb[0].mxu0
        %1354 = vmatprep.mubr.bf16.mxu0 0
        %1355 = vmatmul.mubr.bf16.gmra.mrb[0].mxu0 %v1015
        %v1356 = vpop.f32.mrb[0].mxu0
        %v1357 = vadd.f32 %v736, %v1356
        %v1358 = vpop.f32.mrb[0].mxu0
        %v1359 = vpop.f32.mrb[0].mxu0
        %v1360 = vadd.f32 %v736, %v1359
        %v1361 = vpop.f32.mrb[0].mxu0
        %1362 = vmatprep.mubr.bf16.mxu0 0
        %1363 = vmatmul.mubr.bf16.gmra.mrb[0].mxu0 %v1016
        %v1364 = vpop.f32.mrb[0].mxu0
        %v1365 = vadd.f32 %v736, %v1364
        %v1366 = vpop.f32.mrb[0].mxu0
        %v1367 = vpop.f32.mrb[0].mxu0
        %v1368 = vadd.f32 %v736, %v1367
        %v1369 = vpop.f32.mrb[0].mxu0
        %1370 = vmatprep.mubr.bf16.mxu0 0
        %1371 = vmatmul.mubr.bf16.gmra.mrb[0].mxu0 %v1017
        %v1372 = vpop.f32.mrb[0].mxu0
        %v1373 = vadd.f32 %v736, %v1372
        %v1374 = vpop.f32.mrb[0].mxu0
        %v1375 = vpop.f32.mrb[0].mxu0
        %v1376 = vadd.f32 %v736, %v1375
        %v1377 = vpop.f32.mrb[0].mxu0
        %1378 = vmatprep.mubr.bf16.mxu0 0
        %1379 = vmatmul.mubr.bf16.gmra.mrb[0].mxu0 %v1018
        %v1380 = vpop.f32.mrb[0].mxu0
        %v1381 = vadd.f32 %v736, %v1380
        %v1382 = vpop.f32.mrb[0].mxu0
        %v1383 = vpop.f32.mrb[0].mxu0
        %v1384 = vadd.f32 %v736, %v1383
        %v1385 = vpop.f32.mrb[0].mxu0
        %1386 = vmatprep.mubr.bf16.mxu0 0
        %1387 = vmatmul.mubr.bf16.gmra.mrb[0].mxu0 %v1019
        %v1388 = vpop.f32.mrb[0].mxu0
        %v1389 = vadd.f32 %v736, %v1388
        %v1390 = vpop.f32.mrb[0].mxu0
        %v1391 = vpop.f32.mrb[0].mxu0
        %v1392 = vadd.f32 %v736, %v1391
        %v1393 = vpop.f32.mrb[0].mxu0
        %1394 = vmatprep.mubr.bf16.mxu0 0
        %1395 = vmatmul.mubr.bf16.gmra.mrb[0].mxu0 %v1020
        %v1396 = vpop.f32.mrb[0].mxu0
        %v1397 = vadd.f32 %v736, %v1396
        %v1398 = vpop.f32.mrb[0].mxu0
        %v1399 = vpop.f32.mrb[0].mxu0
        %v1400 = vadd.f32 %v736, %v1399
        %v1401 = vpop.f32.mrb[0].mxu0
        %1402 = vmatprep.mubr.bf16.mxu0 0
        %1403 = vmatmul.mubr.bf16.gmra.mrb[0].mxu0 %v1021
        %v1404 = vpop.f32.mrb[0].mxu0
        %v1405 = vadd.f32 %v736, %v1404
        %v1406 = vpop.f32.mrb[0].mxu0
        %v1407 = vpop.f32.mrb[0].mxu0
        %v1408 = vadd.f32 %v736, %v1407
        %v1409 = vpop.f32.mrb[0].mxu0
        %1410 = vmatprep.mubr.bf16.mxu0 0
        %1411 = vmatmul.mubr.bf16.gmra.mrb[0].mxu0 %v1022
        %v1412 = vpop.f32.mrb[0].mxu0
        %v1413 = vadd.f32 %v736, %v1412
        %v1414 = vpop.f32.mrb[0].mxu0
        %v1415 = vpop.f32.mrb[0].mxu0
        %v1416 = vadd.f32 %v736, %v1415
        %v1417 = vpop.f32.mrb[0].mxu0
        %1418 = vmatprep.mubr.bf16.mxu0 0
        %1419 = vmatmul.mubr.bf16.gmra.mrb[0].mxu0 %v1023
        %v1420 = vpop.f32.mrb[0].mxu0
        %v1421 = vadd.f32 %v736, %v1420
        %v1422 = vpop.f32.mrb[0].mxu0
        %v1423 = vpop.f32.mrb[0].mxu0
        %v1424 = vadd.f32 %v736, %v1423
        %v1425 = vpop.f32.mrb[0].mxu0
        %1426 = vmatprep.mubr.bf16.mxu0 0
        %1427 = vmatmul.mubr.bf16.gmra.mrb[0].mxu0 %v1024
        %v1428 = vpop.f32.mrb[0].mxu0
        %v1429 = vadd.f32 %v736, %v1428
        %v1430 = vpop.f32.mrb[0].mxu0
        %v1431 = vpop.f32.mrb[0].mxu0
        %v1432 = vadd.f32 %v736, %v1431
        %v1433 = vpop.f32.mrb[0].mxu0
        %1434 = vmatprep.mubr.bf16.mxu0 0
        %1435 = vmatmul.mubr.bf16.gmra.mrb[0].mxu0 %v1025
        %v1436 = vpop.f32.mrb[0].mxu0
        %v1437 = vadd.f32 %v736, %v1436
        %v1438 = vpop.f32.mrb[0].mxu0
        %v1439 = vpop.f32.mrb[0].mxu0
        %v1440 = vadd.f32 %v736, %v1439
        %v1441 = vpop.f32.mrb[0].mxu0
        %1442 = vmatprep.mubr.bf16.mxu0 0
        %1443 = vmatmul.mubr.bf16.gmra.mrb[0].mxu0 %v1026
        %v1444 = vpop.f32.mrb[0].mxu0
        %v1445 = vadd.f32 %v736, %v1444
        %v1446 = vpop.f32.mrb[0].mxu0
        %v1447 = vpop.f32.mrb[0].mxu0
        %v1448 = vadd.f32 %v736, %v1447
        %v1449 = vpop.f32.mrb[0].mxu0
        %1450 = vmatprep.mubr.bf16.mxu0 0
        %1451 = vmatmul.mubr.bf16.gmra.mrb[0].mxu0 %v1027
        %v1452 = vpop.f32.mrb[0].mxu0
        %v1453 = vadd.f32 %v736, %v1452
        %v1454 = vpop.f32.mrb[0].mxu0
        %v1455 = vpop.f32.mrb[0].mxu0
        %v1456 = vadd.f32 %v736, %v1455
        %v1457 = vpop.f32.mrb[0].mxu0
        %1458 = vmatprep.mubr.bf16.mxu0 0
        %1459 = vmatmul.mubr.bf16.gmra.mrb[0].mxu0 %v1028
        %v1460 = vpop.f32.mrb[0].mxu0
        %v1461 = vadd.f32 %v736, %v1460
        %v1462 = vpop.f32.mrb[0].mxu0
        %v1463 = vpop.f32.mrb[0].mxu0
        %v1464 = vadd.f32 %v736, %v1463
        %v1465 = vpop.f32.mrb[0].mxu0
        %1466 = vmatprep.mubr.bf16.mxu0 0
        %1467 = vmatmul.mubr.bf16.gmra.mrb[0].mxu0 %v1029
        %v1468 = vpop.f32.mrb[0].mxu0
        %v1469 = vadd.f32 %v736, %v1468
        %v1470 = vpop.f32.mrb[0].mxu0
        %v1471 = vpop.f32.mrb[0].mxu0
        %v1472 = vadd.f32 %v736, %v1471
        %v1473 = vpop.f32.mrb[0].mxu0
        %1474 = vmatprep.mubr.bf16.mxu0 0
        %1475 = vmatmul.mubr.bf16.gmra.mrb[0].mxu0 %v1030
        %v1476 = vpop.f32.mrb[0].mxu0
        %v1477 = vadd.f32 %v736, %v1476
        %v1478 = vpop.f32.mrb[0].mxu0
        %v1479 = vpop.f32.mrb[0].mxu0
        %v1480 = vadd.f32 %v736, %v1479
        %v1481 = vpop.f32.mrb[0].mxu0
        %1482 = vmatprep.mubr.bf16.mxu0 0
        %1483 = vmatmul.mubr.bf16.gmra.mrb[0].mxu0 %v1031
        %v1484 = vpop.f32.mrb[0].mxu0
        %v1485 = vadd.f32 %v736, %v1484
        %v1486 = vpop.f32.mrb[0].mxu0
        %v1487 = vpop.f32.mrb[0].mxu0
        %v1488 = vadd.f32 %v736, %v1487
        %v1489 = vpop.f32.mrb[0].mxu0
        %1490 = vmatprep.mubr.bf16.mxu0 0
        %1491 = vmatmul.mubr.bf16.gmra.mrb[0].mxu0 %v1032
        %v1492 = vpop.f32.mrb[0].mxu0
        %v1493 = vadd.f32 %v736, %v1492
        %v1494 = vpop.f32.mrb[0].mxu0
        %v1495 = vpop.f32.mrb[0].mxu0
        %v1496 = vadd.f32 %v736, %v1495
        %v1497 = vpop.f32.mrb[0].mxu0
        %1498 = vmatprep.mubr.bf16.mxu0 0
        %1499 = vmatmul.mubr.bf16.gmra.mrb[0].mxu0 %v1033
        %v1500 = vpop.f32.mrb[0].mxu0
        %v1501 = vadd.f32 %v736, %v1500
        %v1502 = vpop.f32.mrb[0].mxu0
        %v1503 = vpop.f32.mrb[0].mxu0
        %v1504 = vadd.f32 %v736, %v1503
        %v1505 = vpop.f32.mrb[0].mxu0
        %1506 = vmatprep.mubr.bf16.mxu0 0
        %1507 = vmatmul.mubr.bf16.gmra.mrb[0].mxu0 %v1034
        %v1508 = vpop.f32.mrb[0].mxu0
        %v1509 = vadd.f32 %v736, %v1508
        %v1510 = vpop.f32.mrb[0].mxu0
        %v1511 = vpop.f32.mrb[0].mxu0
        %v1512 = vadd.f32 %v736, %v1511
        %v1513 = vpop.f32.mrb[0].mxu0
        %1514 = vmatprep.mubr.bf16.mxu0 0
        %1515 = vmatmul.mubr.bf16.gmra.mrb[0].mxu0 %v1035
        %v1516 = vpop.f32.mrb[0].mxu0
        %v1517 = vadd.f32 %v736, %v1516
        %v1518 = vpop.f32.mrb[0].mxu0
        %v1519 = vpop.f32.mrb[0].mxu0
        %v1520 = vadd.f32 %v736, %v1519
        %v1521 = vpop.f32.mrb[0].mxu0
        %1522 = vmatprep.mubr.bf16.mxu0 0
        %1523 = vmatmul.mubr.bf16.gmra.mrb[0].mxu0 %v1036
        %v1524 = vpop.f32.mrb[0].mxu0
        %v1525 = vadd.f32 %v736, %v1524
        %v1526 = vpop.f32.mrb[0].mxu0
        %v1527 = vpop.f32.mrb[0].mxu0
        %v1528 = vadd.f32 %v736, %v1527
        %v1529 = vpop.f32.mrb[0].mxu0
        %1530 = vmatprep.mubr.bf16.mxu0 0
        %1531 = vmatmul.mubr.bf16.gmra.mrb[0].mxu0 %v1037
        %v1532 = vpop.f32.mrb[0].mxu0
        %v1533 = vadd.f32 %v736, %v1532
        %v1534 = vpop.f32.mrb[0].mxu0
        %v1535 = vpop.f32.mrb[0].mxu0
        %v1536 = vadd.f32 %v736, %v1535
        %v1537 = vpop.f32.mrb[0].mxu0
        %1538 = vmatprep.mubr.bf16.mxu0 0
        %1539 = vmatmul.mubr.bf16.gmra.mrb[0].mxu0 %v1038
        %v1540 = vpop.f32.mrb[0].mxu0
        %v1541 = vadd.f32 %v736, %v1540
        %v1542 = vpop.f32.mrb[0].mxu0
        %v1543 = vpop.f32.mrb[0].mxu0
        %v1544 = vadd.f32 %v736, %v1543
        %v1545 = vpop.f32.mrb[0].mxu0
        %1546 = vmatprep.mubr.bf16.mxu0 0
        %1547 = vmatmul.mubr.bf16.gmra.mrb[0].mxu0 %v1039
        %v1548 = vpop.f32.mrb[0].mxu0
        %v1549 = vadd.f32 %v736, %v1548
        %v1550 = vpop.f32.mrb[0].mxu0
        %v1551 = vpop.f32.mrb[0].mxu0
        %v1552 = vadd.f32 %v736, %v1551
        %v1553 = vpop.f32.mrb[0].mxu0
        %1554 = vmatprep.mubr.bf16.mxu0 0
        %1555 = vmatmul.mubr.bf16.gmra.mrb[0].mxu0 %v1040
        %v1556 = vpop.f32.mrb[0].mxu0
        %v1557 = vadd.f32 %v736, %v1556
        %v1558 = vpop.f32.mrb[0].mxu0
        %v1559 = vpop.f32.mrb[0].mxu0
        %v1560 = vadd.f32 %v736, %v1559
        %v1561 = vpop.f32.mrb[0].mxu0
        %1562 = vmatprep.mubr.bf16.mxu0 0
        %1563 = vmatmul.mubr.bf16.gmra.mrb[0].mxu0 %v1041
        %v1564 = vpop.f32.mrb[0].mxu0
        %v1565 = vadd.f32 %v736, %v1564
        %v1566 = vpop.f32.mrb[0].mxu0
        %v1567 = vpop.f32.mrb[0].mxu0
        %v1568 = vadd.f32 %v736, %v1567
        %v1569 = vpop.f32.mrb[0].mxu0
        %1570 = vmatprep.mubr.bf16.mxu0 0
        %1571 = vmatmul.mubr.bf16.gmra.mrb[0].mxu0 %v1042
        %v1572 = vpop.f32.mrb[0].mxu0
        %v1573 = vadd.f32 %v736, %v1572
        %v1574 = vpop.f32.mrb[0].mxu0
        %v1575 = vpop.f32.mrb[0].mxu0
        %v1576 = vadd.f32 %v736, %v1575
        %v1577 = vpop.f32.mrb[0].mxu0
        %1578 = vmatprep.mubr.bf16.mxu0 0
        %1579 = vmatmul.mubr.bf16.gmra.mrb[0].mxu0 %v1043
        %v1580 = vpop.f32.mrb[0].mxu0
        %v1581 = vadd.f32 %v736, %v1580
        %v1582 = vpop.f32.mrb[0].mxu0
        %v1583 = vpop.f32.mrb[0].mxu0
        %v1584 = vadd.f32 %v736, %v1583
        %v1585 = vpop.f32.mrb[0].mxu0
        %1586 = vmatprep.mubr.bf16.mxu0 0
        %1587 = vmatmul.mubr.bf16.gmra.mrb[0].mxu0 %v1044
        %v1588 = vpop.f32.mrb[0].mxu0
        %v1589 = vadd.f32 %v736, %v1588
        %v1590 = vpop.f32.mrb[0].mxu0
        %v1591 = vpop.f32.mrb[0].mxu0
        %v1592 = vadd.f32 %v736, %v1591
        %v1593 = vpop.f32.mrb[0].mxu0
        %1594 = vmatprep.mubr.bf16.mxu0 0
        %1595 = vmatmul.mubr.bf16.gmra.mrb[0].mxu0 %v1045
        %v1596 = vpop.f32.mrb[0].mxu0
        %v1597 = vadd.f32 %v736, %v1596
        %v1598 = vpop.f32.mrb[0].mxu0
        %v1599 = vpop.f32.mrb[0].mxu0
        %v1600 = vadd.f32 %v736, %v1599
        %v1601 = vpop.f32.mrb[0].mxu0
        %1602 = vmatprep.mubr.bf16.mxu0 0
        %1603 = vmatmul.mubr.bf16.gmra.mrb[0].mxu0 %v1046
        %v1604 = vpop.f32.mrb[0].mxu0
        %v1605 = vadd.f32 %v736, %v1604
        %v1606 = vpop.f32.mrb[0].mxu0
        %v1607 = vpop.f32.mrb[0].mxu0
        %v1608 = vadd.f32 %v736, %v1607
        %v1609 = vpop.f32.mrb[0].mxu0
        %1610 = vmatprep.mubr.bf16.mxu0 0
        %1611 = vmatmul.mubr.bf16.gmra.mrb[0].mxu0 %v1047
        %v1612 = vpop.f32.mrb[0].mxu0
        %v1613 = vadd.f32 %v736, %v1612
        %v1614 = vpop.f32.mrb[0].mxu0
        %v1615 = vpop.f32.mrb[0].mxu0
        %v1616 = vadd.f32 %v736, %v1615
        %v1617 = vpop.f32.mrb[0].mxu0
        %1618 = vmatprep.mubr.bf16.mxu0 0
        %1619 = vmatmul.mubr.bf16.gmra.mrb[0].mxu0 %v1048
        %v1620 = vpop.f32.mrb[0].mxu0
        %v1621 = vadd.f32 %v736, %v1620
        %v1622 = vpop.f32.mrb[0].mxu0
        %v1623 = vpop.f32.mrb[0].mxu0
        %v1624 = vadd.f32 %v736, %v1623
        %v1625 = vpop.f32.mrb[0].mxu0
        %1626 = vmatprep.mubr.bf16.mxu0 0
        %1627 = vmatmul.mubr.bf16.gmra.mrb[0].mxu0 %v1049
        %v1628 = vpop.f32.mrb[0].mxu0
        %v1629 = vadd.f32 %v736, %v1628
        %v1630 = vpop.f32.mrb[0].mxu0
        %v1631 = vpop.f32.mrb[0].mxu0
        %v1632 = vadd.f32 %v736, %v1631
        %v1633 = vpop.f32.mrb[0].mxu0
        %1634 = vmatprep.mubr.bf16.mxu0 0
        %1635 = vmatmul.mubr.bf16.gmra.mrb[0].mxu0 %v1050
        %v1636 = vpop.f32.mrb[0].mxu0
        %v1637 = vadd.f32 %v736, %v1636
        %v1638 = vpop.f32.mrb[0].mxu0
        %v1639 = vpop.f32.mrb[0].mxu0
        %v1640 = vadd.f32 %v736, %v1639
        %v1641 = vpop.f32.mrb[0].mxu0
        %1642 = vmatprep.mubr.bf16.mxu0 0
        %1643 = vmatmul.mubr.bf16.gmra.mrb[0].mxu0 %v1051
        %v1644 = vpop.f32.mrb[0].mxu0
        %v1645 = vadd.f32 %v736, %v1644
        %v1646 = vpop.f32.mrb[0].mxu0
        %v1647 = vpop.f32.mrb[0].mxu0
        %v1648 = vadd.f32 %v736, %v1647
        %v1649 = vpop.f32.mrb[0].mxu0
        %1650 = vmatprep.mubr.bf16.mxu0 0
        %1651 = vmatmul.mubr.bf16.gmra.mrb[0].mxu0 %v1052
        %v1652 = vpop.f32.mrb[0].mxu0
        %v1653 = vadd.f32 %v736, %v1652
        %v1654 = vpop.f32.mrb[0].mxu0
        %v1655 = vpop.f32.mrb[0].mxu0
        %v1656 = vadd.f32 %v736, %v1655
        %v1657 = vpop.f32.mrb[0].mxu0
        %1658 = vmatprep.mubr.bf16.mxu0 0
        %1659 = vmatmul.mubr.bf16.gmra.mrb[0].mxu0 %v1053
        %v1660 = vpop.f32.mrb[0].mxu0
        %v1661 = vadd.f32 %v736, %v1660
        %v1662 = vpop.f32.mrb[0].mxu0
        %v1663 = vpop.f32.mrb[0].mxu0
        %v1664 = vadd.f32 %v736, %v1663
        %v1665 = vpop.f32.mrb[0].mxu0
        %1666 = vmatprep.mubr.bf16.mxu0 0
        %1667 = vmatmul.mubr.bf16.gmra.mrb[0].mxu0 %v1054
        %v1668 = vpop.f32.mrb[0].mxu0
        %v1669 = vadd.f32 %v736, %v1668
        %v1670 = vpop.f32.mrb[0].mxu0
        %v1671 = vpop.f32.mrb[0].mxu0
        %v1672 = vadd.f32 %v736, %v1671
        %v1673 = vpop.f32.mrb[0].mxu0
        %1674 = vmatprep.mubr.bf16.mxu0 0
        %1675 = vmatmul.mubr.bf16.gmra.mrb[0].mxu0 %v1055
        %v1676 = vpop.f32.mrb[0].mxu0
        %v1677 = vadd.f32 %v736, %v1676
        %v1678 = vpop.f32.mrb[0].mxu0
        %v1679 = vpop.f32.mrb[0].mxu0
        %v1680 = vadd.f32 %v736, %v1679
        %v1681 = vpop.f32.mrb[0].mxu0
        %1682 = vmatprep.mubr.bf16.mxu0 0
        %1683 = vmatmul.mubr.bf16.gmra.mrb[0].mxu0 %v1056
        %v1684 = vpop.f32.mrb[0].mxu0
        %v1685 = vadd.f32 %v736, %v1684
        %v1686 = vpop.f32.mrb[0].mxu0
        %v1687 = vpop.f32.mrb[0].mxu0
        %v1688 = vadd.f32 %v736, %v1687
        %v1689 = vpop.f32.mrb[0].mxu0
        %1690 = vmatprep.mubr.bf16.mxu0 0
        %1691 = vmatmul.mubr.bf16.gmra.mrb[0].mxu0 %v1057
        %v1692 = vpop.f32.mrb[0].mxu0
        %v1693 = vadd.f32 %v736, %v1692
        %v1694 = vpop.f32.mrb[0].mxu0
        %v1695 = vpop.f32.mrb[0].mxu0
        %v1696 = vadd.f32 %v736, %v1695
        %v1697 = vpop.f32.mrb[0].mxu0
        %1698 = vdwg.mxu0
        %v1699 = vmax.f32 %v1189, 0.0
        %v1700 = vmax.f32 %v1192, 0.0
        %v1701 = vmax.f32 %v1197, 0.0
        %v1702 = vmax.f32 %v1200, 0.0
        %v1703 = vmax.f32 %v1205, 0.0
        %v1704 = vmax.f32 %v1208, 0.0
        %v1705 = vmax.f32 %v1213, 0.0
        %v1706 = vmax.f32 %v1216, 0.0
        %v1707 = vmax.f32 %v1221, 0.0
        %v1708 = vmax.f32 %v1224, 0.0
        %v1709 = vmax.f32 %v1229, 0.0
        %v1710 = vmax.f32 %v1232, 0.0
        %v1711 = vmax.f32 %v1237, 0.0
        %v1712 = vmax.f32 %v1240, 0.0
        %v1713 = vmax.f32 %v1245, 0.0
        %v1714 = vmax.f32 %v1248, 0.0
        %v1715 = vmax.f32 %v1253, 0.0
        %v1716 = vmax.f32 %v1256, 0.0
        %v1717 = vmax.f32 %v1261, 0.0
        %v1718 = vmax.f32 %v1264, 0.0
        %v1719 = vmax.f32 %v1269, 0.0
        %v1720 = vmax.f32 %v1272, 0.0
        %v1721 = vmax.f32 %v1277, 0.0
        %v1722 = vmax.f32 %v1280, 0.0
        %v1723 = vmax.f32 %v1285, 0.0
        %v1724 = vmax.f32 %v1288, 0.0
        %v1725 = vmax.f32 %v1293, 0.0
        %v1726 = vmax.f32 %v1296, 0.0
        %v1727 = vmax.f32 %v1301, 0.0
        %v1728 = vmax.f32 %v1304, 0.0
        %v1729 = vmax.f32 %v1309, 0.0
        %v1730 = vmax.f32 %v1312, 0.0
        %v1731 = vmax.f32 %v1317, 0.0
        %v1732 = vmax.f32 %v1320, 0.0
        %v1733 = vmax.f32 %v1325, 0.0
        %v1734 = vmax.f32 %v1328, 0.0
        %v1735 = vmax.f32 %v1333, 0.0
        %v1736 = vmax.f32 %v1336, 0.0
        %v1737 = vmax.f32 %v1341, 0.0
        %v1738 = vmax.f32 %v1344, 0.0
        %v1739 = vmax.f32 %v1349, 0.0
        %v1740 = vmax.f32 %v1352, 0.0
        %v1741 = vmax.f32 %v1357, 0.0
        %v1742 = vmax.f32 %v1360, 0.0
        %v1743 = vmax.f32 %v1365, 0.0
        %v1744 = vmax.f32 %v1368, 0.0
        %v1745 = vmax.f32 %v1373, 0.0
        %v1746 = vmax.f32 %v1376, 0.0
        %v1747 = vmax.f32 %v1381, 0.0
        %v1748 = vmax.f32 %v1384, 0.0
        %v1749 = vmax.f32 %v1389, 0.0
        %v1750 = vmax.f32 %v1392, 0.0
        %v1751 = vmax.f32 %v1397, 0.0
        %v1752 = vmax.f32 %v1400, 0.0
        %v1753 = vmax.f32 %v1405, 0.0
        %v1754 = vmax.f32 %v1408, 0.0
        %v1755 = vmax.f32 %v1413, 0.0
        %v1756 = vmax.f32 %v1416, 0.0
        %v1757 = vmax.f32 %v1421, 0.0
        %v1758 = vmax.f32 %v1424, 0.0
        %v1759 = vmax.f32 %v1429, 0.0
        %v1760 = vmax.f32 %v1432, 0.0
        %v1761 = vmax.f32 %v1437, 0.0
        %v1762 = vmax.f32 %v1440, 0.0
        %v1763 = vmax.f32 %v1445, 0.0
        %v1764 = vmax.f32 %v1448, 0.0
        %v1765 = vmax.f32 %v1453, 0.0
        %v1766 = vmax.f32 %v1456, 0.0
        %v1767 = vmax.f32 %v1461, 0.0
        %v1768 = vmax.f32 %v1464, 0.0
        %v1769 = vmax.f32 %v1469, 0.0
        %v1770 = vmax.f32 %v1472, 0.0
        %v1771 = vmax.f32 %v1477, 0.0
        %v1772 = vmax.f32 %v1480, 0.0
        %v1773 = vmax.f32 %v1485, 0.0
        %v1774 = vmax.f32 %v1488, 0.0
        %v1775 = vmax.f32 %v1493, 0.0
        %v1776 = vmax.f32 %v1496, 0.0
        %v1777 = vmax.f32 %v1501, 0.0
        %v1778 = vmax.f32 %v1504, 0.0
        %v1779 = vmax.f32 %v1509, 0.0
        %v1780 = vmax.f32 %v1512, 0.0
        %v1781 = vmax.f32 %v1517, 0.0
        %v1782 = vmax.f32 %v1520, 0.0
        %v1783 = vmax.f32 %v1525, 0.0
        %v1784 = vmax.f32 %v1528, 0.0
        %v1785 = vmax.f32 %v1533, 0.0
        %v1786 = vmax.f32 %v1536, 0.0
        %v1787 = vmax.f32 %v1541, 0.0
        %v1788 = vmax.f32 %v1544, 0.0
        %v1789 = vmax.f32 %v1549, 0.0
        %v1790 = vmax.f32 %v1552, 0.0
        %v1791 = vmax.f32 %v1557, 0.0
        %v1792 = vmax.f32 %v1560, 0.0
        %v1793 = vmax.f32 %v1565, 0.0
        %v1794 = vmax.f32 %v1568, 0.0
        %v1795 = vmax.f32 %v1573, 0.0
        %v1796 = vmax.f32 %v1576, 0.0
        %v1797 = vmax.f32 %v1581, 0.0
        %v1798 = vmax.f32 %v1584, 0.0
        %v1799 = vmax.f32 %v1589, 0.0
        %v1800 = vmax.f32 %v1592, 0.0
        %v1801 = vmax.f32 %v1597, 0.0
        %v1802 = vmax.f32 %v1600, 0.0
        %v1803 = vmax.f32 %v1605, 0.0
        %v1804 = vmax.f32 %v1608, 0.0
        %v1805 = vmax.f32 %v1613, 0.0
        %v1806 = vmax.f32 %v1616, 0.0
        %v1807 = vmax.f32 %v1621, 0.0
        %v1808 = vmax.f32 %v1624, 0.0
        %v1809 = vmax.f32 %v1629, 0.0
        %v1810 = vmax.f32 %v1632, 0.0
        %v1811 = vmax.f32 %v1637, 0.0
        %v1812 = vmax.f32 %v1640, 0.0
        %v1813 = vmax.f32 %v1645, 0.0
        %v1814 = vmax.f32 %v1648, 0.0
        %v1815 = vmax.f32 %v1653, 0.0
        %v1816 = vmax.f32 %v1656, 0.0
        %v1817 = vmax.f32 %v1661, 0.0
        %v1818 = vmax.f32 %v1664, 0.0
        %v1819 = vmax.f32 %v1669, 0.0
        %v1820 = vmax.f32 %v1672, 0.0
        %v1821 = vmax.f32 %v1677, 0.0
        %v1822 = vmax.f32 %v1680, 0.0
        %v1823 = vmax.f32 %v1685, 0.0
        %v1824 = vmax.f32 %v1688, 0.0
        %v1825 = vmax.f32 %v1693, 0.0
        %v1826 = vmax.f32 %v1696, 0.0
        %v1827 = vld [vmem:[%s4] sm:$0xff]
        %v1828 = vld [vmem:[%s4 + $0x8] sm:$0xff]
        %v1829 = vld [vmem:[%s4 + $0x10] sm:$0xff]
        %v1830 = vld [vmem:[%s4 + $0x18] sm:$0xff]
        %v1831 = vld [vmem:[%s5] sm:$0x1]
        %v1833 = vlaneseq
        %v1834 = vshrl.u32 %v1833, 7
        %v1835 = vsub.s32 0, %v1834
        %v1836 = vrot.slane %v1831, %v1835
        %vm1838 = vcmask 261120
        %v1840 = vsel %vm1838, %v1699, 0
        %v1843 = vsel %vm1838, %v1700, 0
        %v1846 = vsel %vm1838, %v1701, 0
        %v1849 = vsel %vm1838, %v1702, 0
        %v1852 = vsel %vm1838, %v1703, 0
        %v1855 = vsel %vm1838, %v1704, 0
        %v1858 = vsel %vm1838, %v1705, 0
        %v1861 = vsel %vm1838, %v1706, 0
        %v1864 = vsel %vm1838, %v1707, 0
        %v1867 = vsel %vm1838, %v1708, 0
        %v1870 = vsel %vm1838, %v1709, 0
        %v1873 = vsel %vm1838, %v1710, 0
        %v1876 = vsel %vm1838, %v1711, 0
        %v1879 = vsel %vm1838, %v1712, 0
        %v1882 = vsel %vm1838, %v1713, 0
        %v1885 = vsel %vm1838, %v1714, 0
        %v1888 = vsel %vm1838, %v1715, 0
        %v1891 = vsel %vm1838, %v1716, 0
        %v1894 = vsel %vm1838, %v1717, 0
        %v1897 = vsel %vm1838, %v1718, 0
        %v1900 = vsel %vm1838, %v1719, 0
        %v1903 = vsel %vm1838, %v1720, 0
        %v1906 = vsel %vm1838, %v1721, 0
        %v1909 = vsel %vm1838, %v1722, 0
        %v1912 = vsel %vm1838, %v1723, 0
        %v1915 = vsel %vm1838, %v1724, 0
        %v1918 = vsel %vm1838, %v1725, 0
        %v1921 = vsel %vm1838, %v1726, 0
        %v1924 = vsel %vm1838, %v1727, 0
        %v1927 = vsel %vm1838, %v1728, 0
        %v1930 = vsel %vm1838, %v1729, 0
        %v1933 = vsel %vm1838, %v1730, 0
        %v1936 = vsel %vm1838, %v1731, 0
        %v1939 = vsel %vm1838, %v1732, 0
        %v1942 = vsel %vm1838, %v1733, 0
        %v1945 = vsel %vm1838, %v1734, 0
        %v1948 = vsel %vm1838, %v1735, 0
        %v1951 = vsel %vm1838, %v1736, 0
        %v1954 = vsel %vm1838, %v1737, 0
        %v1957 = vsel %vm1838, %v1738, 0
        %v1960 = vsel %vm1838, %v1739, 0
        %v1963 = vsel %vm1838, %v1740, 0
        %v1966 = vsel %vm1838, %v1741, 0
        %v1969 = vsel %vm1838, %v1742, 0
        %v1972 = vsel %vm1838, %v1743, 0
        %v1975 = vsel %vm1838, %v1744, 0
        %v1978 = vsel %vm1838, %v1745, 0
        %v1981 = vsel %vm1838, %v1746, 0
        %v1984 = vsel %vm1838, %v1747, 0
        %v1987 = vsel %vm1838, %v1748, 0
        %v1990 = vsel %vm1838, %v1749, 0
        %v1993 = vsel %vm1838, %v1750, 0
        %v1996 = vsel %vm1838, %v1751, 0
        %v1999 = vsel %vm1838, %v1752, 0
        %v2002 = vsel %vm1838, %v1753, 0
        %v2005 = vsel %vm1838, %v1754, 0
        %v2008 = vsel %vm1838, %v1755, 0
        %v2011 = vsel %vm1838, %v1756, 0
        %v2014 = vsel %vm1838, %v1757, 0
        %v2017 = vsel %vm1838, %v1758, 0
        %v2020 = vsel %vm1838, %v1759, 0
        %v2023 = vsel %vm1838, %v1760, 0
        %v2026 = vsel %vm1838, %v1761, 0
        %v2029 = vsel %vm1838, %v1762, 0
        %v2032 = vsel %vm1838, %v1763, 0
        %v2035 = vsel %vm1838, %v1764, 0
        %v2038 = vsel %vm1838, %v1765, 0
        %v2041 = vsel %vm1838, %v1766, 0
        %v2044 = vsel %vm1838, %v1767, 0
        %v2047 = vsel %vm1838, %v1768, 0
        %v2050 = vsel %vm1838, %v1769, 0
        %v2053 = vsel %vm1838, %v1770, 0
        %v2056 = vsel %vm1838, %v1771, 0
        %v2059 = vsel %vm1838, %v1772, 0
        %v2062 = vsel %vm1838, %v1773, 0
        %v2065 = vsel %vm1838, %v1774, 0
        %v2068 = vsel %vm1838, %v1775, 0
        %v2071 = vsel %vm1838, %v1776, 0
        %v2074 = vsel %vm1838, %v1777, 0
        %v2077 = vsel %vm1838, %v1778, 0
        %v2080 = vsel %vm1838, %v1779, 0
        %v2083 = vsel %vm1838, %v1780, 0
        %v2086 = vsel %vm1838, %v1781, 0
        %v2089 = vsel %vm1838, %v1782, 0
        %v2092 = vsel %vm1838, %v1783, 0
        %v2095 = vsel %vm1838, %v1784, 0
        %v2098 = vsel %vm1838, %v1785, 0
        %v2101 = vsel %vm1838, %v1786, 0
        %v2104 = vsel %vm1838, %v1787, 0
        %v2107 = vsel %vm1838, %v1788, 0
        %v2110 = vsel %vm1838, %v1789, 0
        %v2113 = vsel %vm1838, %v1790, 0
        %v2116 = vsel %vm1838, %v1791, 0
        %v2119 = vsel %vm1838, %v1792, 0
        %v2122 = vsel %vm1838, %v1793, 0
        %v2125 = vsel %vm1838, %v1794, 0
        %v2128 = vsel %vm1838, %v1795, 0
        %v2131 = vsel %vm1838, %v1796, 0
        %v2134 = vsel %vm1838, %v1797, 0
        %v2137 = vsel %vm1838, %v1798, 0
        %v2140 = vsel %vm1838, %v1799, 0
        %v2143 = vsel %vm1838, %v1800, 0
        %v2146 = vsel %vm1838, %v1801, 0
        %v2149 = vsel %vm1838, %v1802, 0
        %v2152 = vsel %vm1838, %v1803, 0
        %v2155 = vsel %vm1838, %v1804, 0
        %v2158 = vsel %vm1838, %v1805, 0
        %v2161 = vsel %vm1838, %v1806, 0
        %v2164 = vsel %vm1838, %v1807, 0
        %v2167 = vsel %vm1838, %v1808, 0
        %v2170 = vsel %vm1838, %v1809, 0
        %v2173 = vsel %vm1838, %v1810, 0
        %v2176 = vsel %vm1838, %v1811, 0
        %v2179 = vsel %vm1838, %v1812, 0
        %v2182 = vsel %vm1838, %v1813, 0
        %v2185 = vsel %vm1838, %v1814, 0
        %v2188 = vsel %vm1838, %v1815, 0
        %v2191 = vsel %vm1838, %v1816, 0
        %v2194 = vsel %vm1838, %v1817, 0
        %v2197 = vsel %vm1838, %v1818, 0
        %v2200 = vsel %vm1838, %v1819, 0
        %v2203 = vsel %vm1838, %v1820, 0
        %v2206 = vsel %vm1838, %v1821, 0
        %v2209 = vsel %vm1838, %v1822, 0
        %v2212 = vsel %vm1838, %v1823, 0
        %v2215 = vsel %vm1838, %v1824, 0
        %v2218 = vsel %vm1838, %v1825, 0
        %v2221 = vsel %vm1838, %v1826, 0
        %2223 = vmatprep.subr.mxu0 0.0
        %2224 = vmatpush1.msra.mxu0 %v1827
        %2225 = vmatprep.subr.mxu0 0.0
        %2226 = vmatpush1.msra.mxu0 %v1828
        %2227 = vmatprep.subr.mxu0 0.0
        %2228 = vmatpush1.msra.mxu0 %v1829
        %2229 = vmatprep.subr.mxu0 0.0
        %2230 = vmatpush1.msra.mxu0 %v1830
        %2231 = vmatprep.subr.mxu0 0.0
        %2232 = vmatpush1.msra.mxu0 0.0
        %2233 = vmatprep.subr.mxu0 0.0
        %2234 = vmatpush1.msra.mxu0 0.0
        %2235 = vmatprep.subr.mxu0 0.0
        %2236 = vmatpush1.msra.mxu0 0.0
        %2237 = vmatprep.subr.mxu0 0.0
        %2238 = vmatpush1.msra.mxu0 0.0
        %2239 = vmatprep.subr.mxu0 0.0
        %2240 = vmatpush1.msra.mxu0 0.0
        %2241 = vmatprep.subr.mxu0 0.0
        %2242 = vmatpush1.msra.mxu0 0.0
        %2243 = vmatprep.subr.mxu0 0.0
        %2244 = vmatpush1.msra.mxu0 0.0
        %2245 = vmatprep.subr.mxu0 0.0
        %2246 = vmatpush1.msra.mxu0 0.0
        %2247 = vmatprep.subr.mxu0 0.0
        %2248 = vmatpush1.msra.mxu0 0.0
        %2249 = vmatprep.subr.mxu0 0.0
        %2250 = vmatpush1.msra.mxu0 0.0
        %2251 = vmatprep.subr.mxu0 0.0
        %2252 = vmatpush1.msra.mxu0 0.0
        %2253 = vmatprep.subr.mxu0 0.0
        %2254 = vmatpush1.msra.mxu0 0.0
        %2255 = vmatprep.subr.mxu0 0.0
        %2256 = vmatpush1.msra.mxu0 0.0
        %2257 = vmatprep.subr.mxu0 0.0
        %2258 = vmatpush1.msra.mxu0 0.0
        %2259 = vmatprep.subr.mxu0 0.0
        %2260 = vmatpush1.msra.mxu0 0.0
        %2261 = vmatprep.subr.mxu0 0.0
        %2262 = vmatpush1.msra.mxu0 0.0
        %2263 = vmatprep.subr.mxu0 0.0
        %2264 = vmatpush1.msra.mxu0 0.0
        %2265 = vmatprep.subr.mxu0 0.0
        %2266 = vmatpush1.msra.mxu0 0.0
        %2267 = vmatprep.subr.mxu0 0.0
        %2268 = vmatpush1.msra.mxu0 0.0
        %2269 = vmatprep.subr.mxu0 0.0
        %2270 = vmatpush1.msra.mxu0 0.0
        %2271 = vmatprep.subr.mxu0 0.0
        %2272 = vmatpush1.msra.mxu0 0.0
        %2273 = vmatprep.subr.mxu0 0.0
        %2274 = vmatpush1.msra.mxu0 0.0
        %2275 = vmatprep.subr.mxu0 0.0
        %2276 = vmatpush1.msra.mxu0 0.0
        %2277 = vmatprep.subr.mxu0 0.0
        %2278 = vmatpush1.msra.mxu0 0.0
        %2279 = vmatprep.subr.mxu0 0.0
        %2280 = vmatpush1.msra.mxu0 0.0
        %2281 = vmatprep.subr.mxu0 0.0
        %2282 = vmatpush1.msra.mxu0 0.0
        %2283 = vmatprep.subr.mxu0 0.0
        %2284 = vmatpush1.msra.mxu0 0.0
        %2285 = vmatprep.subr.mxu0 0.0
        %2286 = vmatpush1.msra.mxu0 0.0
        %2287 = vmatprep.mubr.f32.mxu0 0.0
        %2288 = vmatmul.mubr.f32.gmra.mrb[0].mxu0 %v1840
        %v2289 = vpop.f32.mrb[0].mxu0
        %v2290 = vadd.f32 %v1836, %v2289
        %v2291 = vpop.f32.mrb[0].mxu0
        %2292 = vmatprep.mubr.f32.mxu0 0.0
        %2293 = vmatmul.mubr.f32.gmra.mrb[0].mxu0 %v1843
        %v2294 = vpop.f32.mrb[0].mxu0
        %v2295 = vadd.f32 %v1836, %v2294
        %v2296 = vpop.f32.mrb[0].mxu0
        %2297 = vmatprep.mubr.f32.mxu0 0.0
        %2298 = vmatmul.mubr.f32.gmra.mrb[0].mxu0 %v1846
        %v2299 = vpop.f32.mrb[0].mxu0
        %v2300 = vadd.f32 %v1836, %v2299
        %v2301 = vpop.f32.mrb[0].mxu0
        %2302 = vmatprep.mubr.f32.mxu0 0.0
        %2303 = vmatmul.mubr.f32.gmra.mrb[0].mxu0 %v1849
        %v2304 = vpop.f32.mrb[0].mxu0
        %v2305 = vadd.f32 %v1836, %v2304
        %v2306 = vpop.f32.mrb[0].mxu0
        %2307 = vmatprep.mubr.f32.mxu0 0.0
        %2308 = vmatmul.mubr.f32.gmra.mrb[0].mxu0 %v1852
        %v2309 = vpop.f32.mrb[0].mxu0
        %v2310 = vadd.f32 %v1836, %v2309
        %v2311 = vpop.f32.mrb[0].mxu0
        %2312 = vmatprep.mubr.f32.mxu0 0.0
        %2313 = vmatmul.mubr.f32.gmra.mrb[0].mxu0 %v1855
        %v2314 = vpop.f32.mrb[0].mxu0
        %v2315 = vadd.f32 %v1836, %v2314
        %v2316 = vpop.f32.mrb[0].mxu0
        %2317 = vmatprep.mubr.f32.mxu0 0.0
        %2318 = vmatmul.mubr.f32.gmra.mrb[0].mxu0 %v1858
        %v2319 = vpop.f32.mrb[0].mxu0
        %v2320 = vadd.f32 %v1836, %v2319
        %v2321 = vpop.f32.mrb[0].mxu0
        %2322 = vmatprep.mubr.f32.mxu0 0.0
        %2323 = vmatmul.mubr.f32.gmra.mrb[0].mxu0 %v1861
        %v2324 = vpop.f32.mrb[0].mxu0
        %v2325 = vadd.f32 %v1836, %v2324
        %v2326 = vpop.f32.mrb[0].mxu0
        %2327 = vmatprep.mubr.f32.mxu0 0.0
        %2328 = vmatmul.mubr.f32.gmra.mrb[0].mxu0 %v1864
        %v2329 = vpop.f32.mrb[0].mxu0
        %v2330 = vadd.f32 %v1836, %v2329
        %v2331 = vpop.f32.mrb[0].mxu0
        %2332 = vmatprep.mubr.f32.mxu0 0.0
        %2333 = vmatmul.mubr.f32.gmra.mrb[0].mxu0 %v1867
        %v2334 = vpop.f32.mrb[0].mxu0
        %v2335 = vadd.f32 %v1836, %v2334
        %v2336 = vpop.f32.mrb[0].mxu0
        %2337 = vmatprep.mubr.f32.mxu0 0.0
        %2338 = vmatmul.mubr.f32.gmra.mrb[0].mxu0 %v1870
        %v2339 = vpop.f32.mrb[0].mxu0
        %v2340 = vadd.f32 %v1836, %v2339
        %v2341 = vpop.f32.mrb[0].mxu0
        %2342 = vmatprep.mubr.f32.mxu0 0.0
        %2343 = vmatmul.mubr.f32.gmra.mrb[0].mxu0 %v1873
        %v2344 = vpop.f32.mrb[0].mxu0
        %v2345 = vadd.f32 %v1836, %v2344
        %v2346 = vpop.f32.mrb[0].mxu0
        %2347 = vmatprep.mubr.f32.mxu0 0.0
        %2348 = vmatmul.mubr.f32.gmra.mrb[0].mxu0 %v1876
        %v2349 = vpop.f32.mrb[0].mxu0
        %v2350 = vadd.f32 %v1836, %v2349
        %v2351 = vpop.f32.mrb[0].mxu0
        %2352 = vmatprep.mubr.f32.mxu0 0.0
        %2353 = vmatmul.mubr.f32.gmra.mrb[0].mxu0 %v1879
        %v2354 = vpop.f32.mrb[0].mxu0
        %v2355 = vadd.f32 %v1836, %v2354
        %v2356 = vpop.f32.mrb[0].mxu0
        %2357 = vmatprep.mubr.f32.mxu0 0.0
        %2358 = vmatmul.mubr.f32.gmra.mrb[0].mxu0 %v1882
        %v2359 = vpop.f32.mrb[0].mxu0
        %v2360 = vadd.f32 %v1836, %v2359
        %v2361 = vpop.f32.mrb[0].mxu0
        %2362 = vmatprep.mubr.f32.mxu0 0.0
        %2363 = vmatmul.mubr.f32.gmra.mrb[0].mxu0 %v1885
        %v2364 = vpop.f32.mrb[0].mxu0
        %v2365 = vadd.f32 %v1836, %v2364
        %v2366 = vpop.f32.mrb[0].mxu0
        %2367 = vmatprep.mubr.f32.mxu0 0.0
        %2368 = vmatmul.mubr.f32.gmra.mrb[0].mxu0 %v1888
        %v2369 = vpop.f32.mrb[0].mxu0
        %v2370 = vadd.f32 %v1836, %v2369
        %v2371 = vpop.f32.mrb[0].mxu0
        %2372 = vmatprep.mubr.f32.mxu0 0.0
        %2373 = vmatmul.mubr.f32.gmra.mrb[0].mxu0 %v1891
        %v2374 = vpop.f32.mrb[0].mxu0
        %v2375 = vadd.f32 %v1836, %v2374
        %v2376 = vpop.f32.mrb[0].mxu0
        %2377 = vmatprep.mubr.f32.mxu0 0.0
        %2378 = vmatmul.mubr.f32.gmra.mrb[0].mxu0 %v1894
        %v2379 = vpop.f32.mrb[0].mxu0
        %v2380 = vadd.f32 %v1836, %v2379
        %v2381 = vpop.f32.mrb[0].mxu0
        %2382 = vmatprep.mubr.f32.mxu0 0.0
        %2383 = vmatmul.mubr.f32.gmra.mrb[0].mxu0 %v1897
        %v2384 = vpop.f32.mrb[0].mxu0
        %v2385 = vadd.f32 %v1836, %v2384
        %v2386 = vpop.f32.mrb[0].mxu0
        %2387 = vmatprep.mubr.f32.mxu0 0.0
        %2388 = vmatmul.mubr.f32.gmra.mrb[0].mxu0 %v1900
        %v2389 = vpop.f32.mrb[0].mxu0
        %v2390 = vadd.f32 %v1836, %v2389
        %v2391 = vpop.f32.mrb[0].mxu0
        %2392 = vmatprep.mubr.f32.mxu0 0.0
        %2393 = vmatmul.mubr.f32.gmra.mrb[0].mxu0 %v1903
        %v2394 = vpop.f32.mrb[0].mxu0
        %v2395 = vadd.f32 %v1836, %v2394
        %v2396 = vpop.f32.mrb[0].mxu0
        %2397 = vmatprep.mubr.f32.mxu0 0.0
        %2398 = vmatmul.mubr.f32.gmra.mrb[0].mxu0 %v1906
        %v2399 = vpop.f32.mrb[0].mxu0
        %v2400 = vadd.f32 %v1836, %v2399
        %v2401 = vpop.f32.mrb[0].mxu0
        %2402 = vmatprep.mubr.f32.mxu0 0.0
        %2403 = vmatmul.mubr.f32.gmra.mrb[0].mxu0 %v1909
        %v2404 = vpop.f32.mrb[0].mxu0
        %v2405 = vadd.f32 %v1836, %v2404
        %v2406 = vpop.f32.mrb[0].mxu0
        %2407 = vmatprep.mubr.f32.mxu0 0.0
        %2408 = vmatmul.mubr.f32.gmra.mrb[0].mxu0 %v1912
        %v2409 = vpop.f32.mrb[0].mxu0
        %v2410 = vadd.f32 %v1836, %v2409
        %v2411 = vpop.f32.mrb[0].mxu0
        %2412 = vmatprep.mubr.f32.mxu0 0.0
        %2413 = vmatmul.mubr.f32.gmra.mrb[0].mxu0 %v1915
        %v2414 = vpop.f32.mrb[0].mxu0
        %v2415 = vadd.f32 %v1836, %v2414
        %v2416 = vpop.f32.mrb[0].mxu0
        %2417 = vmatprep.mubr.f32.mxu0 0.0
        %2418 = vmatmul.mubr.f32.gmra.mrb[0].mxu0 %v1918
        %v2419 = vpop.f32.mrb[0].mxu0
        %v2420 = vadd.f32 %v1836, %v2419
        %v2421 = vpop.f32.mrb[0].mxu0
        %2422 = vmatprep.mubr.f32.mxu0 0.0
        %2423 = vmatmul.mubr.f32.gmra.mrb[0].mxu0 %v1921
        %v2424 = vpop.f32.mrb[0].mxu0
        %v2425 = vadd.f32 %v1836, %v2424
        %v2426 = vpop.f32.mrb[0].mxu0
        %2427 = vmatprep.mubr.f32.mxu0 0.0
        %2428 = vmatmul.mubr.f32.gmra.mrb[0].mxu0 %v1924
        %v2429 = vpop.f32.mrb[0].mxu0
        %v2430 = vadd.f32 %v1836, %v2429
        %v2431 = vpop.f32.mrb[0].mxu0
        %2432 = vmatprep.mubr.f32.mxu0 0.0
        %2433 = vmatmul.mubr.f32.gmra.mrb[0].mxu0 %v1927
        %v2434 = vpop.f32.mrb[0].mxu0
        %v2435 = vadd.f32 %v1836, %v2434
        %v2436 = vpop.f32.mrb[0].mxu0
        %2437 = vmatprep.mubr.f32.mxu0 0.0
        %2438 = vmatmul.mubr.f32.gmra.mrb[0].mxu0 %v1930
        %v2439 = vpop.f32.mrb[0].mxu0
        %v2440 = vadd.f32 %v1836, %v2439
        %v2441 = vpop.f32.mrb[0].mxu0
        %2442 = vmatprep.mubr.f32.mxu0 0.0
        %2443 = vmatmul.mubr.f32.gmra.mrb[0].mxu0 %v1933
        %v2444 = vpop.f32.mrb[0].mxu0
        %v2445 = vadd.f32 %v1836, %v2444
        %v2446 = vpop.f32.mrb[0].mxu0
        %2447 = vmatprep.mubr.f32.mxu0 0.0
        %2448 = vmatmul.mubr.f32.gmra.mrb[0].mxu0 %v1936
        %v2449 = vpop.f32.mrb[0].mxu0
        %v2450 = vadd.f32 %v1836, %v2449
        %v2451 = vpop.f32.mrb[0].mxu0
        %2452 = vmatprep.mubr.f32.mxu0 0.0
        %2453 = vmatmul.mubr.f32.gmra.mrb[0].mxu0 %v1939
        %v2454 = vpop.f32.mrb[0].mxu0
        %v2455 = vadd.f32 %v1836, %v2454
        %v2456 = vpop.f32.mrb[0].mxu0
        %2457 = vmatprep.mubr.f32.mxu0 0.0
        %2458 = vmatmul.mubr.f32.gmra.mrb[0].mxu0 %v1942
        %v2459 = vpop.f32.mrb[0].mxu0
        %v2460 = vadd.f32 %v1836, %v2459
        %v2461 = vpop.f32.mrb[0].mxu0
        %2462 = vmatprep.mubr.f32.mxu0 0.0
        %2463 = vmatmul.mubr.f32.gmra.mrb[0].mxu0 %v1945
        %v2464 = vpop.f32.mrb[0].mxu0
        %v2465 = vadd.f32 %v1836, %v2464
        %v2466 = vpop.f32.mrb[0].mxu0
        %2467 = vmatprep.mubr.f32.mxu0 0.0
        %2468 = vmatmul.mubr.f32.gmra.mrb[0].mxu0 %v1948
        %v2469 = vpop.f32.mrb[0].mxu0
        %v2470 = vadd.f32 %v1836, %v2469
        %v2471 = vpop.f32.mrb[0].mxu0
        %2472 = vmatprep.mubr.f32.mxu0 0.0
        %2473 = vmatmul.mubr.f32.gmra.mrb[0].mxu0 %v1951
        %v2474 = vpop.f32.mrb[0].mxu0
        %v2475 = vadd.f32 %v1836, %v2474
        %v2476 = vpop.f32.mrb[0].mxu0
        %2477 = vmatprep.mubr.f32.mxu0 0.0
        %2478 = vmatmul.mubr.f32.gmra.mrb[0].mxu0 %v1954
        %v2479 = vpop.f32.mrb[0].mxu0
        %v2480 = vadd.f32 %v1836, %v2479
        %v2481 = vpop.f32.mrb[0].mxu0
        %2482 = vmatprep.mubr.f32.mxu0 0.0
        %2483 = vmatmul.mubr.f32.gmra.mrb[0].mxu0 %v1957
        %v2484 = vpop.f32.mrb[0].mxu0
        %v2485 = vadd.f32 %v1836, %v2484
        %v2486 = vpop.f32.mrb[0].mxu0
        %2487 = vmatprep.mubr.f32.mxu0 0.0
        %2488 = vmatmul.mubr.f32.gmra.mrb[0].mxu0 %v1960
        %v2489 = vpop.f32.mrb[0].mxu0
        %v2490 = vadd.f32 %v1836, %v2489
        %v2491 = vpop.f32.mrb[0].mxu0
        %2492 = vmatprep.mubr.f32.mxu0 0.0
        %2493 = vmatmul.mubr.f32.gmra.mrb[0].mxu0 %v1963
        %v2494 = vpop.f32.mrb[0].mxu0
        %v2495 = vadd.f32 %v1836, %v2494
        %v2496 = vpop.f32.mrb[0].mxu0
        %2497 = vmatprep.mubr.f32.mxu0 0.0
        %2498 = vmatmul.mubr.f32.gmra.mrb[0].mxu0 %v1966
        %v2499 = vpop.f32.mrb[0].mxu0
        %v2500 = vadd.f32 %v1836, %v2499
        %v2501 = vpop.f32.mrb[0].mxu0
        %2502 = vmatprep.mubr.f32.mxu0 0.0
        %2503 = vmatmul.mubr.f32.gmra.mrb[0].mxu0 %v1969
        %v2504 = vpop.f32.mrb[0].mxu0
        %v2505 = vadd.f32 %v1836, %v2504
        %v2506 = vpop.f32.mrb[0].mxu0
        %2507 = vmatprep.mubr.f32.mxu0 0.0
        %2508 = vmatmul.mubr.f32.gmra.mrb[0].mxu0 %v1972
        %v2509 = vpop.f32.mrb[0].mxu0
        %v2510 = vadd.f32 %v1836, %v2509
        %v2511 = vpop.f32.mrb[0].mxu0
        %2512 = vmatprep.mubr.f32.mxu0 0.0
        %2513 = vmatmul.mubr.f32.gmra.mrb[0].mxu0 %v1975
        %v2514 = vpop.f32.mrb[0].mxu0
        %v2515 = vadd.f32 %v1836, %v2514
        %v2516 = vpop.f32.mrb[0].mxu0
        %2517 = vmatprep.mubr.f32.mxu0 0.0
        %2518 = vmatmul.mubr.f32.gmra.mrb[0].mxu0 %v1978
        %v2519 = vpop.f32.mrb[0].mxu0
        %v2520 = vadd.f32 %v1836, %v2519
        %v2521 = vpop.f32.mrb[0].mxu0
        %2522 = vmatprep.mubr.f32.mxu0 0.0
        %2523 = vmatmul.mubr.f32.gmra.mrb[0].mxu0 %v1981
        %v2524 = vpop.f32.mrb[0].mxu0
        %v2525 = vadd.f32 %v1836, %v2524
        %v2526 = vpop.f32.mrb[0].mxu0
        %2527 = vmatprep.mubr.f32.mxu0 0.0
        %2528 = vmatmul.mubr.f32.gmra.mrb[0].mxu0 %v1984
        %v2529 = vpop.f32.mrb[0].mxu0
        %v2530 = vadd.f32 %v1836, %v2529
        %v2531 = vpop.f32.mrb[0].mxu0
        %2532 = vmatprep.mubr.f32.mxu0 0.0
        %2533 = vmatmul.mubr.f32.gmra.mrb[0].mxu0 %v1987
        %v2534 = vpop.f32.mrb[0].mxu0
        %v2535 = vadd.f32 %v1836, %v2534
        %v2536 = vpop.f32.mrb[0].mxu0
        %2537 = vmatprep.mubr.f32.mxu0 0.0
        %2538 = vmatmul.mubr.f32.gmra.mrb[0].mxu0 %v1990
        %v2539 = vpop.f32.mrb[0].mxu0
        %v2540 = vadd.f32 %v1836, %v2539
        %v2541 = vpop.f32.mrb[0].mxu0
        %2542 = vmatprep.mubr.f32.mxu0 0.0
        %2543 = vmatmul.mubr.f32.gmra.mrb[0].mxu0 %v1993
        %v2544 = vpop.f32.mrb[0].mxu0
        %v2545 = vadd.f32 %v1836, %v2544
        %v2546 = vpop.f32.mrb[0].mxu0
        %2547 = vmatprep.mubr.f32.mxu0 0.0
        %2548 = vmatmul.mubr.f32.gmra.mrb[0].mxu0 %v1996
        %v2549 = vpop.f32.mrb[0].mxu0
        %v2550 = vadd.f32 %v1836, %v2549
        %v2551 = vpop.f32.mrb[0].mxu0
        %2552 = vmatprep.mubr.f32.mxu0 0.0
        %2553 = vmatmul.mubr.f32.gmra.mrb[0].mxu0 %v1999
        %v2554 = vpop.f32.mrb[0].mxu0
        %v2555 = vadd.f32 %v1836, %v2554
        %v2556 = vpop.f32.mrb[0].mxu0
        %2557 = vmatprep.mubr.f32.mxu0 0.0
        %2558 = vmatmul.mubr.f32.gmra.mrb[0].mxu0 %v2002
        %v2559 = vpop.f32.mrb[0].mxu0
        %v2560 = vadd.f32 %v1836, %v2559
        %v2561 = vpop.f32.mrb[0].mxu0
        %2562 = vmatprep.mubr.f32.mxu0 0.0
        %2563 = vmatmul.mubr.f32.gmra.mrb[0].mxu0 %v2005
        %v2564 = vpop.f32.mrb[0].mxu0
        %v2565 = vadd.f32 %v1836, %v2564
        %v2566 = vpop.f32.mrb[0].mxu0
        %2567 = vmatprep.mubr.f32.mxu0 0.0
        %2568 = vmatmul.mubr.f32.gmra.mrb[0].mxu0 %v2008
        %v2569 = vpop.f32.mrb[0].mxu0
        %v2570 = vadd.f32 %v1836, %v2569
        %v2571 = vpop.f32.mrb[0].mxu0
        %2572 = vmatprep.mubr.f32.mxu0 0.0
        %2573 = vmatmul.mubr.f32.gmra.mrb[0].mxu0 %v2011
        %v2574 = vpop.f32.mrb[0].mxu0
        %v2575 = vadd.f32 %v1836, %v2574
        %v2576 = vpop.f32.mrb[0].mxu0
        %2577 = vmatprep.mubr.f32.mxu0 0.0
        %2578 = vmatmul.mubr.f32.gmra.mrb[0].mxu0 %v2014
        %v2579 = vpop.f32.mrb[0].mxu0
        %v2580 = vadd.f32 %v1836, %v2579
        %v2581 = vpop.f32.mrb[0].mxu0
        %2582 = vmatprep.mubr.f32.mxu0 0.0
        %2583 = vmatmul.mubr.f32.gmra.mrb[0].mxu0 %v2017
        %v2584 = vpop.f32.mrb[0].mxu0
        %v2585 = vadd.f32 %v1836, %v2584
        %v2586 = vpop.f32.mrb[0].mxu0
        %2587 = vmatprep.mubr.f32.mxu0 0.0
        %2588 = vmatmul.mubr.f32.gmra.mrb[0].mxu0 %v2020
        %v2589 = vpop.f32.mrb[0].mxu0
        %v2590 = vadd.f32 %v1836, %v2589
        %v2591 = vpop.f32.mrb[0].mxu0
        %2592 = vmatprep.mubr.f32.mxu0 0.0
        %2593 = vmatmul.mubr.f32.gmra.mrb[0].mxu0 %v2023
        %v2594 = vpop.f32.mrb[0].mxu0
        %v2595 = vadd.f32 %v1836, %v2594
        %v2596 = vpop.f32.mrb[0].mxu0
        %2597 = vmatprep.mubr.f32.mxu0 0.0
        %2598 = vmatmul.mubr.f32.gmra.mrb[0].mxu0 %v2026
        %v2599 = vpop.f32.mrb[0].mxu0
        %v2600 = vadd.f32 %v1836, %v2599
        %v2601 = vpop.f32.mrb[0].mxu0
        %2602 = vmatprep.mubr.f32.mxu0 0.0
        %2603 = vmatmul.mubr.f32.gmra.mrb[0].mxu0 %v2029
        %v2604 = vpop.f32.mrb[0].mxu0
        %v2605 = vadd.f32 %v1836, %v2604
        %v2606 = vpop.f32.mrb[0].mxu0
        %2607 = vmatprep.mubr.f32.mxu0 0.0
        %2608 = vmatmul.mubr.f32.gmra.mrb[0].mxu0 %v2032
        %v2609 = vpop.f32.mrb[0].mxu0
        %v2610 = vadd.f32 %v1836, %v2609
        %v2611 = vpop.f32.mrb[0].mxu0
        %2612 = vmatprep.mubr.f32.mxu0 0.0
        %2613 = vmatmul.mubr.f32.gmra.mrb[0].mxu0 %v2035
        %v2614 = vpop.f32.mrb[0].mxu0
        %v2615 = vadd.f32 %v1836, %v2614
        %v2616 = vpop.f32.mrb[0].mxu0
        %2617 = vmatprep.mubr.f32.mxu0 0.0
        %2618 = vmatmul.mubr.f32.gmra.mrb[0].mxu0 %v2038
        %v2619 = vpop.f32.mrb[0].mxu0
        %v2620 = vadd.f32 %v1836, %v2619
        %v2621 = vpop.f32.mrb[0].mxu0
        %2622 = vmatprep.mubr.f32.mxu0 0.0
        %2623 = vmatmul.mubr.f32.gmra.mrb[0].mxu0 %v2041
        %v2624 = vpop.f32.mrb[0].mxu0
        %v2625 = vadd.f32 %v1836, %v2624
        %v2626 = vpop.f32.mrb[0].mxu0
        %2627 = vmatprep.mubr.f32.mxu0 0.0
        %2628 = vmatmul.mubr.f32.gmra.mrb[0].mxu0 %v2044
        %v2629 = vpop.f32.mrb[0].mxu0
        %v2630 = vadd.f32 %v1836, %v2629
        %v2631 = vpop.f32.mrb[0].mxu0
        %2632 = vmatprep.mubr.f32.mxu0 0.0
        %2633 = vmatmul.mubr.f32.gmra.mrb[0].mxu0 %v2047
        %v2634 = vpop.f32.mrb[0].mxu0
        %v2635 = vadd.f32 %v1836, %v2634
        %v2636 = vpop.f32.mrb[0].mxu0
        %2637 = vmatprep.mubr.f32.mxu0 0.0
        %2638 = vmatmul.mubr.f32.gmra.mrb[0].mxu0 %v2050
        %v2639 = vpop.f32.mrb[0].mxu0
        %v2640 = vadd.f32 %v1836, %v2639
        %v2641 = vpop.f32.mrb[0].mxu0
        %2642 = vmatprep.mubr.f32.mxu0 0.0
        %2643 = vmatmul.mubr.f32.gmra.mrb[0].mxu0 %v2053
        %v2644 = vpop.f32.mrb[0].mxu0
        %v2645 = vadd.f32 %v1836, %v2644
        %v2646 = vpop.f32.mrb[0].mxu0
        %2647 = vmatprep.mubr.f32.mxu0 0.0
        %2648 = vmatmul.mubr.f32.gmra.mrb[0].mxu0 %v2056
        %v2649 = vpop.f32.mrb[0].mxu0
        %v2650 = vadd.f32 %v1836, %v2649
        %v2651 = vpop.f32.mrb[0].mxu0
        %2652 = vmatprep.mubr.f32.mxu0 0.0
        %2653 = vmatmul.mubr.f32.gmra.mrb[0].mxu0 %v2059
        %v2654 = vpop.f32.mrb[0].mxu0
        %v2655 = vadd.f32 %v1836, %v2654
        %v2656 = vpop.f32.mrb[0].mxu0
        %2657 = vmatprep.mubr.f32.mxu0 0.0
        %2658 = vmatmul.mubr.f32.gmra.mrb[0].mxu0 %v2062
        %v2659 = vpop.f32.mrb[0].mxu0
        %v2660 = vadd.f32 %v1836, %v2659
        %v2661 = vpop.f32.mrb[0].mxu0
        %2662 = vmatprep.mubr.f32.mxu0 0.0
        %2663 = vmatmul.mubr.f32.gmra.mrb[0].mxu0 %v2065
        %v2664 = vpop.f32.mrb[0].mxu0
        %v2665 = vadd.f32 %v1836, %v2664
        %v2666 = vpop.f32.mrb[0].mxu0
        %2667 = vmatprep.mubr.f32.mxu0 0.0
        %2668 = vmatmul.mubr.f32.gmra.mrb[0].mxu0 %v2068
        %v2669 = vpop.f32.mrb[0].mxu0
        %v2670 = vadd.f32 %v1836, %v2669
        %v2671 = vpop.f32.mrb[0].mxu0
        %2672 = vmatprep.mubr.f32.mxu0 0.0
        %2673 = vmatmul.mubr.f32.gmra.mrb[0].mxu0 %v2071
        %v2674 = vpop.f32.mrb[0].mxu0
        %v2675 = vadd.f32 %v1836, %v2674
        %v2676 = vpop.f32.mrb[0].mxu0
        %2677 = vmatprep.mubr.f32.mxu0 0.0
        %2678 = vmatmul.mubr.f32.gmra.mrb[0].mxu0 %v2074
        %v2679 = vpop.f32.mrb[0].mxu0
        %v2680 = vadd.f32 %v1836, %v2679
        %v2681 = vpop.f32.mrb[0].mxu0
        %2682 = vmatprep.mubr.f32.mxu0 0.0
        %2683 = vmatmul.mubr.f32.gmra.mrb[0].mxu0 %v2077
        %v2684 = vpop.f32.mrb[0].mxu0
        %v2685 = vadd.f32 %v1836, %v2684
        %v2686 = vpop.f32.mrb[0].mxu0
        %2687 = vmatprep.mubr.f32.mxu0 0.0
        %2688 = vmatmul.mubr.f32.gmra.mrb[0].mxu0 %v2080
        %v2689 = vpop.f32.mrb[0].mxu0
        %v2690 = vadd.f32 %v1836, %v2689
        %v2691 = vpop.f32.mrb[0].mxu0
        %2692 = vmatprep.mubr.f32.mxu0 0.0
        %2693 = vmatmul.mubr.f32.gmra.mrb[0].mxu0 %v2083
        %v2694 = vpop.f32.mrb[0].mxu0
        %v2695 = vadd.f32 %v1836, %v2694
        %v2696 = vpop.f32.mrb[0].mxu0
        %2697 = vmatprep.mubr.f32.mxu0 0.0
        %2698 = vmatmul.mubr.f32.gmra.mrb[0].mxu0 %v2086
        %v2699 = vpop.f32.mrb[0].mxu0
        %v2700 = vadd.f32 %v1836, %v2699
        %v2701 = vpop.f32.mrb[0].mxu0
        %2702 = vmatprep.mubr.f32.mxu0 0.0
        %2703 = vmatmul.mubr.f32.gmra.mrb[0].mxu0 %v2089
        %v2704 = vpop.f32.mrb[0].mxu0
        %v2705 = vadd.f32 %v1836, %v2704
        %v2706 = vpop.f32.mrb[0].mxu0
        %2707 = vmatprep.mubr.f32.mxu0 0.0
        %2708 = vmatmul.mubr.f32.gmra.mrb[0].mxu0 %v2092
        %v2709 = vpop.f32.mrb[0].mxu0
        %v2710 = vadd.f32 %v1836, %v2709
        %v2711 = vpop.f32.mrb[0].mxu0
        %2712 = vmatprep.mubr.f32.mxu0 0.0
        %2713 = vmatmul.mubr.f32.gmra.mrb[0].mxu0 %v2095
        %v2714 = vpop.f32.mrb[0].mxu0
        %v2715 = vadd.f32 %v1836, %v2714
        %v2716 = vpop.f32.mrb[0].mxu0
        %2717 = vmatprep.mubr.f32.mxu0 0.0
        %2718 = vmatmul.mubr.f32.gmra.mrb[0].mxu0 %v2098
        %v2719 = vpop.f32.mrb[0].mxu0
        %v2720 = vadd.f32 %v1836, %v2719
        %v2721 = vpop.f32.mrb[0].mxu0
        %2722 = vmatprep.mubr.f32.mxu0 0.0
        %2723 = vmatmul.mubr.f32.gmra.mrb[0].mxu0 %v2101
        %v2724 = vpop.f32.mrb[0].mxu0
        %v2725 = vadd.f32 %v1836, %v2724
        %v2726 = vpop.f32.mrb[0].mxu0
        %2727 = vmatprep.mubr.f32.mxu0 0.0
        %2728 = vmatmul.mubr.f32.gmra.mrb[0].mxu0 %v2104
        %v2729 = vpop.f32.mrb[0].mxu0
        %v2730 = vadd.f32 %v1836, %v2729
        %v2731 = vpop.f32.mrb[0].mxu0
        %2732 = vmatprep.mubr.f32.mxu0 0.0
        %2733 = vmatmul.mubr.f32.gmra.mrb[0].mxu0 %v2107
        %v2734 = vpop.f32.mrb[0].mxu0
        %v2735 = vadd.f32 %v1836, %v2734
        %v2736 = vpop.f32.mrb[0].mxu0
        %2737 = vmatprep.mubr.f32.mxu0 0.0
        %2738 = vmatmul.mubr.f32.gmra.mrb[0].mxu0 %v2110
        %v2739 = vpop.f32.mrb[0].mxu0
        %v2740 = vadd.f32 %v1836, %v2739
        %v2741 = vpop.f32.mrb[0].mxu0
        %2742 = vmatprep.mubr.f32.mxu0 0.0
        %2743 = vmatmul.mubr.f32.gmra.mrb[0].mxu0 %v2113
        %v2744 = vpop.f32.mrb[0].mxu0
        %v2745 = vadd.f32 %v1836, %v2744
        %v2746 = vpop.f32.mrb[0].mxu0
        %2747 = vmatprep.mubr.f32.mxu0 0.0
        %2748 = vmatmul.mubr.f32.gmra.mrb[0].mxu0 %v2116
        %v2749 = vpop.f32.mrb[0].mxu0
        %v2750 = vadd.f32 %v1836, %v2749
        %v2751 = vpop.f32.mrb[0].mxu0
        %2752 = vmatprep.mubr.f32.mxu0 0.0
        %2753 = vmatmul.mubr.f32.gmra.mrb[0].mxu0 %v2119
        %v2754 = vpop.f32.mrb[0].mxu0
        %v2755 = vadd.f32 %v1836, %v2754
        %v2756 = vpop.f32.mrb[0].mxu0
        %2757 = vmatprep.mubr.f32.mxu0 0.0
        %2758 = vmatmul.mubr.f32.gmra.mrb[0].mxu0 %v2122
        %v2759 = vpop.f32.mrb[0].mxu0
        %v2760 = vadd.f32 %v1836, %v2759
        %v2761 = vpop.f32.mrb[0].mxu0
        %2762 = vmatprep.mubr.f32.mxu0 0.0
        %2763 = vmatmul.mubr.f32.gmra.mrb[0].mxu0 %v2125
        %v2764 = vpop.f32.mrb[0].mxu0
        %v2765 = vadd.f32 %v1836, %v2764
        %v2766 = vpop.f32.mrb[0].mxu0
        %2767 = vmatprep.mubr.f32.mxu0 0.0
        %2768 = vmatmul.mubr.f32.gmra.mrb[0].mxu0 %v2128
        %v2769 = vpop.f32.mrb[0].mxu0
        %v2770 = vadd.f32 %v1836, %v2769
        %v2771 = vpop.f32.mrb[0].mxu0
        %2772 = vmatprep.mubr.f32.mxu0 0.0
        %2773 = vmatmul.mubr.f32.gmra.mrb[0].mxu0 %v2131
        %v2774 = vpop.f32.mrb[0].mxu0
        %v2775 = vadd.f32 %v1836, %v2774
        %v2776 = vpop.f32.mrb[0].mxu0
        %2777 = vmatprep.mubr.f32.mxu0 0.0
        %2778 = vmatmul.mubr.f32.gmra.mrb[0].mxu0 %v2134
        %v2779 = vpop.f32.mrb[0].mxu0
        %v2780 = vadd.f32 %v1836, %v2779
        %v2781 = vpop.f32.mrb[0].mxu0
        %2782 = vmatprep.mubr.f32.mxu0 0.0
        %2783 = vmatmul.mubr.f32.gmra.mrb[0].mxu0 %v2137
        %v2784 = vpop.f32.mrb[0].mxu0
        %v2785 = vadd.f32 %v1836, %v2784
        %v2786 = vpop.f32.mrb[0].mxu0
        %2787 = vmatprep.mubr.f32.mxu0 0.0
        %2788 = vmatmul.mubr.f32.gmra.mrb[0].mxu0 %v2140
        %v2789 = vpop.f32.mrb[0].mxu0
        %v2790 = vadd.f32 %v1836, %v2789
        %v2791 = vpop.f32.mrb[0].mxu0
        %2792 = vmatprep.mubr.f32.mxu0 0.0
        %2793 = vmatmul.mubr.f32.gmra.mrb[0].mxu0 %v2143
        %v2794 = vpop.f32.mrb[0].mxu0
        %v2795 = vadd.f32 %v1836, %v2794
        %v2796 = vpop.f32.mrb[0].mxu0
        %2797 = vmatprep.mubr.f32.mxu0 0.0
        %2798 = vmatmul.mubr.f32.gmra.mrb[0].mxu0 %v2146
        %v2799 = vpop.f32.mrb[0].mxu0
        %v2800 = vadd.f32 %v1836, %v2799
        %v2801 = vpop.f32.mrb[0].mxu0
        %2802 = vmatprep.mubr.f32.mxu0 0.0
        %2803 = vmatmul.mubr.f32.gmra.mrb[0].mxu0 %v2149
        %v2804 = vpop.f32.mrb[0].mxu0
        %v2805 = vadd.f32 %v1836, %v2804
        %v2806 = vpop.f32.mrb[0].mxu0
        %2807 = vmatprep.mubr.f32.mxu0 0.0
        %2808 = vmatmul.mubr.f32.gmra.mrb[0].mxu0 %v2152
        %v2809 = vpop.f32.mrb[0].mxu0
        %v2810 = vadd.f32 %v1836, %v2809
        %v2811 = vpop.f32.mrb[0].mxu0
        %2812 = vmatprep.mubr.f32.mxu0 0.0
        %2813 = vmatmul.mubr.f32.gmra.mrb[0].mxu0 %v2155
        %v2814 = vpop.f32.mrb[0].mxu0
        %v2815 = vadd.f32 %v1836, %v2814
        %v2816 = vpop.f32.mrb[0].mxu0
        %2817 = vmatprep.mubr.f32.mxu0 0.0
        %2818 = vmatmul.mubr.f32.gmra.mrb[0].mxu0 %v2158
        %v2819 = vpop.f32.mrb[0].mxu0
        %v2820 = vadd.f32 %v1836, %v2819
        %v2821 = vpop.f32.mrb[0].mxu0
        %2822 = vmatprep.mubr.f32.mxu0 0.0
        %2823 = vmatmul.mubr.f32.gmra.mrb[0].mxu0 %v2161
        %v2824 = vpop.f32.mrb[0].mxu0
        %v2825 = vadd.f32 %v1836, %v2824
        %v2826 = vpop.f32.mrb[0].mxu0
        %2827 = vmatprep.mubr.f32.mxu0 0.0
        %2828 = vmatmul.mubr.f32.gmra.mrb[0].mxu0 %v2164
        %v2829 = vpop.f32.mrb[0].mxu0
        %v2830 = vadd.f32 %v1836, %v2829
        %v2831 = vpop.f32.mrb[0].mxu0
        %2832 = vmatprep.mubr.f32.mxu0 0.0
        %2833 = vmatmul.mubr.f32.gmra.mrb[0].mxu0 %v2167
        %v2834 = vpop.f32.mrb[0].mxu0
        %v2835 = vadd.f32 %v1836, %v2834
        %v2836 = vpop.f32.mrb[0].mxu0
        %2837 = vmatprep.mubr.f32.mxu0 0.0
        %2838 = vmatmul.mubr.f32.gmra.mrb[0].mxu0 %v2170
        %v2839 = vpop.f32.mrb[0].mxu0
        %v2840 = vadd.f32 %v1836, %v2839
        %v2841 = vpop.f32.mrb[0].mxu0
        %2842 = vmatprep.mubr.f32.mxu0 0.0
        %2843 = vmatmul.mubr.f32.gmra.mrb[0].mxu0 %v2173
        %v2844 = vpop.f32.mrb[0].mxu0
        %v2845 = vadd.f32 %v1836, %v2844
        %v2846 = vpop.f32.mrb[0].mxu0
        %2847 = vmatprep.mubr.f32.mxu0 0.0
        %2848 = vmatmul.mubr.f32.gmra.mrb[0].mxu0 %v2176
        %v2849 = vpop.f32.mrb[0].mxu0
        %v2850 = vadd.f32 %v1836, %v2849
        %v2851 = vpop.f32.mrb[0].mxu0
        %2852 = vmatprep.mubr.f32.mxu0 0.0
        %2853 = vmatmul.mubr.f32.gmra.mrb[0].mxu0 %v2179
        %v2854 = vpop.f32.mrb[0].mxu0
        %v2855 = vadd.f32 %v1836, %v2854
        %v2856 = vpop.f32.mrb[0].mxu0
        %2857 = vmatprep.mubr.f32.mxu0 0.0
        %2858 = vmatmul.mubr.f32.gmra.mrb[0].mxu0 %v2182
        %v2859 = vpop.f32.mrb[0].mxu0
        %v2860 = vadd.f32 %v1836, %v2859
        %v2861 = vpop.f32.mrb[0].mxu0
        %2862 = vmatprep.mubr.f32.mxu0 0.0
        %2863 = vmatmul.mubr.f32.gmra.mrb[0].mxu0 %v2185
        %v2864 = vpop.f32.mrb[0].mxu0
        %v2865 = vadd.f32 %v1836, %v2864
        %v2866 = vpop.f32.mrb[0].mxu0
        %2867 = vmatprep.mubr.f32.mxu0 0.0
        %2868 = vmatmul.mubr.f32.gmra.mrb[0].mxu0 %v2188
        %v2869 = vpop.f32.mrb[0].mxu0
        %v2870 = vadd.f32 %v1836, %v2869
        %v2871 = vpop.f32.mrb[0].mxu0
        %2872 = vmatprep.mubr.f32.mxu0 0.0
        %2873 = vmatmul.mubr.f32.gmra.mrb[0].mxu0 %v2191
        %v2874 = vpop.f32.mrb[0].mxu0
        %v2875 = vadd.f32 %v1836, %v2874
        %v2876 = vpop.f32.mrb[0].mxu0
        %2877 = vmatprep.mubr.f32.mxu0 0.0
        %2878 = vmatmul.mubr.f32.gmra.mrb[0].mxu0 %v2194
        %v2879 = vpop.f32.mrb[0].mxu0
        %v2880 = vadd.f32 %v1836, %v2879
        %v2881 = vpop.f32.mrb[0].mxu0
        %2882 = vmatprep.mubr.f32.mxu0 0.0
        %2883 = vmatmul.mubr.f32.gmra.mrb[0].mxu0 %v2197
        %v2884 = vpop.f32.mrb[0].mxu0
        %v2885 = vadd.f32 %v1836, %v2884
        %v2886 = vpop.f32.mrb[0].mxu0
        %2887 = vmatprep.mubr.f32.mxu0 0.0
        %2888 = vmatmul.mubr.f32.gmra.mrb[0].mxu0 %v2200
        %v2889 = vpop.f32.mrb[0].mxu0
        %v2890 = vadd.f32 %v1836, %v2889
        %v2891 = vpop.f32.mrb[0].mxu0
        %2892 = vmatprep.mubr.f32.mxu0 0.0
        %2893 = vmatmul.mubr.f32.gmra.mrb[0].mxu0 %v2203
        %v2894 = vpop.f32.mrb[0].mxu0
        %v2895 = vadd.f32 %v1836, %v2894
        %v2896 = vpop.f32.mrb[0].mxu0
        %2897 = vmatprep.mubr.f32.mxu0 0.0
        %2898 = vmatmul.mubr.f32.gmra.mrb[0].mxu0 %v2206
        %v2899 = vpop.f32.mrb[0].mxu0
        %v2900 = vadd.f32 %v1836, %v2899
        %v2901 = vpop.f32.mrb[0].mxu0
        %2902 = vmatprep.mubr.f32.mxu0 0.0
        %2903 = vmatmul.mubr.f32.gmra.mrb[0].mxu0 %v2209
        %v2904 = vpop.f32.mrb[0].mxu0
        %v2905 = vadd.f32 %v1836, %v2904
        %v2906 = vpop.f32.mrb[0].mxu0
        %2907 = vmatprep.mubr.f32.mxu0 0.0
        %2908 = vmatmul.mubr.f32.gmra.mrb[0].mxu0 %v2212
        %v2909 = vpop.f32.mrb[0].mxu0
        %v2910 = vadd.f32 %v1836, %v2909
        %v2911 = vpop.f32.mrb[0].mxu0
        %2912 = vmatprep.mubr.f32.mxu0 0.0
        %2913 = vmatmul.mubr.f32.gmra.mrb[0].mxu0 %v2215
        %v2914 = vpop.f32.mrb[0].mxu0
        %v2915 = vadd.f32 %v1836, %v2914
        %v2916 = vpop.f32.mrb[0].mxu0
        %2917 = vmatprep.mubr.f32.mxu0 0.0
        %2918 = vmatmul.mubr.f32.gmra.mrb[0].mxu0 %v2218
        %v2919 = vpop.f32.mrb[0].mxu0
        %v2920 = vadd.f32 %v1836, %v2919
        %v2921 = vpop.f32.mrb[0].mxu0
        %2922 = vmatprep.mubr.f32.mxu0 0.0
        %2923 = vmatmul.mubr.f32.gmra.mrb[0].mxu0 %v2221
        %v2924 = vpop.f32.mrb[0].mxu0
        %v2925 = vadd.f32 %v1836, %v2924
        %v2926 = vpop.f32.mrb[0].mxu0
        %2927 = vdwg.mxu0
        %v2928 = vmax.f32 %v2290, 0.0
        %v2929 = vmax.f32 %v2295, 0.0
        %v2930 = vmax.f32 %v2300, 0.0
        %v2931 = vmax.f32 %v2305, 0.0
        %v2932 = vmax.f32 %v2310, 0.0
        %v2933 = vmax.f32 %v2315, 0.0
        %v2934 = vmax.f32 %v2320, 0.0
        %v2935 = vmax.f32 %v2325, 0.0
        %v2936 = vmax.f32 %v2330, 0.0
        %v2937 = vmax.f32 %v2335, 0.0
        %v2938 = vmax.f32 %v2340, 0.0
        %v2939 = vmax.f32 %v2345, 0.0
        %v2940 = vmax.f32 %v2350, 0.0
        %v2941 = vmax.f32 %v2355, 0.0
        %v2942 = vmax.f32 %v2360, 0.0
        %v2943 = vmax.f32 %v2365, 0.0
        %v2944 = vmax.f32 %v2370, 0.0
        %v2945 = vmax.f32 %v2375, 0.0
        %v2946 = vmax.f32 %v2380, 0.0
        %v2947 = vmax.f32 %v2385, 0.0
        %v2948 = vmax.f32 %v2390, 0.0
        %v2949 = vmax.f32 %v2395, 0.0
        %v2950 = vmax.f32 %v2400, 0.0
        %v2951 = vmax.f32 %v2405, 0.0
        %v2952 = vmax.f32 %v2410, 0.0
        %v2953 = vmax.f32 %v2415, 0.0
        %v2954 = vmax.f32 %v2420, 0.0
        %v2955 = vmax.f32 %v2425, 0.0
        %v2956 = vmax.f32 %v2430, 0.0
        %v2957 = vmax.f32 %v2435, 0.0
        %v2958 = vmax.f32 %v2440, 0.0
        %v2959 = vmax.f32 %v2445, 0.0
        %v2960 = vmax.f32 %v2450, 0.0
        %v2961 = vmax.f32 %v2455, 0.0
        %v2962 = vmax.f32 %v2460, 0.0
        %v2963 = vmax.f32 %v2465, 0.0
        %v2964 = vmax.f32 %v2470, 0.0
        %v2965 = vmax.f32 %v2475, 0.0
        %v2966 = vmax.f32 %v2480, 0.0
        %v2967 = vmax.f32 %v2485, 0.0
        %v2968 = vmax.f32 %v2490, 0.0
        %v2969 = vmax.f32 %v2495, 0.0
        %v2970 = vmax.f32 %v2500, 0.0
        %v2971 = vmax.f32 %v2505, 0.0
        %v2972 = vmax.f32 %v2510, 0.0
        %v2973 = vmax.f32 %v2515, 0.0
        %v2974 = vmax.f32 %v2520, 0.0
        %v2975 = vmax.f32 %v2525, 0.0
        %v2976 = vmax.f32 %v2530, 0.0
        %v2977 = vmax.f32 %v2535, 0.0
        %v2978 = vmax.f32 %v2540, 0.0
        %v2979 = vmax.f32 %v2545, 0.0
        %v2980 = vmax.f32 %v2550, 0.0
        %v2981 = vmax.f32 %v2555, 0.0
        %v2982 = vmax.f32 %v2560, 0.0
        %v2983 = vmax.f32 %v2565, 0.0
        %v2984 = vmax.f32 %v2570, 0.0
        %v2985 = vmax.f32 %v2575, 0.0
        %v2986 = vmax.f32 %v2580, 0.0
        %v2987 = vmax.f32 %v2585, 0.0
        %v2988 = vmax.f32 %v2590, 0.0
        %v2989 = vmax.f32 %v2595, 0.0
        %v2990 = vmax.f32 %v2600, 0.0
        %v2991 = vmax.f32 %v2605, 0.0
        %v2992 = vmax.f32 %v2610, 0.0
        %v2993 = vmax.f32 %v2615, 0.0
        %v2994 = vmax.f32 %v2620, 0.0
        %v2995 = vmax.f32 %v2625, 0.0
        %v2996 = vmax.f32 %v2630, 0.0
        %v2997 = vmax.f32 %v2635, 0.0
        %v2998 = vmax.f32 %v2640, 0.0
        %v2999 = vmax.f32 %v2645, 0.0
        %v3000 = vmax.f32 %v2650, 0.0
        %v3001 = vmax.f32 %v2655, 0.0
        %v3002 = vmax.f32 %v2660, 0.0
        %v3003 = vmax.f32 %v2665, 0.0
        %v3004 = vmax.f32 %v2670, 0.0
        %v3005 = vmax.f32 %v2675, 0.0
        %v3006 = vmax.f32 %v2680, 0.0
        %v3007 = vmax.f32 %v2685, 0.0
        %v3008 = vmax.f32 %v2690, 0.0
        %v3009 = vmax.f32 %v2695, 0.0
        %v3010 = vmax.f32 %v2700, 0.0
        %v3011 = vmax.f32 %v2705, 0.0
        %v3012 = vmax.f32 %v2710, 0.0
        %v3013 = vmax.f32 %v2715, 0.0
        %v3014 = vmax.f32 %v2720, 0.0
        %v3015 = vmax.f32 %v2725, 0.0
        %v3016 = vmax.f32 %v2730, 0.0
        %v3017 = vmax.f32 %v2735, 0.0
        %v3018 = vmax.f32 %v2740, 0.0
        %v3019 = vmax.f32 %v2745, 0.0
        %v3020 = vmax.f32 %v2750, 0.0
        %v3021 = vmax.f32 %v2755, 0.0
        %v3022 = vmax.f32 %v2760, 0.0
        %v3023 = vmax.f32 %v2765, 0.0
        %v3024 = vmax.f32 %v2770, 0.0
        %v3025 = vmax.f32 %v2775, 0.0
        %v3026 = vmax.f32 %v2780, 0.0
        %v3027 = vmax.f32 %v2785, 0.0
        %v3028 = vmax.f32 %v2790, 0.0
        %v3029 = vmax.f32 %v2795, 0.0
        %v3030 = vmax.f32 %v2800, 0.0
        %v3031 = vmax.f32 %v2805, 0.0
        %v3032 = vmax.f32 %v2810, 0.0
        %v3033 = vmax.f32 %v2815, 0.0
        %v3034 = vmax.f32 %v2820, 0.0
        %v3035 = vmax.f32 %v2825, 0.0
        %v3036 = vmax.f32 %v2830, 0.0
        %v3037 = vmax.f32 %v2835, 0.0
        %v3038 = vmax.f32 %v2840, 0.0
        %v3039 = vmax.f32 %v2845, 0.0
        %v3040 = vmax.f32 %v2850, 0.0
        %v3041 = vmax.f32 %v2855, 0.0
        %v3042 = vmax.f32 %v2860, 0.0
        %v3043 = vmax.f32 %v2865, 0.0
        %v3044 = vmax.f32 %v2870, 0.0
        %v3045 = vmax.f32 %v2875, 0.0
        %v3046 = vmax.f32 %v2880, 0.0
        %v3047 = vmax.f32 %v2885, 0.0
        %v3048 = vmax.f32 %v2890, 0.0
        %v3049 = vmax.f32 %v2895, 0.0
        %v3050 = vmax.f32 %v2900, 0.0
        %v3051 = vmax.f32 %v2905, 0.0
        %v3052 = vmax.f32 %v2910, 0.0
        %v3053 = vmax.f32 %v2915, 0.0
        %v3054 = vmax.f32 %v2920, 0.0
        %v3055 = vmax.f32 %v2925, 0.0
        %v3056 = vld [vmem:[%s6] sm:$0x1]
        %v3057 = vld [vmem:[#allocation2] sm:$0x1]
        %3059 = vset.pattern.permute.xlu0 0
        %3060 = vperm.xlu0 %3059, %v3057
        %v3061 = vpop.permute.xlu0 %3060
        %v3063 = vlaneseq
        %v3064 = vshrl.u32 %v3063, 7
        %v3065 = vsub.s32 0, %v3064
        %v3066 = vrot.slane %v3061, %v3065
        %v3068 = vsel %vm1838, %v3056, 0
        %v3071 = vsel %vm1838, %v2928, 0
        %v3074 = vsel %vm1838, %v2929, 0
        %v3077 = vsel %vm1838, %v2930, 0
        %v3080 = vsel %vm1838, %v2931, 0
        %v3083 = vsel %vm1838, %v2932, 0
        %v3086 = vsel %vm1838, %v2933, 0
        %v3089 = vsel %vm1838, %v2934, 0
        %v3092 = vsel %vm1838, %v2935, 0
        %v3095 = vsel %vm1838, %v2936, 0
        %v3098 = vsel %vm1838, %v2937, 0
        %v3101 = vsel %vm1838, %v2938, 0
        %v3104 = vsel %vm1838, %v2939, 0
        %v3107 = vsel %vm1838, %v2940, 0
        %v3110 = vsel %vm1838, %v2941, 0
        %v3113 = vsel %vm1838, %v2942, 0
        %v3116 = vsel %vm1838, %v2943, 0
        %v3119 = vsel %vm1838, %v2944, 0
        %v3122 = vsel %vm1838, %v2945, 0
        %v3125 = vsel %vm1838, %v2946, 0
        %v3128 = vsel %vm1838, %v2947, 0
        %v3131 = vsel %vm1838, %v2948, 0
        %v3134 = vsel %vm1838, %v2949, 0
        %v3137 = vsel %vm1838, %v2950, 0
        %v3140 = vsel %vm1838, %v2951, 0
        %v3143 = vsel %vm1838, %v2952, 0
        %v3146 = vsel %vm1838, %v2953, 0
        %v3149 = vsel %vm1838, %v2954, 0
        %v3152 = vsel %vm1838, %v2955, 0
        %v3155 = vsel %vm1838, %v2956, 0
        %v3158 = vsel %vm1838, %v2957, 0
        %v3161 = vsel %vm1838, %v2958, 0
        %v3164 = vsel %vm1838, %v2959, 0
        %v3167 = vsel %vm1838, %v2960, 0
        %v3170 = vsel %vm1838, %v2961, 0
        %v3173 = vsel %vm1838, %v2962, 0
        %v3176 = vsel %vm1838, %v2963, 0
        %v3179 = vsel %vm1838, %v2964, 0
        %v3182 = vsel %vm1838, %v2965, 0
        %v3185 = vsel %vm1838, %v2966, 0
        %v3188 = vsel %vm1838, %v2967, 0
        %v3191 = vsel %vm1838, %v2968, 0
        %v3194 = vsel %vm1838, %v2969, 0
        %v3197 = vsel %vm1838, %v2970, 0
        %v3200 = vsel %vm1838, %v2971, 0
        %v3203 = vsel %vm1838, %v2972, 0
        %v3206 = vsel %vm1838, %v2973, 0
        %v3209 = vsel %vm1838, %v2974, 0
        %v3212 = vsel %vm1838, %v2975, 0
        %v3215 = vsel %vm1838, %v2976, 0
        %v3218 = vsel %vm1838, %v2977, 0
        %v3221 = vsel %vm1838, %v2978, 0
        %v3224 = vsel %vm1838, %v2979, 0
        %v3227 = vsel %vm1838, %v2980, 0
        %v3230 = vsel %vm1838, %v2981, 0
        %v3233 = vsel %vm1838, %v2982, 0
        %v3236 = vsel %vm1838, %v2983, 0
        %v3239 = vsel %vm1838, %v2984, 0
        %v3242 = vsel %vm1838, %v2985, 0
        %v3245 = vsel %vm1838, %v2986, 0
        %v3248 = vsel %vm1838, %v2987, 0
        %v3251 = vsel %vm1838, %v2988, 0
        %v3254 = vsel %vm1838, %v2989, 0
        %v3257 = vsel %vm1838, %v2990, 0
        %v3260 = vsel %vm1838, %v2991, 0
        %v3263 = vsel %vm1838, %v2992, 0
        %v3266 = vsel %vm1838, %v2993, 0
        %v3269 = vsel %vm1838, %v2994, 0
        %v3272 = vsel %vm1838, %v2995, 0
        %v3275 = vsel %vm1838, %v2996, 0
        %v3278 = vsel %vm1838, %v2997, 0
        %v3281 = vsel %vm1838, %v2998, 0
        %v3284 = vsel %vm1838, %v2999, 0
        %v3287 = vsel %vm1838, %v3000, 0
        %v3290 = vsel %vm1838, %v3001, 0
        %v3293 = vsel %vm1838, %v3002, 0
        %v3296 = vsel %vm1838, %v3003, 0
        %v3299 = vsel %vm1838, %v3004, 0
        %v3302 = vsel %vm1838, %v3005, 0
        %v3305 = vsel %vm1838, %v3006, 0
        %v3308 = vsel %vm1838, %v3007, 0
        %v3311 = vsel %vm1838, %v3008, 0
        %v3314 = vsel %vm1838, %v3009, 0
        %v3317 = vsel %vm1838, %v3010, 0
        %v3320 = vsel %vm1838, %v3011, 0
        %v3323 = vsel %vm1838, %v3012, 0
        %v3326 = vsel %vm1838, %v3013, 0
        %v3329 = vsel %vm1838, %v3014, 0
        %v3332 = vsel %vm1838, %v3015, 0
        %v3335 = vsel %vm1838, %v3016, 0
        %v3338 = vsel %vm1838, %v3017, 0
        %v3341 = vsel %vm1838, %v3018, 0
        %v3344 = vsel %vm1838, %v3019, 0
        %v3347 = vsel %vm1838, %v3020, 0
        %v3350 = vsel %vm1838, %v3021, 0
        %v3353 = vsel %vm1838, %v3022, 0
        %v3356 = vsel %vm1838, %v3023, 0
        %v3359 = vsel %vm1838, %v3024, 0
        %v3362 = vsel %vm1838, %v3025, 0
        %v3365 = vsel %vm1838, %v3026, 0
        %v3368 = vsel %vm1838, %v3027, 0
        %v3371 = vsel %vm1838, %v3028, 0
        %v3374 = vsel %vm1838, %v3029, 0
        %v3377 = vsel %vm1838, %v3030, 0
        %v3380 = vsel %vm1838, %v3031, 0
        %v3383 = vsel %vm1838, %v3032, 0
        %v3386 = vsel %vm1838, %v3033, 0
        %v3389 = vsel %vm1838, %v3034, 0
        %v3392 = vsel %vm1838, %v3035, 0
        %v3395 = vsel %vm1838, %v3036, 0
        %v3398 = vsel %vm1838, %v3037, 0
        %v3401 = vsel %vm1838, %v3038, 0
        %v3404 = vsel %vm1838, %v3039, 0
        %v3407 = vsel %vm1838, %v3040, 0
        %v3410 = vsel %vm1838, %v3041, 0
        %v3413 = vsel %vm1838, %v3042, 0
        %v3416 = vsel %vm1838, %v3043, 0
        %v3419 = vsel %vm1838, %v3044, 0
        %v3422 = vsel %vm1838, %v3045, 0
        %v3425 = vsel %vm1838, %v3046, 0
        %v3428 = vsel %vm1838, %v3047, 0
        %v3431 = vsel %vm1838, %v3048, 0
        %v3434 = vsel %vm1838, %v3049, 0
        %v3437 = vsel %vm1838, %v3050, 0
        %v3440 = vsel %vm1838, %v3051, 0
        %v3443 = vsel %vm1838, %v3052, 0
        %v3446 = vsel %vm1838, %v3053, 0
        %v3449 = vsel %vm1838, %v3054, 0
        %v3452 = vsel %vm1838, %v3055, 0
        %3454 = vmatprep.subr.mxu0 0.0
        %3455 = vmatpush1.xpose.msra.mxu0 %v3071
        %3456 = vmatprep.subr.mxu0 0.0
        %3457 = vmatpush1.xpose.msra.mxu0 %v3074
        %3458 = vmatprep.subr.mxu0 0.0
        %3459 = vmatpush1.xpose.msra.mxu0 %v3077
        %3460 = vmatprep.subr.mxu0 0.0
        %3461 = vmatpush1.xpose.msra.mxu0 %v3080
        %3462 = vmatprep.subr.mxu0 0.0
        %3463 = vmatpush1.xpose.msra.mxu0 %v3083
        %3464 = vmatprep.subr.mxu0 0.0
        %3465 = vmatpush1.xpose.msra.mxu0 %v3086
        %3466 = vmatprep.subr.mxu0 0.0
        %3467 = vmatpush1.xpose.msra.mxu0 %v3089
        %3468 = vmatprep.subr.mxu0 0.0
        %3469 = vmatpush1.xpose.msra.mxu0 %v3092
        %3470 = vmatprep.subr.mxu0 0.0
        %3471 = vmatpush1.xpose.msra.mxu0 %v3095
        %3472 = vmatprep.subr.mxu0 0.0
        %3473 = vmatpush1.xpose.msra.mxu0 %v3098
        %3474 = vmatprep.subr.mxu0 0.0
        %3475 = vmatpush1.xpose.msra.mxu0 %v3101
        %3476 = vmatprep.subr.mxu0 0.0
        %3477 = vmatpush1.xpose.msra.mxu0 %v3104
        %3478 = vmatprep.subr.mxu0 0.0
        %3479 = vmatpush1.xpose.msra.mxu0 %v3107
        %3480 = vmatprep.subr.mxu0 0.0
        %3481 = vmatpush1.xpose.msra.mxu0 %v3110
        %3482 = vmatprep.subr.mxu0 0.0
        %3483 = vmatpush1.xpose.msra.mxu0 %v3113
        %3484 = vmatprep.subr.mxu0 0.0
        %3485 = vmatpush1.xpose.msra.mxu0 %v3116
        %3486 = vmatprep.subr.mxu0 0.0
        %3487 = vmatpush1.xpose.msra.mxu0 %v3119
        %3488 = vmatprep.subr.mxu0 0.0
        %3489 = vmatpush1.xpose.msra.mxu0 %v3122
        %3490 = vmatprep.subr.mxu0 0.0
        %3491 = vmatpush1.xpose.msra.mxu0 %v3125
        %3492 = vmatprep.subr.mxu0 0.0
        %3493 = vmatpush1.xpose.msra.mxu0 %v3128
        %3494 = vmatprep.subr.mxu0 0.0
        %3495 = vmatpush1.xpose.msra.mxu0 %v3131
        %3496 = vmatprep.subr.mxu0 0.0
        %3497 = vmatpush1.xpose.msra.mxu0 %v3134
        %3498 = vmatprep.subr.mxu0 0.0
        %3499 = vmatpush1.xpose.msra.mxu0 %v3137
        %3500 = vmatprep.subr.mxu0 0.0
        %3501 = vmatpush1.xpose.msra.mxu0 %v3140
        %3502 = vmatprep.subr.mxu0 0.0
        %3503 = vmatpush1.xpose.msra.mxu0 %v3143
        %3504 = vmatprep.subr.mxu0 0.0
        %3505 = vmatpush1.xpose.msra.mxu0 %v3146
        %3506 = vmatprep.subr.mxu0 0.0
        %3507 = vmatpush1.xpose.msra.mxu0 %v3149
        %3508 = vmatprep.subr.mxu0 0.0
        %3509 = vmatpush1.xpose.msra.mxu0 %v3152
        %3510 = vmatprep.subr.mxu0 0.0
        %3511 = vmatpush1.xpose.msra.mxu0 %v3155
        %3512 = vmatprep.subr.mxu0 0.0
        %3513 = vmatpush1.xpose.msra.mxu0 %v3158
        %3514 = vmatprep.subr.mxu0 0.0
        %3515 = vmatpush1.xpose.msra.mxu0 %v3161
        %3516 = vmatprep.subr.mxu0 0.0
        %3517 = vmatpush1.xpose.msra.mxu0 %v3164
        %3518 = vmatprep.mubr.f32.mxu0 0.0
        %3519 = vmatmul.mubr.f32.gmra.mrb[0].mxu0 %v3068
        %v3520 = vpop.f32.mrb[0].mxu0
        %v3521 = vadd.f32 %v3066, %v3520
        %v3522 = vpop.f32.mrb[0].mxu0
        %v3523 = vadd.f32 %v3066, %v3522
        %3524 = vdwg.mxu0
        %3525 = vmatprep.subr.mxu0 0.0
        %3526 = vmatpush1.xpose.msra.mxu0 %v3167
        %3527 = vmatprep.subr.mxu0 0.0
        %3528 = vmatpush1.xpose.msra.mxu0 %v3170
        %3529 = vmatprep.subr.mxu0 0.0
        %3530 = vmatpush1.xpose.msra.mxu0 %v3173
        %3531 = vmatprep.subr.mxu0 0.0
        %3532 = vmatpush1.xpose.msra.mxu0 %v3176
        %3533 = vmatprep.subr.mxu0 0.0
        %3534 = vmatpush1.xpose.msra.mxu0 %v3179
        %3535 = vmatprep.subr.mxu0 0.0
        %3536 = vmatpush1.xpose.msra.mxu0 %v3182
        %3537 = vmatprep.subr.mxu0 0.0
        %3538 = vmatpush1.xpose.msra.mxu0 %v3185
        %3539 = vmatprep.subr.mxu0 0.0
        %3540 = vmatpush1.xpose.msra.mxu0 %v3188
        %3541 = vmatprep.subr.mxu0 0.0
        %3542 = vmatpush1.xpose.msra.mxu0 %v3191
        %3543 = vmatprep.subr.mxu0 0.0
        %3544 = vmatpush1.xpose.msra.mxu0 %v3194
        %3545 = vmatprep.subr.mxu0 0.0
        %3546 = vmatpush1.xpose.msra.mxu0 %v3197
        %3547 = vmatprep.subr.mxu0 0.0
        %3548 = vmatpush1.xpose.msra.mxu0 %v3200
        %3549 = vmatprep.subr.mxu0 0.0
        %3550 = vmatpush1.xpose.msra.mxu0 %v3203
        %3551 = vmatprep.subr.mxu0 0.0
        %3552 = vmatpush1.xpose.msra.mxu0 %v3206
        %3553 = vmatprep.subr.mxu0 0.0
        %3554 = vmatpush1.xpose.msra.mxu0 %v3209
        %3555 = vmatprep.subr.mxu0 0.0
        %3556 = vmatpush1.xpose.msra.mxu0 %v3212
        %3557 = vmatprep.subr.mxu0 0.0
        %3558 = vmatpush1.xpose.msra.mxu0 %v3215
        %3559 = vmatprep.subr.mxu0 0.0
        %3560 = vmatpush1.xpose.msra.mxu0 %v3218
        %3561 = vmatprep.subr.mxu0 0.0
        %3562 = vmatpush1.xpose.msra.mxu0 %v3221
        %3563 = vmatprep.subr.mxu0 0.0
        %3564 = vmatpush1.xpose.msra.mxu0 %v3224
        %3565 = vmatprep.subr.mxu0 0.0
        %3566 = vmatpush1.xpose.msra.mxu0 %v3227
        %3567 = vmatprep.subr.mxu0 0.0
        %3568 = vmatpush1.xpose.msra.mxu0 %v3230
        %3569 = vmatprep.subr.mxu0 0.0
        %3570 = vmatpush1.xpose.msra.mxu0 %v3233
        %3571 = vmatprep.subr.mxu0 0.0
        %3572 = vmatpush1.xpose.msra.mxu0 %v3236
        %3573 = vmatprep.subr.mxu0 0.0
        %3574 = vmatpush1.xpose.msra.mxu0 %v3239
        %3575 = vmatprep.subr.mxu0 0.0
        %3576 = vmatpush1.xpose.msra.mxu0 %v3242
        %3577 = vmatprep.subr.mxu0 0.0
        %3578 = vmatpush1.xpose.msra.mxu0 %v3245
        %3579 = vmatprep.subr.mxu0 0.0
        %3580 = vmatpush1.xpose.msra.mxu0 %v3248
        %3581 = vmatprep.subr.mxu0 0.0
        %3582 = vmatpush1.xpose.msra.mxu0 %v3251
        %3583 = vmatprep.subr.mxu0 0.0
        %3584 = vmatpush1.xpose.msra.mxu0 %v3254
        %3585 = vmatprep.subr.mxu0 0.0
        %3586 = vmatpush1.xpose.msra.mxu0 %v3257
        %3587 = vmatprep.subr.mxu0 0.0
        %3588 = vmatpush1.xpose.msra.mxu0 %v3260
        %3589 = vmatprep.mubr.f32.mxu0 0.0
        %3590 = vmatmul.mubr.f32.gmra.mrb[0].mxu0 %v3068
        %v3591 = vpop.f32.mrb[0].mxu0
        %v3592 = vadd.f32 %v3066, %v3591
        %v3593 = vpop.f32.mrb[0].mxu0
        %v3594 = vadd.f32 %v3066, %v3593
        %3595 = vdwg.mxu0
        %3596 = vmatprep.subr.mxu0 0.0
        %3597 = vmatpush1.xpose.msra.mxu0 %v3263
        %3598 = vmatprep.subr.mxu0 0.0
        %3599 = vmatpush1.xpose.msra.mxu0 %v3266
        %3600 = vmatprep.subr.mxu0 0.0
        %3601 = vmatpush1.xpose.msra.mxu0 %v3269
        %3602 = vmatprep.subr.mxu0 0.0
        %3603 = vmatpush1.xpose.msra.mxu0 %v3272
        %3604 = vmatprep.subr.mxu0 0.0
        %3605 = vmatpush1.xpose.msra.mxu0 %v3275
        %3606 = vmatprep.subr.mxu0 0.0
        %3607 = vmatpush1.xpose.msra.mxu0 %v3278
        %3608 = vmatprep.subr.mxu0 0.0
        %3609 = vmatpush1.xpose.msra.mxu0 %v3281
        %3610 = vmatprep.subr.mxu0 0.0
        %3611 = vmatpush1.xpose.msra.mxu0 %v3284
        %3612 = vmatprep.subr.mxu0 0.0
        %3613 = vmatpush1.xpose.msra.mxu0 %v3287
        %3614 = vmatprep.subr.mxu0 0.0
        %3615 = vmatpush1.xpose.msra.mxu0 %v3290
        %3616 = vmatprep.subr.mxu0 0.0
        %3617 = vmatpush1.xpose.msra.mxu0 %v3293
        %3618 = vmatprep.subr.mxu0 0.0
        %3619 = vmatpush1.xpose.msra.mxu0 %v3296
        %3620 = vmatprep.subr.mxu0 0.0
        %3621 = vmatpush1.xpose.msra.mxu0 %v3299
        %3622 = vmatprep.subr.mxu0 0.0
        %3623 = vmatpush1.xpose.msra.mxu0 %v3302
        %3624 = vmatprep.subr.mxu0 0.0
        %3625 = vmatpush1.xpose.msra.mxu0 %v3305
        %3626 = vmatprep.subr.mxu0 0.0
        %3627 = vmatpush1.xpose.msra.mxu0 %v3308
        %3628 = vmatprep.subr.mxu0 0.0
        %3629 = vmatpush1.xpose.msra.mxu0 %v3311
        %3630 = vmatprep.subr.mxu0 0.0
        %3631 = vmatpush1.xpose.msra.mxu0 %v3314
        %3632 = vmatprep.subr.mxu0 0.0
        %3633 = vmatpush1.xpose.msra.mxu0 %v3317
        %3634 = vmatprep.subr.mxu0 0.0
        %3635 = vmatpush1.xpose.msra.mxu0 %v3320
        %3636 = vmatprep.subr.mxu0 0.0
        %3637 = vmatpush1.xpose.msra.mxu0 %v3323
        %3638 = vmatprep.subr.mxu0 0.0
        %3639 = vmatpush1.xpose.msra.mxu0 %v3326
        %3640 = vmatprep.subr.mxu0 0.0
        %3641 = vmatpush1.xpose.msra.mxu0 %v3329
        %3642 = vmatprep.subr.mxu0 0.0
        %3643 = vmatpush1.xpose.msra.mxu0 %v3332
        %3644 = vmatprep.subr.mxu0 0.0
        %3645 = vmatpush1.xpose.msra.mxu0 %v3335
        %3646 = vmatprep.subr.mxu0 0.0
        %3647 = vmatpush1.xpose.msra.mxu0 %v3338
        %3648 = vmatprep.subr.mxu0 0.0
        %3649 = vmatpush1.xpose.msra.mxu0 %v3341
        %3650 = vmatprep.subr.mxu0 0.0
        %3651 = vmatpush1.xpose.msra.mxu0 %v3344
        %3652 = vmatprep.subr.mxu0 0.0
        %3653 = vmatpush1.xpose.msra.mxu0 %v3347
        %3654 = vmatprep.subr.mxu0 0.0
        %3655 = vmatpush1.xpose.msra.mxu0 %v3350
        %3656 = vmatprep.subr.mxu0 0.0
        %3657 = vmatpush1.xpose.msra.mxu0 %v3353
        %3658 = vmatprep.subr.mxu0 0.0
        %3659 = vmatpush1.xpose.msra.mxu0 %v3356
        %3660 = vmatprep.mubr.f32.mxu0 0.0
        %3661 = vmatmul.mubr.f32.gmra.mrb[0].mxu0 %v3068
        %v3662 = vpop.f32.mrb[0].mxu0
        %v3663 = vadd.f32 %v3066, %v3662
        %v3664 = vpop.f32.mrb[0].mxu0
        %v3665 = vadd.f32 %v3066, %v3664
        %3666 = vdwg.mxu0
        %3667 = vmatprep.subr.mxu0 0.0
        %3668 = vmatpush1.xpose.msra.mxu0 %v3359
        %3669 = vmatprep.subr.mxu0 0.0
        %3670 = vmatpush1.xpose.msra.mxu0 %v3362
        %3671 = vmatprep.subr.mxu0 0.0
        %3672 = vmatpush1.xpose.msra.mxu0 %v3365
        %3673 = vmatprep.subr.mxu0 0.0
        %3674 = vmatpush1.xpose.msra.mxu0 %v3368
        %3675 = vmatprep.subr.mxu0 0.0
        %3676 = vmatpush1.xpose.msra.mxu0 %v3371
        %3677 = vmatprep.subr.mxu0 0.0
        %3678 = vmatpush1.xpose.msra.mxu0 %v3374
        %3679 = vmatprep.subr.mxu0 0.0
        %3680 = vmatpush1.xpose.msra.mxu0 %v3377
        %3681 = vmatprep.subr.mxu0 0.0
        %3682 = vmatpush1.xpose.msra.mxu0 %v3380
        %3683 = vmatprep.subr.mxu0 0.0
        %3684 = vmatpush1.xpose.msra.mxu0 %v3383
        %3685 = vmatprep.subr.mxu0 0.0
        %3686 = vmatpush1.xpose.msra.mxu0 %v3386
        %3687 = vmatprep.subr.mxu0 0.0
        %3688 = vmatpush1.xpose.msra.mxu0 %v3389
        %3689 = vmatprep.subr.mxu0 0.0
        %3690 = vmatpush1.xpose.msra.mxu0 %v3392
        %3691 = vmatprep.subr.mxu0 0.0
        %3692 = vmatpush1.xpose.msra.mxu0 %v3395
        %3693 = vmatprep.subr.mxu0 0.0
        %3694 = vmatpush1.xpose.msra.mxu0 %v3398
        %3695 = vmatprep.subr.mxu0 0.0
        %3696 = vmatpush1.xpose.msra.mxu0 %v3401
        %3697 = vmatprep.subr.mxu0 0.0
        %3698 = vmatpush1.xpose.msra.mxu0 %v3404
        %3699 = vmatprep.subr.mxu0 0.0
        %3700 = vmatpush1.xpose.msra.mxu0 %v3407
        %3701 = vmatprep.subr.mxu0 0.0
        %3702 = vmatpush1.xpose.msra.mxu0 %v3410
        %3703 = vmatprep.subr.mxu0 0.0
        %3704 = vmatpush1.xpose.msra.mxu0 %v3413
        %3705 = vmatprep.subr.mxu0 0.0
        %3706 = vmatpush1.xpose.msra.mxu0 %v3416
        %3707 = vmatprep.subr.mxu0 0.0
        %3708 = vmatpush1.xpose.msra.mxu0 %v3419
        %3709 = vmatprep.subr.mxu0 0.0
        %3710 = vmatpush1.xpose.msra.mxu0 %v3422
        %3711 = vmatprep.subr.mxu0 0.0
        %3712 = vmatpush1.xpose.msra.mxu0 %v3425
        %3713 = vmatprep.subr.mxu0 0.0
        %3714 = vmatpush1.xpose.msra.mxu0 %v3428
        %3715 = vmatprep.subr.mxu0 0.0
        %3716 = vmatpush1.xpose.msra.mxu0 %v3431
        %3717 = vmatprep.subr.mxu0 0.0
        %3718 = vmatpush1.xpose.msra.mxu0 %v3434
        %3719 = vmatprep.subr.mxu0 0.0
        %3720 = vmatpush1.xpose.msra.mxu0 %v3437
        %3721 = vmatprep.subr.mxu0 0.0
        %3722 = vmatpush1.xpose.msra.mxu0 %v3440
        %3723 = vmatprep.subr.mxu0 0.0
        %3724 = vmatpush1.xpose.msra.mxu0 %v3443
        %3725 = vmatprep.subr.mxu0 0.0
        %3726 = vmatpush1.xpose.msra.mxu0 %v3446
        %3727 = vmatprep.subr.mxu0 0.0
        %3728 = vmatpush1.xpose.msra.mxu0 %v3449
        %3729 = vmatprep.subr.mxu0 0.0
        %3730 = vmatpush1.xpose.msra.mxu0 %v3452
        %3731 = vmatprep.mubr.f32.mxu0 0.0
        %3732 = vmatmul.mubr.f32.gmra.mrb[0].mxu0 %v3068
        %v3733 = vpop.f32.mrb[0].mxu0
        %v3734 = vadd.f32 %v3066, %v3733
        %v3735 = vpop.f32.mrb[0].mxu0
        %v3736 = vadd.f32 %v3066, %v3735
        %3737 = vdwg.mxu0
        %3738 = vst [vmem:[%s317] sm:$0x1] %v3521
        %3739 = vst [vmem:[%s317 + $0x1] sm:$0x1] %v3523
        %3740 = vst [vmem:[%s317 + $0x2] sm:$0x1] %v3592
        %3741 = vst [vmem:[%s317 + $0x3] sm:$0x1] %v3594
        %3742 = vst [vmem:[%s317 + $0x4] sm:$0x1] %v3663
        %3743 = vst [vmem:[%s317 + $0x5] sm:$0x1] %v3665
        %3744 = vst [vmem:[%s317 + $0x6] sm:$0x1] %v3734
        %3745 = vst [vmem:[%s317 + $0x7] sm:$0x1] %v3736
        %s3746 = sand.u32 %s210, 1
        %s3747 = scalar_lea.sflag [#allocation4], %s3746
        %s3748 = sand.u32 %s210, 1
        %s3749 = smul.addr %s3748, 8
        %s3750 = scalar_lea.vmem [#allocation3], %s3749
        // Predicated region
        $region53: #{_forward_pregathered.1} parent=51 // pred_check
          %p3751 = pneg %p220
        $region54: #{_forward_pregathered.1} parent=51 // pred_check_branch
          %3753 = sbr.rel (%p3751) target = $region56
        $region55: #{_forward_pregathered.1} parent=51 // pred_region
          %s3755 = ssub.s32 128, 128
          %3756 = vsyncadd %s3747, %s3755
          %s3757 = smul.addr %s24, 128
          %s3758 = scalar_lea.hbm %s8, %s3757
          %s3760 = sshll.u32 %s3750, 4
          %s3761 = int_to_ptr.vmem [resolvable:$true] %s3760
          %3763 = dma.vmem_to_hbm [thread:$0]  %s3761, 128, %s3758, %s3747
        $region56: #{_forward_pregathered.1} parent=51 // pred_fallthru
          _
      $region52: #{_forward_pregathered.1} parent=5 // pred_fallthru
        _
      %p3764 = scmp.le.s32.totalorder 2, %s19
      // Predicated region
      $region57: #{_forward_pregathered.1} parent=5 // pred_check
        %p3765 = pneg %p3764
      $region58: #{_forward_pregathered.1} parent=5 // pred_check_branch
        %3767 = sbr.rel (%p3765) target = $region60
      $region59: #{_forward_pregathered.1} parent=5 // pred_region
        %s3768 = ssub.s32 %s19, 2
        // Predicated region
        $region61: #{_forward_pregathered.1} parent=59 // pred_check
          %p3769 = pneg %p226
        $region62: #{_forward_pregathered.1} parent=59 // pred_check_branch
          %3771 = sbr.rel (%p3769) target = $region64
        $region63: #{_forward_pregathered.1} parent=59 // pred_region
          %s3772 = sand.u32 %s211, 1
          %s3773 = scalar_lea.sflag [#allocation4], %s3772
          %s3774 = sand.u32 %s211, 1
          %s3775 = smul.addr %s3774, 8
          %s3776 = scalar_lea.vmem [#allocation3], %s3775
          %3777 = dma.done %s3773, 128
        $region64: #{_forward_pregathered.1} parent=59 // pred_fallthru
          _
      $region60: #{_forward_pregathered.1} parent=5 // pred_fallthru
        _
    $region6: #{_forward_pregathered.1} parent=1 // loop_footer
      %s23 = sadd.s32 1, %s19
    $region7: #{_forward_pregathered.1} parent=1 // loop_footer_branch
      %18 = sbr.rel target = $region3
    $region8: #{_forward_pregathered.1} parent=1 // loop_exit
      _
    %3778 = vsyncpa [#allocation4], 1
    %s3779 = scalar_lea.sflag [#allocation4], 1
    %3780 = vsyncpa %s3779, 1

</llo_original>
